<compile_context>
chip_gen: v6e
topology: v6e:2x2x1
jax: 0.10.0
libtpu: 0.0.40
codegen_flags: <defaults>
</compile_context>

<pallas_src>
import jax
import jax.numpy as jnp
from jax.experimental import pallas as pl
from jax.experimental.pallas import tpu as pltpu

D_MODEL = 128      # input_dim / d_model
NHEAD = 8
DIM_FF = 512       # dim_feedforward
NUM_LAYERS = 4     # num_encoder_layers
OUT_DIM = 768      # output_dim
EPS = 1e-5         # nn.LayerNorm default


def _round_up(x, m):
    return (x + m - 1) // m * m


def _layernorm(x, gamma, beta):
    """Single-pass LayerNorm: the two cross-lane reductions are independent."""
    mean = jnp.mean(x, axis=-1, keepdims=True)
    mean_sq = jnp.mean(x * x, axis=-1, keepdims=True)
    var = mean_sq - mean * mean                        # biased var (PyTorch LN)
    inv = jax.lax.rsqrt(var + EPS)                     # EUP, hidden under MXU
    return (x - mean) * inv * gamma + beta


def encoder_kernel(x_ref,
                   wsa_ref, bsa_ref, g1_ref, be1_ref,
                   w1_ref, b1_ref, w2_ref, b2_ref,
                   g2_ref, be2_ref,
                   wfc_ref, bfc_ref,
                   out_ref):
    x = x_ref[...].astype(jnp.float32)
    for l in range(NUM_LAYERS):
        # --- self-attention block (seq_len == 1 => softmax == 1.0), folded to
        # a single affine map: sa = x @ (Wv @ Wo) + (bv @ Wo + bo) ---
        sa = jnp.dot(x.astype(jnp.bfloat16), wsa_ref[l],
                     preferred_element_type=jnp.float32) + bsa_ref[l]
        x = _layernorm(x + sa, g1_ref[l], be1_ref[l])
        # --- feed-forward block ---
        h = jnp.dot(x.astype(jnp.bfloat16), w1_ref[l],
                    preferred_element_type=jnp.float32) + b1_ref[l]
        h = jnp.maximum(h, 0.0)
        ff = jnp.dot(h.astype(jnp.bfloat16), w2_ref[l],
                     preferred_element_type=jnp.float32) + b2_ref[l]
        x = _layernorm(x + ff, g2_ref[l], be2_ref[l])
    # --- final fc_out ---
    out = jnp.dot(x.astype(jnp.bfloat16), wfc_ref[...],
                  preferred_element_type=jnp.float32) + bfc_ref[...]
    out_ref[...] = out.astype(out_ref.dtype)
    # TODO(synk): dropout layers are identity in eval mode; not implemented.


WEIGHT_ORDER = ("wsa", "bsa", "g1", "be1",
                "w1", "b1", "w2", "b2", "g2", "be2",
                "wfc", "bfc")


def _weight_spec(shape):
    """Full-array, grid-invariant weight spec (index_map is constant, so the
    block is DMA'd once; the worst-case double-buffer cost is budgeted)."""
    nd = len(shape)
    return pl.BlockSpec(shape, lambda i, _nd=nd: (0,) * _nd)


def fold_params(p):
    """Fold the seq_len==1 attention into one affine map; cast matmul weights to bf16."""
    wsa = jnp.einsum("lij,ljk->lik", p["wv"], p["wo"])            # (L, 128, 128)
    bsa = jnp.einsum("lij,ljk->lik", p["bv"], p["wo"]) + p["bo"]  # (L, 1, 128)
    f32 = jnp.float32
    bf16 = jnp.bfloat16
    return {
        "wsa": wsa.astype(bf16), "bsa": bsa.astype(f32),
        "g1": p["g1"].astype(f32), "be1": p["be1"].astype(f32),
        "w1": p["w1"].astype(bf16), "b1": p["b1"].astype(f32),
        "w2": p["w2"].astype(bf16), "b2": p["b2"].astype(f32),
        "g2": p["g2"].astype(f32), "be2": p["be2"].astype(f32),
        "wfc": p["wfc"].astype(bf16), "bfc": p["bfc"].astype(f32),
    }


def _choose_tile(B, tb):
    """16-aligned batch tile (bf16 packing); keep grid >= 2 when possible for
    v7x's two TensorCores; never pad a tiny batch up to a huge tile."""
    b16 = _round_up(max(B, 1), 16)
    tb_eff = min(_round_up(tb, 16), b16)
    if tb_eff >= b16 and b16 >= 32:
        # batch would fit a single tile but can be split into two >=16-row tiles
        tb_eff = _round_up(b16 // 2, 16)
    bp = _round_up(b16, tb_eff)
    return tb_eff, bp


def transformer_encoder_model(src, folded, *, tb=1024):
    B, D = src.shape
    assert D == D_MODEL
    tb_eff, Bp = _choose_tile(B, tb)

    # bf16 input: halves the read traffic; LN/residual math stays f32 in-kernel.
    src = src.astype(jnp.bfloat16)
    if Bp != B:
        src = jnp.pad(src, ((0, Bp - B), (0, 0)))

    weight_args = tuple(folded[k] for k in WEIGHT_ORDER)

    in_specs = [pl.BlockSpec((tb_eff, D_MODEL), lambda i: (i, 0))]
    in_specs += [_weight_spec(w.shape) for w in weight_args]
    out_spec = pl.BlockSpec((tb_eff, OUT_DIM), lambda i: (i, 0))

    # Advisory cost estimate (folded attention, bf16 in/out).
    flops_per_row = (NUM_LAYERS * (2 * D_MODEL * D_MODEL + 4 * D_MODEL * DIM_FF)
                     + 2 * D_MODEL * OUT_DIM)
    weight_bytes = sum(int(w.size) * w.dtype.itemsize for w in weight_args)
    cost = pl.CostEstimate(
        flops=Bp * flops_per_row,
        transcendentals=Bp * 2 * NUM_LAYERS,          # rsqrt per LayerNorm row
        bytes_accessed=Bp * (D_MODEL * 2 + OUT_DIM * 2) + weight_bytes,
    )

    out = pl.pallas_call(
        encoder_kernel,
        out_shape=jax.ShapeDtypeStruct((Bp, OUT_DIM), jnp.bfloat16),
        grid_spec=pltpu.PrefetchScalarGridSpec(
            num_scalar_prefetch=0,
            grid=(Bp // tb_eff,),
            in_specs=in_specs,
            out_specs=out_spec,
        ),
        compiler_params=pltpu.CompilerParams(
            dimension_semantics=("parallel",),
            vmem_limit_bytes=32 * 1024 * 1024,   # fits every generation (v7x: 64 MiB/TC)
        ),
        cost_estimate=cost,
    )(src, *weight_args)
    return out[:B] if Bp != B else out


def init_params(key):
    """Deterministic synthetic parameters (weights pre-transposed to (in, out))."""
    ks = jax.random.split(key, 8)
    scale = 0.02
    return {
        # per-layer attention weights: only V / out_proj matter for seq_len==1
        "wv": scale * jax.random.normal(ks[0], (NUM_LAYERS, D_MODEL, D_MODEL), jnp.float32),
        "bv": scale * jax.random.normal(ks[1], (NUM_LAYERS, 1, D_MODEL), jnp.float32),
        "wo": scale * jax.random.normal(ks[2], (NUM_LAYERS, D_MODEL, D_MODEL), jnp.float32),
        "bo": scale * jax.random.normal(ks[3], (NUM_LAYERS, 1, D_MODEL), jnp.float32),
        "g1": jnp.ones((NUM_LAYERS, 1, D_MODEL), jnp.float32),
        "be1": jnp.zeros((NUM_LAYERS, 1, D_MODEL), jnp.float32),
        "w1": scale * jax.random.normal(ks[4], (NUM_LAYERS, D_MODEL, DIM_FF), jnp.float32),
        "b1": jnp.zeros((NUM_LAYERS, 1, DIM_FF), jnp.float32),
        "w2": scale * jax.random.normal(ks[5], (NUM_LAYERS, DIM_FF, D_MODEL), jnp.float32),
        "b2": jnp.zeros((NUM_LAYERS, 1, D_MODEL), jnp.float32),
        "g2": jnp.ones((NUM_LAYERS, 1, D_MODEL), jnp.float32),
        "be2": jnp.zeros((NUM_LAYERS, 1, D_MODEL), jnp.float32),
        "wfc": scale * jax.random.normal(ks[6], (D_MODEL, OUT_DIM), jnp.float32),
        "bfc": scale * jax.random.normal(ks[7], (1, OUT_DIM), jnp.float32),
    }


def reference(src, p):
    """Pure-JAX f32 reference of the same (eval-mode) forward pass, unfolded,
    with the classic two-pass LayerNorm (independent of the kernel's form)."""
    def ln(x, gamma, beta):
        mu = jnp.mean(x, axis=-1, keepdims=True)
        xc = x - mu
        var = jnp.mean(xc * xc, axis=-1, keepdims=True)
        return xc * jax.lax.rsqrt(var + EPS) * gamma + beta

    x = src.astype(jnp.float32)
    for l in range(NUM_LAYERS):
        v = x @ p["wv"][l] + p["bv"][l, 0]
        sa = v @ p["wo"][l] + p["bo"][l, 0]
        x = ln(x + sa, p["g1"][l, 0], p["be1"][l, 0])
        h = jnp.maximum(x @ p["w1"][l] + p["b1"][l, 0], 0.0)
        ff = h @ p["w2"][l] + p["b2"][l, 0]
        x = ln(x + ff, p["g2"][l, 0], p["be2"][l, 0])
    return x @ p["wfc"] + p["bfc"][0]


if __name__ == "__main__":
    key = jax.random.PRNGKey(0)
    k_x, k_p = jax.random.split(key)
    B = 16
    src = jax.random.normal(k_x, (B, D_MODEL), jnp.float32)
    params = init_params(k_p)
    folded = fold_params(params)

    out = transformer_encoder_model(src, folded)
    out = jax.block_until_ready(out)

    ref = reference(src, params)
    assert out.shape == (B, OUT_DIM)
    assert out.dtype == jnp.bfloat16
    # bf16 in/out + bf16 matmuls + folded attention change FP association ->
    # loose tolerance against the pure-f32 reference.
    assert jnp.allclose(out.astype(jnp.float32), ref, rtol=5e-2, atol=5e-2), \
        "mismatch vs JAX reference"
    print("KERNEL_OK")
</pallas_src>

<mosaic_0001>
module attributes {stable_mosaic.version = 11 : i64} {
  func.func @encoder_kernel(%arg0: i32, %arg1: memref<16x128xbf16, #tpu.memory_space<vmem>>, %arg2: memref<4x128x128xbf16, #tpu.memory_space<vmem>>, %arg3: memref<4x1x128xf32, #tpu.memory_space<vmem>>, %arg4: memref<4x1x128xf32, #tpu.memory_space<vmem>>, %arg5: memref<4x1x128xf32, #tpu.memory_space<vmem>>, %arg6: memref<4x128x512xbf16, #tpu.memory_space<vmem>>, %arg7: memref<4x1x512xf32, #tpu.memory_space<vmem>>, %arg8: memref<4x512x128xbf16, #tpu.memory_space<vmem>>, %arg9: memref<4x1x128xf32, #tpu.memory_space<vmem>>, %arg10: memref<4x1x128xf32, #tpu.memory_space<vmem>>, %arg11: memref<4x1x128xf32, #tpu.memory_space<vmem>>, %arg12: memref<128x768xbf16, #tpu.memory_space<vmem>>, %arg13: memref<1x768xf32, #tpu.memory_space<vmem>>, %arg14: memref<16x768xbf16, #tpu.memory_space<vmem>>) attributes {dimension_semantics = [#tpu.dimension_semantics<parallel>], iteration_bounds = array<i64: 1>, scalar_prefetch = 0 : i64, scratch_operands = 0 : i64, tpu.core_type = #tpu.core_type<tc>, window_params = [{transform_indices = @transform_0, window_bounds = array<i64: 16, 128>}, {pipeline_mode = #tpu.pipeline_mode<synchronous>, transform_indices = @transform_1, window_bounds = array<i64: 4, 128, 128>}, {pipeline_mode = #tpu.pipeline_mode<synchronous>, transform_indices = @transform_2, window_bounds = array<i64: 4, 1, 128>}, {pipeline_mode = #tpu.pipeline_mode<synchronous>, transform_indices = @transform_3, window_bounds = array<i64: 4, 1, 128>}, {pipeline_mode = #tpu.pipeline_mode<synchronous>, transform_indices = @transform_4, window_bounds = array<i64: 4, 1, 128>}, {pipeline_mode = #tpu.pipeline_mode<synchronous>, transform_indices = @transform_5, window_bounds = array<i64: 4, 128, 512>}, {pipeline_mode = #tpu.pipeline_mode<synchronous>, transform_indices = @transform_6, window_bounds = array<i64: 4, 1, 512>}, {pipeline_mode = #tpu.pipeline_mode<synchronous>, transform_indices = @transform_7, window_bounds = array<i64: 4, 512, 128>}, {pipeline_mode = #tpu.pipeline_mode<synchronous>, transform_indices = @transform_8, window_bounds = array<i64: 4, 1, 128>}, {pipeline_mode = #tpu.pipeline_mode<synchronous>, transform_indices = @transform_9, window_bounds = array<i64: 4, 1, 128>}, {pipeline_mode = #tpu.pipeline_mode<synchronous>, transform_indices = @transform_10, window_bounds = array<i64: 4, 1, 128>}, {pipeline_mode = #tpu.pipeline_mode<synchronous>, transform_indices = @transform_11, window_bounds = array<i64: 128, 768>}, {pipeline_mode = #tpu.pipeline_mode<synchronous>, transform_indices = @transform_12, window_bounds = array<i64: 1, 768>}, {transform_indices = @transform_13, window_bounds = array<i64: 16, 768>}]} {
    %c0 = arith.constant 0 : index
    %c0_0 = arith.constant 0 : index
    %0 = vector.load %arg1[%c0, %c0_0] : memref<16x128xbf16, #tpu.memory_space<vmem>>, vector<16x128xbf16>
    %1 = arith.extf %0 : vector<16x128xbf16> to vector<16x128xf32>
    %2 = arith.truncf %1 : vector<16x128xf32> to vector<16x128xbf16>
    %c0_1 = arith.constant 0 : index
    %c0_2 = arith.constant 0 : index
    %c0_3 = arith.constant 0 : index
    %3 = vector.load %arg2[%c0_1, %c0_2, %c0_3] : memref<4x128x128xbf16, #tpu.memory_space<vmem>>, vector<1x128x128xbf16>
    %4 = vector.shape_cast %3 : vector<1x128x128xbf16> to vector<128x128xbf16>
    %cst = arith.constant dense<0.000000e+00> : vector<16x128xf32>
    %5 = tpu.matmul %2, %4, %cst {dimension_numbers = #tpu.dot_dimension_numbers<[1], [0], [0], [1], [0, 0, 1, 1], [], []>} : vector<16x128xbf16>, vector<128x128xbf16>, vector<16x128xf32> -> vector<16x128xf32>
    %c0_4 = arith.constant 0 : index
    %c0_5 = arith.constant 0 : index
    %c0_6 = arith.constant 0 : index
    %6 = vector.load %arg3[%c0_4, %c0_5, %c0_6] : memref<4x1x128xf32, #tpu.memory_space<vmem>>, vector<1x1x128xf32>
    %7 = vector.shape_cast %6 : vector<1x1x128xf32> to vector<1x128xf32>
    %8 = vector.broadcast %7 : vector<1x128xf32> to vector<16x128xf32>
    %9 = arith.addf %5, %8 : vector<16x128xf32>
    %10 = arith.addf %1, %9 : vector<16x128xf32>
    %c0_7 = arith.constant 0 : index
    %c0_8 = arith.constant 0 : index
    %c0_9 = arith.constant 0 : index
    %11 = vector.load %arg4[%c0_7, %c0_8, %c0_9] : memref<4x1x128xf32, #tpu.memory_space<vmem>>, vector<1x1x128xf32>
    %12 = vector.shape_cast %11 : vector<1x1x128xf32> to vector<1x128xf32>
    %c0_10 = arith.constant 0 : index
    %c0_11 = arith.constant 0 : index
    %c0_12 = arith.constant 0 : index
    %13 = vector.load %arg5[%c0_10, %c0_11, %c0_12] : memref<4x1x128xf32, #tpu.memory_space<vmem>>, vector<1x1x128xf32>
    %14 = vector.shape_cast %13 : vector<1x1x128xf32> to vector<1x128xf32>
    %cst_13 = arith.constant dense<0.000000e+00> : vector<16xf32>
    %15 = vector.multi_reduction <add>, %10, %cst_13 [1] : vector<16x128xf32> to vector<16xf32>
    %16 = vector.shape_cast %15 : vector<16xf32> to vector<16x1xf32>
    %cst_14 = arith.constant 1.280000e+02 : f32
    %17 = vector.broadcast %cst_14 : f32 to vector<16x1xf32>
    %18 = arith.divf %16, %17 : vector<16x1xf32>
    %19 = arith.mulf %10, %10 : vector<16x128xf32>
    %cst_15 = arith.constant dense<0.000000e+00> : vector<16xf32>
    %20 = vector.multi_reduction <add>, %19, %cst_15 [1] : vector<16x128xf32> to vector<16xf32>
    %21 = vector.shape_cast %20 : vector<16xf32> to vector<16x1xf32>
    %cst_16 = arith.constant 1.280000e+02 : f32
    %22 = vector.broadcast %cst_16 : f32 to vector<16x1xf32>
    %23 = arith.divf %21, %22 : vector<16x1xf32>
    %24 = arith.mulf %18, %18 : vector<16x1xf32>
    %25 = arith.subf %23, %24 : vector<16x1xf32>
    %cst_17 = arith.constant 9.99999974E-6 : f32
    %26 = vector.broadcast %cst_17 : f32 to vector<16x1xf32>
    %27 = arith.addf %25, %26 : vector<16x1xf32>
    %28 = math.rsqrt %27 : vector<16x1xf32>
    %29 = vector.broadcast %18 : vector<16x1xf32> to vector<16x128xf32>
    %30 = arith.subf %10, %29 : vector<16x128xf32>
    %31 = vector.broadcast %28 : vector<16x1xf32> to vector<16x128xf32>
    %32 = arith.mulf %30, %31 : vector<16x128xf32>
    %33 = vector.broadcast %12 : vector<1x128xf32> to vector<16x128xf32>
    %34 = arith.mulf %32, %33 : vector<16x128xf32>
    %35 = vector.broadcast %14 : vector<1x128xf32> to vector<16x128xf32>
    %36 = arith.addf %34, %35 : vector<16x128xf32>
    %37 = arith.truncf %36 : vector<16x128xf32> to vector<16x128xbf16>
    %c0_18 = arith.constant 0 : index
    %c0_19 = arith.constant 0 : index
    %c0_20 = arith.constant 0 : index
    %38 = vector.load %arg6[%c0_18, %c0_19, %c0_20] : memref<4x128x512xbf16, #tpu.memory_space<vmem>>, vector<1x128x512xbf16>
    %39 = vector.shape_cast %38 : vector<1x128x512xbf16> to vector<128x512xbf16>
    %cst_21 = arith.constant dense<0.000000e+00> : vector<16x512xf32>
    %40 = tpu.matmul %37, %39, %cst_21 {dimension_numbers = #tpu.dot_dimension_numbers<[1], [0], [0], [1], [0, 0, 1, 1], [], []>} : vector<16x128xbf16>, vector<128x512xbf16>, vector<16x512xf32> -> vector<16x512xf32>
    %c0_22 = arith.constant 0 : index
    %c0_23 = arith.constant 0 : index
    %c0_24 = arith.constant 0 : index
    %41 = vector.load %arg7[%c0_22, %c0_23, %c0_24] : memref<4x1x512xf32, #tpu.memory_space<vmem>>, vector<1x1x512xf32>
    %42 = vector.shape_cast %41 : vector<1x1x512xf32> to vector<1x512xf32>
    %43 = vector.broadcast %42 : vector<1x512xf32> to vector<16x512xf32>
    %44 = arith.addf %40, %43 : vector<16x512xf32>
    %cst_25 = arith.constant 0.000000e+00 : f32
    %45 = vector.broadcast %cst_25 : f32 to vector<16x512xf32>
    %46 = arith.maximumf %44, %45 : vector<16x512xf32>
    %47 = arith.truncf %46 : vector<16x512xf32> to vector<16x512xbf16>
    %c0_26 = arith.constant 0 : index
    %c0_27 = arith.constant 0 : index
    %c0_28 = arith.constant 0 : index
    %48 = vector.load %arg8[%c0_26, %c0_27, %c0_28] : memref<4x512x128xbf16, #tpu.memory_space<vmem>>, vector<1x512x128xbf16>
    %49 = vector.shape_cast %48 : vector<1x512x128xbf16> to vector<512x128xbf16>
    %cst_29 = arith.constant dense<0.000000e+00> : vector<16x128xf32>
    %50 = tpu.matmul %47, %49, %cst_29 {dimension_numbers = #tpu.dot_dimension_numbers<[1], [0], [0], [1], [0, 0, 1, 1], [], []>} : vector<16x512xbf16>, vector<512x128xbf16>, vector<16x128xf32> -> vector<16x128xf32>
    %c0_30 = arith.constant 0 : index
    %c0_31 = arith.constant 0 : index
    %c0_32 = arith.constant 0 : index
    %51 = vector.load %arg9[%c0_30, %c0_31, %c0_32] : memref<4x1x128xf32, #tpu.memory_space<vmem>>, vector<1x1x128xf32>
    %52 = vector.shape_cast %51 : vector<1x1x128xf32> to vector<1x128xf32>
    %53 = vector.broadcast %52 : vector<1x128xf32> to vector<16x128xf32>
    %54 = arith.addf %50, %53 : vector<16x128xf32>
    %55 = arith.addf %36, %54 : vector<16x128xf32>
    %c0_33 = arith.constant 0 : index
    %c0_34 = arith.constant 0 : index
    %c0_35 = arith.constant 0 : index
    %56 = vector.load %arg10[%c0_33, %c0_34, %c0_35] : memref<4x1x128xf32, #tpu.memory_space<vmem>>, vector<1x1x128xf32>
    %57 = vector.shape_cast %56 : vector<1x1x128xf32> to vector<1x128xf32>
    %c0_36 = arith.constant 0 : index
    %c0_37 = arith.constant 0 : index
    %c0_38 = arith.constant 0 : index
    %58 = vector.load %arg11[%c0_36, %c0_37, %c0_38] : memref<4x1x128xf32, #tpu.memory_space<vmem>>, vector<1x1x128xf32>
    %59 = vector.shape_cast %58 : vector<1x1x128xf32> to vector<1x128xf32>
    %cst_39 = arith.constant dense<0.000000e+00> : vector<16xf32>
    %60 = vector.multi_reduction <add>, %55, %cst_39 [1] : vector<16x128xf32> to vector<16xf32>
    %61 = vector.shape_cast %60 : vector<16xf32> to vector<16x1xf32>
    %cst_40 = arith.constant 1.280000e+02 : f32
    %62 = vector.broadcast %cst_40 : f32 to vector<16x1xf32>
    %63 = arith.divf %61, %62 : vector<16x1xf32>
    %64 = arith.mulf %55, %55 : vector<16x128xf32>
    %cst_41 = arith.constant dense<0.000000e+00> : vector<16xf32>
    %65 = vector.multi_reduction <add>, %64, %cst_41 [1] : vector<16x128xf32> to vector<16xf32>
    %66 = vector.shape_cast %65 : vector<16xf32> to vector<16x1xf32>
    %cst_42 = arith.constant 1.280000e+02 : f32
    %67 = vector.broadcast %cst_42 : f32 to vector<16x1xf32>
    %68 = arith.divf %66, %67 : vector<16x1xf32>
    %69 = arith.mulf %63, %63 : vector<16x1xf32>
    %70 = arith.subf %68, %69 : vector<16x1xf32>
    %cst_43 = arith.constant 9.99999974E-6 : f32
    %71 = vector.broadcast %cst_43 : f32 to vector<16x1xf32>
    %72 = arith.addf %70, %71 : vector<16x1xf32>
    %73 = math.rsqrt %72 : vector<16x1xf32>
    %74 = vector.broadcast %63 : vector<16x1xf32> to vector<16x128xf32>
    %75 = arith.subf %55, %74 : vector<16x128xf32>
    %76 = vector.broadcast %73 : vector<16x1xf32> to vector<16x128xf32>
    %77 = arith.mulf %75, %76 : vector<16x128xf32>
    %78 = vector.broadcast %57 : vector<1x128xf32> to vector<16x128xf32>
    %79 = arith.mulf %77, %78 : vector<16x128xf32>
    %80 = vector.broadcast %59 : vector<1x128xf32> to vector<16x128xf32>
    %81 = arith.addf %79, %80 : vector<16x128xf32>
    %82 = arith.truncf %81 : vector<16x128xf32> to vector<16x128xbf16>
    %c1 = arith.constant 1 : index
    %c0_44 = arith.constant 0 : index
    %c0_45 = arith.constant 0 : index
    %83 = vector.load %arg2[%c1, %c0_44, %c0_45] : memref<4x128x128xbf16, #tpu.memory_space<vmem>>, vector<1x128x128xbf16>
    %84 = vector.shape_cast %83 : vector<1x128x128xbf16> to vector<128x128xbf16>
    %cst_46 = arith.constant dense<0.000000e+00> : vector<16x128xf32>
    %85 = tpu.matmul %82, %84, %cst_46 {dimension_numbers = #tpu.dot_dimension_numbers<[1], [0], [0], [1], [0, 0, 1, 1], [], []>} : vector<16x128xbf16>, vector<128x128xbf16>, vector<16x128xf32> -> vector<16x128xf32>
    %c1_47 = arith.constant 1 : index
    %c0_48 = arith.constant 0 : index
    %c0_49 = arith.constant 0 : index
    %86 = vector.load %arg3[%c1_47, %c0_48, %c0_49] : memref<4x1x128xf32, #tpu.memory_space<vmem>>, vector<1x1x128xf32>
    %87 = vector.shape_cast %86 : vector<1x1x128xf32> to vector<1x128xf32>
    %88 = vector.broadcast %87 : vector<1x128xf32> to vector<16x128xf32>
    %89 = arith.addf %85, %88 : vector<16x128xf32>
    %90 = arith.addf %81, %89 : vector<16x128xf32>
    %c1_50 = arith.constant 1 : index
    %c0_51 = arith.constant 0 : index
    %c0_52 = arith.constant 0 : index
    %91 = vector.load %arg4[%c1_50, %c0_51, %c0_52] : memref<4x1x128xf32, #tpu.memory_space<vmem>>, vector<1x1x128xf32>
    %92 = vector.shape_cast %91 : vector<1x1x128xf32> to vector<1x128xf32>
    %c1_53 = arith.constant 1 : index
    %c0_54 = arith.constant 0 : index
    %c0_55 = arith.constant 0 : index
    %93 = vector.load %arg5[%c1_53, %c0_54, %c0_55] : memref<4x1x128xf32, #tpu.memory_space<vmem>>, vector<1x1x128xf32>
    %94 = vector.shape_cast %93 : vector<1x1x128xf32> to vector<1x128xf32>
    %cst_56 = arith.constant dense<0.000000e+00> : vector<16xf32>
    %95 = vector.multi_reduction <add>, %90, %cst_56 [1] : vector<16x128xf32> to vector<16xf32>
    %96 = vector.shape_cast %95 : vector<16xf32> to vector<16x1xf32>
    %cst_57 = arith.constant 1.280000e+02 : f32
    %97 = vector.broadcast %cst_57 : f32 to vector<16x1xf32>
    %98 = arith.divf %96, %97 : vector<16x1xf32>
    %99 = arith.mulf %90, %90 : vector<16x128xf32>
    %cst_58 = arith.constant dense<0.000000e+00> : vector<16xf32>
    %100 = vector.multi_reduction <add>, %99, %cst_58 [1] : vector<16x128xf32> to vector<16xf32>
    %101 = vector.shape_cast %100 : vector<16xf32> to vector<16x1xf32>
    %cst_59 = arith.constant 1.280000e+02 : f32
    %102 = vector.broadcast %cst_59 : f32 to vector<16x1xf32>
    %103 = arith.divf %101, %102 : vector<16x1xf32>
    %104 = arith.mulf %98, %98 : vector<16x1xf32>
    %105 = arith.subf %103, %104 : vector<16x1xf32>
    %cst_60 = arith.constant 9.99999974E-6 : f32
    %106 = vector.broadcast %cst_60 : f32 to vector<16x1xf32>
    %107 = arith.addf %105, %106 : vector<16x1xf32>
    %108 = math.rsqrt %107 : vector<16x1xf32>
    %109 = vector.broadcast %98 : vector<16x1xf32> to vector<16x128xf32>
    %110 = arith.subf %90, %109 : vector<16x128xf32>
    %111 = vector.broadcast %108 : vector<16x1xf32> to vector<16x128xf32>
    %112 = arith.mulf %110, %111 : vector<16x128xf32>
    %113 = vector.broadcast %92 : vector<1x128xf32> to vector<16x128xf32>
    %114 = arith.mulf %112, %113 : vector<16x128xf32>
    %115 = vector.broadcast %94 : vector<1x128xf32> to vector<16x128xf32>
    %116 = arith.addf %114, %115 : vector<16x128xf32>
    %117 = arith.truncf %116 : vector<16x128xf32> to vector<16x128xbf16>
    %c1_61 = arith.constant 1 : index
    %c0_62 = arith.constant 0 : index
    %c0_63 = arith.constant 0 : index
    %118 = vector.load %arg6[%c1_61, %c0_62, %c0_63] : memref<4x128x512xbf16, #tpu.memory_space<vmem>>, vector<1x128x512xbf16>
    %119 = vector.shape_cast %118 : vector<1x128x512xbf16> to vector<128x512xbf16>
    %cst_64 = arith.constant dense<0.000000e+00> : vector<16x512xf32>
    %120 = tpu.matmul %117, %119, %cst_64 {dimension_numbers = #tpu.dot_dimension_numbers<[1], [0], [0], [1], [0, 0, 1, 1], [], []>} : vector<16x128xbf16>, vector<128x512xbf16>, vector<16x512xf32> -> vector<16x512xf32>
    %c1_65 = arith.constant 1 : index
    %c0_66 = arith.constant 0 : index
    %c0_67 = arith.constant 0 : index
    %121 = vector.load %arg7[%c1_65, %c0_66, %c0_67] : memref<4x1x512xf32, #tpu.memory_space<vmem>>, vector<1x1x512xf32>
    %122 = vector.shape_cast %121 : vector<1x1x512xf32> to vector<1x512xf32>
    %123 = vector.broadcast %122 : vector<1x512xf32> to vector<16x512xf32>
    %124 = arith.addf %120, %123 : vector<16x512xf32>
    %cst_68 = arith.constant 0.000000e+00 : f32
    %125 = vector.broadcast %cst_68 : f32 to vector<16x512xf32>
    %126 = arith.maximumf %124, %125 : vector<16x512xf32>
    %127 = arith.truncf %126 : vector<16x512xf32> to vector<16x512xbf16>
    %c1_69 = arith.constant 1 : index
    %c0_70 = arith.constant 0 : index
    %c0_71 = arith.constant 0 : index
    %128 = vector.load %arg8[%c1_69, %c0_70, %c0_71] : memref<4x512x128xbf16, #tpu.memory_space<vmem>>, vector<1x512x128xbf16>
    %129 = vector.shape_cast %128 : vector<1x512x128xbf16> to vector<512x128xbf16>
    %cst_72 = arith.constant dense<0.000000e+00> : vector<16x128xf32>
    %130 = tpu.matmul %127, %129, %cst_72 {dimension_numbers = #tpu.dot_dimension_numbers<[1], [0], [0], [1], [0, 0, 1, 1], [], []>} : vector<16x512xbf16>, vector<512x128xbf16>, vector<16x128xf32> -> vector<16x128xf32>
    %c1_73 = arith.constant 1 : index
    %c0_74 = arith.constant 0 : index
    %c0_75 = arith.constant 0 : index
    %131 = vector.load %arg9[%c1_73, %c0_74, %c0_75] : memref<4x1x128xf32, #tpu.memory_space<vmem>>, vector<1x1x128xf32>
    %132 = vector.shape_cast %131 : vector<1x1x128xf32> to vector<1x128xf32>
    %133 = vector.broadcast %132 : vector<1x128xf32> to vector<16x128xf32>
    %134 = arith.addf %130, %133 : vector<16x128xf32>
    %135 = arith.addf %116, %134 : vector<16x128xf32>
    %c1_76 = arith.constant 1 : index
    %c0_77 = arith.constant 0 : index
    %c0_78 = arith.constant 0 : index
    %136 = vector.load %arg10[%c1_76, %c0_77, %c0_78] : memref<4x1x128xf32, #tpu.memory_space<vmem>>, vector<1x1x128xf32>
    %137 = vector.shape_cast %136 : vector<1x1x128xf32> to vector<1x128xf32>
    %c1_79 = arith.constant 1 : index
    %c0_80 = arith.constant 0 : index
    %c0_81 = arith.constant 0 : index
    %138 = vector.load %arg11[%c1_79, %c0_80, %c0_81] : memref<4x1x128xf32, #tpu.memory_space<vmem>>, vector<1x1x128xf32>
    %139 = vector.shape_cast %138 : vector<1x1x128xf32> to vector<1x128xf32>
    %cst_82 = arith.constant dense<0.000000e+00> : vector<16xf32>
    %140 = vector.multi_reduction <add>, %135, %cst_82 [1] : vector<16x128xf32> to vector<16xf32>
    %141 = vector.shape_cast %140 : vector<16xf32> to vector<16x1xf32>
    %cst_83 = arith.constant 1.280000e+02 : f32
    %142 = vector.broadcast %cst_83 : f32 to vector<16x1xf32>
    %143 = arith.divf %141, %142 : vector<16x1xf32>
    %144 = arith.mulf %135, %135 : vector<16x128xf32>
    %cst_84 = arith.constant dense<0.000000e+00> : vector<16xf32>
    %145 = vector.multi_reduction <add>, %144, %cst_84 [1] : vector<16x128xf32> to vector<16xf32>
    %146 = vector.shape_cast %145 : vector<16xf32> to vector<16x1xf32>
    %cst_85 = arith.constant 1.280000e+02 : f32
    %147 = vector.broadcast %cst_85 : f32 to vector<16x1xf32>
    %148 = arith.divf %146, %147 : vector<16x1xf32>
    %149 = arith.mulf %143, %143 : vector<16x1xf32>
    %150 = arith.subf %148, %149 : vector<16x1xf32>
    %cst_86 = arith.constant 9.99999974E-6 : f32
    %151 = vector.broadcast %cst_86 : f32 to vector<16x1xf32>
    %152 = arith.addf %150, %151 : vector<16x1xf32>
    %153 = math.rsqrt %152 : vector<16x1xf32>
    %154 = vector.broadcast %143 : vector<16x1xf32> to vector<16x128xf32>
    %155 = arith.subf %135, %154 : vector<16x128xf32>
    %156 = vector.broadcast %153 : vector<16x1xf32> to vector<16x128xf32>
    %157 = arith.mulf %155, %156 : vector<16x128xf32>
    %158 = vector.broadcast %137 : vector<1x128xf32> to vector<16x128xf32>
    %159 = arith.mulf %157, %158 : vector<16x128xf32>
    %160 = vector.broadcast %139 : vector<1x128xf32> to vector<16x128xf32>
    %161 = arith.addf %159, %160 : vector<16x128xf32>
    %162 = arith.truncf %161 : vector<16x128xf32> to vector<16x128xbf16>
    %c2 = arith.constant 2 : index
    %c0_87 = arith.constant 0 : index
    %c0_88 = arith.constant 0 : index
    %163 = vector.load %arg2[%c2, %c0_87, %c0_88] : memref<4x128x128xbf16, #tpu.memory_space<vmem>>, vector<1x128x128xbf16>
    %164 = vector.shape_cast %163 : vector<1x128x128xbf16> to vector<128x128xbf16>
    %cst_89 = arith.constant dense<0.000000e+00> : vector<16x128xf32>
    %165 = tpu.matmul %162, %164, %cst_89 {dimension_numbers = #tpu.dot_dimension_numbers<[1], [0], [0], [1], [0, 0, 1, 1], [], []>} : vector<16x128xbf16>, vector<128x128xbf16>, vector<16x128xf32> -> vector<16x128xf32>
    %c2_90 = arith.constant 2 : index
    %c0_91 = arith.constant 0 : index
    %c0_92 = arith.constant 0 : index
    %166 = vector.load %arg3[%c2_90, %c0_91, %c0_92] : memref<4x1x128xf32, #tpu.memory_space<vmem>>, vector<1x1x128xf32>
    %167 = vector.shape_cast %166 : vector<1x1x128xf32> to vector<1x128xf32>
    %168 = vector.broadcast %167 : vector<1x128xf32> to vector<16x128xf32>
    %169 = arith.addf %165, %168 : vector<16x128xf32>
    %170 = arith.addf %161, %169 : vector<16x128xf32>
    %c2_93 = arith.constant 2 : index
    %c0_94 = arith.constant 0 : index
    %c0_95 = arith.constant 0 : index
    %171 = vector.load %arg4[%c2_93, %c0_94, %c0_95] : memref<4x1x128xf32, #tpu.memory_space<vmem>>, vector<1x1x128xf32>
    %172 = vector.shape_cast %171 : vector<1x1x128xf32> to vector<1x128xf32>
    %c2_96 = arith.constant 2 : index
    %c0_97 = arith.constant 0 : index
    %c0_98 = arith.constant 0 : index
    %173 = vector.load %arg5[%c2_96, %c0_97, %c0_98] : memref<4x1x128xf32, #tpu.memory_space<vmem>>, vector<1x1x128xf32>
    %174 = vector.shape_cast %173 : vector<1x1x128xf32> to vector<1x128xf32>
    %cst_99 = arith.constant dense<0.000000e+00> : vector<16xf32>
    %175 = vector.multi_reduction <add>, %170, %cst_99 [1] : vector<16x128xf32> to vector<16xf32>
    %176 = vector.shape_cast %175 : vector<16xf32> to vector<16x1xf32>
    %cst_100 = arith.constant 1.280000e+02 : f32
    %177 = vector.broadcast %cst_100 : f32 to vector<16x1xf32>
    %178 = arith.divf %176, %177 : vector<16x1xf32>
    %179 = arith.mulf %170, %170 : vector<16x128xf32>
    %cst_101 = arith.constant dense<0.000000e+00> : vector<16xf32>
    %180 = vector.multi_reduction <add>, %179, %cst_101 [1] : vector<16x128xf32> to vector<16xf32>
    %181 = vector.shape_cast %180 : vector<16xf32> to vector<16x1xf32>
    %cst_102 = arith.constant 1.280000e+02 : f32
    %182 = vector.broadcast %cst_102 : f32 to vector<16x1xf32>
    %183 = arith.divf %181, %182 : vector<16x1xf32>
    %184 = arith.mulf %178, %178 : vector<16x1xf32>
    %185 = arith.subf %183, %184 : vector<16x1xf32>
    %cst_103 = arith.constant 9.99999974E-6 : f32
    %186 = vector.broadcast %cst_103 : f32 to vector<16x1xf32>
    %187 = arith.addf %185, %186 : vector<16x1xf32>
    %188 = math.rsqrt %187 : vector<16x1xf32>
    %189 = vector.broadcast %178 : vector<16x1xf32> to vector<16x128xf32>
    %190 = arith.subf %170, %189 : vector<16x128xf32>
    %191 = vector.broadcast %188 : vector<16x1xf32> to vector<16x128xf32>
    %192 = arith.mulf %190, %191 : vector<16x128xf32>
    %193 = vector.broadcast %172 : vector<1x128xf32> to vector<16x128xf32>
    %194 = arith.mulf %192, %193 : vector<16x128xf32>
    %195 = vector.broadcast %174 : vector<1x128xf32> to vector<16x128xf32>
    %196 = arith.addf %194, %195 : vector<16x128xf32>
    %197 = arith.truncf %196 : vector<16x128xf32> to vector<16x128xbf16>
    %c2_104 = arith.constant 2 : index
    %c0_105 = arith.constant 0 : index
    %c0_106 = arith.constant 0 : index
    %198 = vector.load %arg6[%c2_104, %c0_105, %c0_106] : memref<4x128x512xbf16, #tpu.memory_space<vmem>>, vector<1x128x512xbf16>
    %199 = vector.shape_cast %198 : vector<1x128x512xbf16> to vector<128x512xbf16>
    %cst_107 = arith.constant dense<0.000000e+00> : vector<16x512xf32>
    %200 = tpu.matmul %197, %199, %cst_107 {dimension_numbers = #tpu.dot_dimension_numbers<[1], [0], [0], [1], [0, 0, 1, 1], [], []>} : vector<16x128xbf16>, vector<128x512xbf16>, vector<16x512xf32> -> vector<16x512xf32>
    %c2_108 = arith.constant 2 : index
    %c0_109 = arith.constant 0 : index
    %c0_110 = arith.constant 0 : index
    %201 = vector.load %arg7[%c2_108, %c0_109, %c0_110] : memref<4x1x512xf32, #tpu.memory_space<vmem>>, vector<1x1x512xf32>
    %202 = vector.shape_cast %201 : vector<1x1x512xf32> to vector<1x512xf32>
    %203 = vector.broadcast %202 : vector<1x512xf32> to vector<16x512xf32>
    %204 = arith.addf %200, %203 : vector<16x512xf32>
    %cst_111 = arith.constant 0.000000e+00 : f32
    %205 = vector.broadcast %cst_111 : f32 to vector<16x512xf32>
    %206 = arith.maximumf %204, %205 : vector<16x512xf32>
    %207 = arith.truncf %206 : vector<16x512xf32> to vector<16x512xbf16>
    %c2_112 = arith.constant 2 : index
    %c0_113 = arith.constant 0 : index
    %c0_114 = arith.constant 0 : index
    %208 = vector.load %arg8[%c2_112, %c0_113, %c0_114] : memref<4x512x128xbf16, #tpu.memory_space<vmem>>, vector<1x512x128xbf16>
    %209 = vector.shape_cast %208 : vector<1x512x128xbf16> to vector<512x128xbf16>
    %cst_115 = arith.constant dense<0.000000e+00> : vector<16x128xf32>
    %210 = tpu.matmul %207, %209, %cst_115 {dimension_numbers = #tpu.dot_dimension_numbers<[1], [0], [0], [1], [0, 0, 1, 1], [], []>} : vector<16x512xbf16>, vector<512x128xbf16>, vector<16x128xf32> -> vector<16x128xf32>
    %c2_116 = arith.constant 2 : index
    %c0_117 = arith.constant 0 : index
    %c0_118 = arith.constant 0 : index
    %211 = vector.load %arg9[%c2_116, %c0_117, %c0_118] : memref<4x1x128xf32, #tpu.memory_space<vmem>>, vector<1x1x128xf32>
    %212 = vector.shape_cast %211 : vector<1x1x128xf32> to vector<1x128xf32>
    %213 = vector.broadcast %212 : vector<1x128xf32> to vector<16x128xf32>
    %214 = arith.addf %210, %213 : vector<16x128xf32>
    %215 = arith.addf %196, %214 : vector<16x128xf32>
    %c2_119 = arith.constant 2 : index
    %c0_120 = arith.constant 0 : index
    %c0_121 = arith.constant 0 : index
    %216 = vector.load %arg10[%c2_119, %c0_120, %c0_121] : memref<4x1x128xf32, #tpu.memory_space<vmem>>, vector<1x1x128xf32>
    %217 = vector.shape_cast %216 : vector<1x1x128xf32> to vector<1x128xf32>
    %c2_122 = arith.constant 2 : index
    %c0_123 = arith.constant 0 : index
    %c0_124 = arith.constant 0 : index
    %218 = vector.load %arg11[%c2_122, %c0_123, %c0_124] : memref<4x1x128xf32, #tpu.memory_space<vmem>>, vector<1x1x128xf32>
    %219 = vector.shape_cast %218 : vector<1x1x128xf32> to vector<1x128xf32>
    %cst_125 = arith.constant dense<0.000000e+00> : vector<16xf32>
    %220 = vector.multi_reduction <add>, %215, %cst_125 [1] : vector<16x128xf32> to vector<16xf32>
    %221 = vector.shape_cast %220 : vector<16xf32> to vector<16x1xf32>
    %cst_126 = arith.constant 1.280000e+02 : f32
    %222 = vector.broadcast %cst_126 : f32 to vector<16x1xf32>
    %223 = arith.divf %221, %222 : vector<16x1xf32>
    %224 = arith.mulf %215, %215 : vector<16x128xf32>
    %cst_127 = arith.constant dense<0.000000e+00> : vector<16xf32>
    %225 = vector.multi_reduction <add>, %224, %cst_127 [1] : vector<16x128xf32> to vector<16xf32>
    %226 = vector.shape_cast %225 : vector<16xf32> to vector<16x1xf32>
    %cst_128 = arith.constant 1.280000e+02 : f32
    %227 = vector.broadcast %cst_128 : f32 to vector<16x1xf32>
    %228 = arith.divf %226, %227 : vector<16x1xf32>
    %229 = arith.mulf %223, %223 : vector<16x1xf32>
    %230 = arith.subf %228, %229 : vector<16x1xf32>
    %cst_129 = arith.constant 9.99999974E-6 : f32
    %231 = vector.broadcast %cst_129 : f32 to vector<16x1xf32>
    %232 = arith.addf %230, %231 : vector<16x1xf32>
    %233 = math.rsqrt %232 : vector<16x1xf32>
    %234 = vector.broadcast %223 : vector<16x1xf32> to vector<16x128xf32>
    %235 = arith.subf %215, %234 : vector<16x128xf32>
    %236 = vector.broadcast %233 : vector<16x1xf32> to vector<16x128xf32>
    %237 = arith.mulf %235, %236 : vector<16x128xf32>
    %238 = vector.broadcast %217 : vector<1x128xf32> to vector<16x128xf32>
    %239 = arith.mulf %237, %238 : vector<16x128xf32>
    %240 = vector.broadcast %219 : vector<1x128xf32> to vector<16x128xf32>
    %241 = arith.addf %239, %240 : vector<16x128xf32>
    %242 = arith.truncf %241 : vector<16x128xf32> to vector<16x128xbf16>
    %c3 = arith.constant 3 : index
    %c0_130 = arith.constant 0 : index
    %c0_131 = arith.constant 0 : index
    %243 = vector.load %arg2[%c3, %c0_130, %c0_131] : memref<4x128x128xbf16, #tpu.memory_space<vmem>>, vector<1x128x128xbf16>
    %244 = vector.shape_cast %243 : vector<1x128x128xbf16> to vector<128x128xbf16>
    %cst_132 = arith.constant dense<0.000000e+00> : vector<16x128xf32>
    %245 = tpu.matmul %242, %244, %cst_132 {dimension_numbers = #tpu.dot_dimension_numbers<[1], [0], [0], [1], [0, 0, 1, 1], [], []>} : vector<16x128xbf16>, vector<128x128xbf16>, vector<16x128xf32> -> vector<16x128xf32>
    %c3_133 = arith.constant 3 : index
    %c0_134 = arith.constant 0 : index
    %c0_135 = arith.constant 0 : index
    %246 = vector.load %arg3[%c3_133, %c0_134, %c0_135] : memref<4x1x128xf32, #tpu.memory_space<vmem>>, vector<1x1x128xf32>
    %247 = vector.shape_cast %246 : vector<1x1x128xf32> to vector<1x128xf32>
    %248 = vector.broadcast %247 : vector<1x128xf32> to vector<16x128xf32>
    %249 = arith.addf %245, %248 : vector<16x128xf32>
    %250 = arith.addf %241, %249 : vector<16x128xf32>
    %c3_136 = arith.constant 3 : index
    %c0_137 = arith.constant 0 : index
    %c0_138 = arith.constant 0 : index
    %251 = vector.load %arg4[%c3_136, %c0_137, %c0_138] : memref<4x1x128xf32, #tpu.memory_space<vmem>>, vector<1x1x128xf32>
    %252 = vector.shape_cast %251 : vector<1x1x128xf32> to vector<1x128xf32>
    %c3_139 = arith.constant 3 : index
    %c0_140 = arith.constant 0 : index
    %c0_141 = arith.constant 0 : index
    %253 = vector.load %arg5[%c3_139, %c0_140, %c0_141] : memref<4x1x128xf32, #tpu.memory_space<vmem>>, vector<1x1x128xf32>
    %254 = vector.shape_cast %253 : vector<1x1x128xf32> to vector<1x128xf32>
    %cst_142 = arith.constant dense<0.000000e+00> : vector<16xf32>
    %255 = vector.multi_reduction <add>, %250, %cst_142 [1] : vector<16x128xf32> to vector<16xf32>
    %256 = vector.shape_cast %255 : vector<16xf32> to vector<16x1xf32>
    %cst_143 = arith.constant 1.280000e+02 : f32
    %257 = vector.broadcast %cst_143 : f32 to vector<16x1xf32>
    %258 = arith.divf %256, %257 : vector<16x1xf32>
    %259 = arith.mulf %250, %250 : vector<16x128xf32>
    %cst_144 = arith.constant dense<0.000000e+00> : vector<16xf32>
    %260 = vector.multi_reduction <add>, %259, %cst_144 [1] : vector<16x128xf32> to vector<16xf32>
    %261 = vector.shape_cast %260 : vector<16xf32> to vector<16x1xf32>
    %cst_145 = arith.constant 1.280000e+02 : f32
    %262 = vector.broadcast %cst_145 : f32 to vector<16x1xf32>
    %263 = arith.divf %261, %262 : vector<16x1xf32>
    %264 = arith.mulf %258, %258 : vector<16x1xf32>
    %265 = arith.subf %263, %264 : vector<16x1xf32>
    %cst_146 = arith.constant 9.99999974E-6 : f32
    %266 = vector.broadcast %cst_146 : f32 to vector<16x1xf32>
    %267 = arith.addf %265, %266 : vector<16x1xf32>
    %268 = math.rsqrt %267 : vector<16x1xf32>
    %269 = vector.broadcast %258 : vector<16x1xf32> to vector<16x128xf32>
    %270 = arith.subf %250, %269 : vector<16x128xf32>
    %271 = vector.broadcast %268 : vector<16x1xf32> to vector<16x128xf32>
    %272 = arith.mulf %270, %271 : vector<16x128xf32>
    %273 = vector.broadcast %252 : vector<1x128xf32> to vector<16x128xf32>
    %274 = arith.mulf %272, %273 : vector<16x128xf32>
    %275 = vector.broadcast %254 : vector<1x128xf32> to vector<16x128xf32>
    %276 = arith.addf %274, %275 : vector<16x128xf32>
    %277 = arith.truncf %276 : vector<16x128xf32> to vector<16x128xbf16>
    %c3_147 = arith.constant 3 : index
    %c0_148 = arith.constant 0 : index
    %c0_149 = arith.constant 0 : index
    %278 = vector.load %arg6[%c3_147, %c0_148, %c0_149] : memref<4x128x512xbf16, #tpu.memory_space<vmem>>, vector<1x128x512xbf16>
    %279 = vector.shape_cast %278 : vector<1x128x512xbf16> to vector<128x512xbf16>
    %cst_150 = arith.constant dense<0.000000e+00> : vector<16x512xf32>
    %280 = tpu.matmul %277, %279, %cst_150 {dimension_numbers = #tpu.dot_dimension_numbers<[1], [0], [0], [1], [0, 0, 1, 1], [], []>} : vector<16x128xbf16>, vector<128x512xbf16>, vector<16x512xf32> -> vector<16x512xf32>
    %c3_151 = arith.constant 3 : index
    %c0_152 = arith.constant 0 : index
    %c0_153 = arith.constant 0 : index
    %281 = vector.load %arg7[%c3_151, %c0_152, %c0_153] : memref<4x1x512xf32, #tpu.memory_space<vmem>>, vector<1x1x512xf32>
    %282 = vector.shape_cast %281 : vector<1x1x512xf32> to vector<1x512xf32>
    %283 = vector.broadcast %282 : vector<1x512xf32> to vector<16x512xf32>
    %284 = arith.addf %280, %283 : vector<16x512xf32>
    %cst_154 = arith.constant 0.000000e+00 : f32
    %285 = vector.broadcast %cst_154 : f32 to vector<16x512xf32>
    %286 = arith.maximumf %284, %285 : vector<16x512xf32>
    %287 = arith.truncf %286 : vector<16x512xf32> to vector<16x512xbf16>
    %c3_155 = arith.constant 3 : index
    %c0_156 = arith.constant 0 : index
    %c0_157 = arith.constant 0 : index
    %288 = vector.load %arg8[%c3_155, %c0_156, %c0_157] : memref<4x512x128xbf16, #tpu.memory_space<vmem>>, vector<1x512x128xbf16>
    %289 = vector.shape_cast %288 : vector<1x512x128xbf16> to vector<512x128xbf16>
    %cst_158 = arith.constant dense<0.000000e+00> : vector<16x128xf32>
    %290 = tpu.matmul %287, %289, %cst_158 {dimension_numbers = #tpu.dot_dimension_numbers<[1], [0], [0], [1], [0, 0, 1, 1], [], []>} : vector<16x512xbf16>, vector<512x128xbf16>, vector<16x128xf32> -> vector<16x128xf32>
    %c3_159 = arith.constant 3 : index
    %c0_160 = arith.constant 0 : index
    %c0_161 = arith.constant 0 : index
    %291 = vector.load %arg9[%c3_159, %c0_160, %c0_161] : memref<4x1x128xf32, #tpu.memory_space<vmem>>, vector<1x1x128xf32>
    %292 = vector.shape_cast %291 : vector<1x1x128xf32> to vector<1x128xf32>
    %293 = vector.broadcast %292 : vector<1x128xf32> to vector<16x128xf32>
    %294 = arith.addf %290, %293 : vector<16x128xf32>
    %295 = arith.addf %276, %294 : vector<16x128xf32>
    %c3_162 = arith.constant 3 : index
    %c0_163 = arith.constant 0 : index
    %c0_164 = arith.constant 0 : index
    %296 = vector.load %arg10[%c3_162, %c0_163, %c0_164] : memref<4x1x128xf32, #tpu.memory_space<vmem>>, vector<1x1x128xf32>
    %297 = vector.shape_cast %296 : vector<1x1x128xf32> to vector<1x128xf32>
    %c3_165 = arith.constant 3 : index
    %c0_166 = arith.constant 0 : index
    %c0_167 = arith.constant 0 : index
    %298 = vector.load %arg11[%c3_165, %c0_166, %c0_167] : memref<4x1x128xf32, #tpu.memory_space<vmem>>, vector<1x1x128xf32>
    %299 = vector.shape_cast %298 : vector<1x1x128xf32> to vector<1x128xf32>
    %cst_168 = arith.constant dense<0.000000e+00> : vector<16xf32>
    %300 = vector.multi_reduction <add>, %295, %cst_168 [1] : vector<16x128xf32> to vector<16xf32>
    %301 = vector.shape_cast %300 : vector<16xf32> to vector<16x1xf32>
    %cst_169 = arith.constant 1.280000e+02 : f32
    %302 = vector.broadcast %cst_169 : f32 to vector<16x1xf32>
    %303 = arith.divf %301, %302 : vector<16x1xf32>
    %304 = arith.mulf %295, %295 : vector<16x128xf32>
    %cst_170 = arith.constant dense<0.000000e+00> : vector<16xf32>
    %305 = vector.multi_reduction <add>, %304, %cst_170 [1] : vector<16x128xf32> to vector<16xf32>
    %306 = vector.shape_cast %305 : vector<16xf32> to vector<16x1xf32>
    %cst_171 = arith.constant 1.280000e+02 : f32
    %307 = vector.broadcast %cst_171 : f32 to vector<16x1xf32>
    %308 = arith.divf %306, %307 : vector<16x1xf32>
    %309 = arith.mulf %303, %303 : vector<16x1xf32>
    %310 = arith.subf %308, %309 : vector<16x1xf32>
    %cst_172 = arith.constant 9.99999974E-6 : f32
    %311 = vector.broadcast %cst_172 : f32 to vector<16x1xf32>
    %312 = arith.addf %310, %311 : vector<16x1xf32>
    %313 = math.rsqrt %312 : vector<16x1xf32>
    %314 = vector.broadcast %303 : vector<16x1xf32> to vector<16x128xf32>
    %315 = arith.subf %295, %314 : vector<16x128xf32>
    %316 = vector.broadcast %313 : vector<16x1xf32> to vector<16x128xf32>
    %317 = arith.mulf %315, %316 : vector<16x128xf32>
    %318 = vector.broadcast %297 : vector<1x128xf32> to vector<16x128xf32>
    %319 = arith.mulf %317, %318 : vector<16x128xf32>
    %320 = vector.broadcast %299 : vector<1x128xf32> to vector<16x128xf32>
    %321 = arith.addf %319, %320 : vector<16x128xf32>
    %322 = arith.truncf %321 : vector<16x128xf32> to vector<16x128xbf16>
    %c0_173 = arith.constant 0 : index
    %c0_174 = arith.constant 0 : index
    %323 = vector.load %arg12[%c0_173, %c0_174] : memref<128x768xbf16, #tpu.memory_space<vmem>>, vector<128x768xbf16>
    %cst_175 = arith.constant dense<0.000000e+00> : vector<16x768xf32>
    %324 = tpu.matmul %322, %323, %cst_175 {dimension_numbers = #tpu.dot_dimension_numbers<[1], [0], [0], [1], [0, 0, 1, 1], [], []>} : vector<16x128xbf16>, vector<128x768xbf16>, vector<16x768xf32> -> vector<16x768xf32>
    %c0_176 = arith.constant 0 : index
    %c0_177 = arith.constant 0 : index
    %325 = vector.load %arg13[%c0_176, %c0_177] : memref<1x768xf32, #tpu.memory_space<vmem>>, vector<1x768xf32>
    %326 = vector.broadcast %325 : vector<1x768xf32> to vector<16x768xf32>
    %327 = arith.addf %324, %326 : vector<16x768xf32>
    %328 = arith.truncf %327 : vector<16x768xf32> to vector<16x768xbf16>
    %c0_178 = arith.constant 0 : index
    %c0_179 = arith.constant 0 : index
    %329 = vector.load %arg14[%c0_178, %c0_179] : memref<16x768xbf16, #tpu.memory_space<vmem>>, vector<16x768xbf16>
    tpu.vector_store %arg14[%c0_178, %c0_179], %328 {strides = array<i32>} : memref<16x768xbf16, #tpu.memory_space<vmem>>, vector<16x768xbf16>,
    return
  }
  func.func @transform_0(%arg0: i32) -> (i32, i32) {
    %c0_i32 = arith.constant 0 : i32
    %c0_i32_0 = arith.constant 0 : i32
    return %arg0, %c0_i32 : i32, i32
  }
  func.func @transform_1(%arg0: i32) -> (i32, i32, i32) {
    %c0_i32 = arith.constant 0 : i32
    %c0_i32_0 = arith.constant 0 : i32
    %c0_i32_1 = arith.constant 0 : i32
    %c0_i32_2 = arith.constant 0 : i32
    return %c0_i32, %c0_i32_0, %c0_i32_1 : i32, i32, i32
  }
  func.func @transform_2(%arg0: i32) -> (i32, i32, i32) {
    %c0_i32 = arith.constant 0 : i32
    %c0_i32_0 = arith.constant 0 : i32
    %c0_i32_1 = arith.constant 0 : i32
    %c0_i32_2 = arith.constant 0 : i32
    return %c0_i32, %c0_i32_0, %c0_i32_1 : i32, i32, i32
  }
  func.func @transform_3(%arg0: i32) -> (i32, i32, i32) {
    %c0_i32 = arith.constant 0 : i32
    %c0_i32_0 = arith.constant 0 : i32
    %c0_i32_1 = arith.constant 0 : i32
    %c0_i32_2 = arith.constant 0 : i32
    return %c0_i32, %c0_i32_0, %c0_i32_1 : i32, i32, i32
  }
  func.func @transform_4(%arg0: i32) -> (i32, i32, i32) {
    %c0_i32 = arith.constant 0 : i32
    %c0_i32_0 = arith.constant 0 : i32
    %c0_i32_1 = arith.constant 0 : i32
    %c0_i32_2 = arith.constant 0 : i32
    return %c0_i32, %c0_i32_0, %c0_i32_1 : i32, i32, i32
  }
  func.func @transform_5(%arg0: i32) -> (i32, i32, i32) {
    %c0_i32 = arith.constant 0 : i32
    %c0_i32_0 = arith.constant 0 : i32
    %c0_i32_1 = arith.constant 0 : i32
    %c0_i32_2 = arith.constant 0 : i32
    return %c0_i32, %c0_i32_0, %c0_i32_1 : i32, i32, i32
  }
  func.func @transform_6(%arg0: i32) -> (i32, i32, i32) {
    %c0_i32 = arith.constant 0 : i32
    %c0_i32_0 = arith.constant 0 : i32
    %c0_i32_1 = arith.constant 0 : i32
    %c0_i32_2 = arith.constant 0 : i32
    return %c0_i32, %c0_i32_0, %c0_i32_1 : i32, i32, i32
  }
  func.func @transform_7(%arg0: i32) -> (i32, i32, i32) {
    %c0_i32 = arith.constant 0 : i32
    %c0_i32_0 = arith.constant 0 : i32
    %c0_i32_1 = arith.constant 0 : i32
    %c0_i32_2 = arith.constant 0 : i32
    return %c0_i32, %c0_i32_0, %c0_i32_1 : i32, i32, i32
  }
  func.func @transform_8(%arg0: i32) -> (i32, i32, i32) {
    %c0_i32 = arith.constant 0 : i32
    %c0_i32_0 = arith.constant 0 : i32
    %c0_i32_1 = arith.constant 0 : i32
    %c0_i32_2 = arith.constant 0 : i32
    return %c0_i32, %c0_i32_0, %c0_i32_1 : i32, i32, i32
  }
  func.func @transform_9(%arg0: i32) -> (i32, i32, i32) {
    %c0_i32 = arith.constant 0 : i32
    %c0_i32_0 = arith.constant 0 : i32
    %c0_i32_1 = arith.constant 0 : i32
    %c0_i32_2 = arith.constant 0 : i32
    return %c0_i32, %c0_i32_0, %c0_i32_1 : i32, i32, i32
  }
  func.func @transform_10(%arg0: i32) -> (i32, i32, i32) {
    %c0_i32 = arith.constant 0 : i32
    %c0_i32_0 = arith.constant 0 : i32
    %c0_i32_1 = arith.constant 0 : i32
    %c0_i32_2 = arith.constant 0 : i32
    return %c0_i32, %c0_i32_0, %c0_i32_1 : i32, i32, i32
  }
  func.func @transform_11(%arg0: i32) -> (i32, i32) {
    %c0_i32 = arith.constant 0 : i32
    %c0_i32_0 = arith.constant 0 : i32
    %c0_i32_1 = arith.constant 0 : i32
    return %c0_i32, %c0_i32_0 : i32, i32
  }
  func.func @transform_12(%arg0: i32) -> (i32, i32) {
    %c0_i32 = arith.constant 0 : i32
    %c0_i32_0 = arith.constant 0 : i32
    %c0_i32_1 = arith.constant 0 : i32
    return %c0_i32, %c0_i32_0 : i32, i32
  }
  func.func @transform_13(%arg0: i32) -> (i32, i32) {
    %c0_i32 = arith.constant 0 : i32
    %c0_i32_0 = arith.constant 0 : i32
    return %arg0, %c0_i32 : i32, i32
  }
}

</mosaic_0001>

<llo_original>
// kernel: tpu_custom_call.1
$region0: #{tpu_custom_call.1}
  #allocation0 [shape = 'u32[]', space=smem, size = 0x4, offset = 0x4, fixed_abs, tag = 'smem constant byte address 0x4 - core index']
  #allocation1 [shape = 'u32[144,128]{1,0:T(1,128)}', space=vmem, size = 0x12000, scoped, tag = 'internal scratch']
  %s0 = inlined_call_operand.hbm [shape: bf16[16,128], index: 0, kind: input, shape index: {}]
  %s1 = inlined_call_operand.hbm [shape: bf16[4,128,128], index: 1, kind: input, shape index: {}]
  %s2 = inlined_call_operand.hbm [shape: f32[4,1,128], index: 2, kind: input, shape index: {}]
  %s3 = inlined_call_operand.vmem [shape: f32[4,1,128], index: 3, kind: input, shape index: {}]
  %s4 = inlined_call_operand.hbm [shape: f32[4,1,128], index: 4, kind: input, shape index: {}]
  %s5 = inlined_call_operand.hbm [shape: bf16[4,128,512], index: 5, kind: input, shape index: {}]
  %s6 = inlined_call_operand.hbm [shape: f32[4,1,512], index: 6, kind: input, shape index: {}]
  %s7 = inlined_call_operand.hbm [shape: bf16[4,512,128], index: 7, kind: input, shape index: {}]
  %s8 = inlined_call_operand.vmem [shape: f32[4,1,128], index: 8, kind: input, shape index: {}]
  %s9 = inlined_call_operand.hbm [shape: f32[4,1,128], index: 9, kind: input, shape index: {}]
  %s10 = inlined_call_operand.vmem [shape: f32[4,1,128], index: 10, kind: input, shape index: {}]
  %s11 = inlined_call_operand.hbm [shape: bf16[128,768], index: 11, kind: input, shape index: {}]
  %s12 = inlined_call_operand.vmem [shape: f32[1,768], index: 12, kind: input, shape index: {}]
  %s13 = inlined_call_operand.hbm [shape: bf16[16,768], index: 13, kind: output, shape index: {}]
  %s14 = sld [smem:[#allocation0]]
  $region98: #{tpu_custom_call.1} parent=0
    _
  %s16 = ssub.s32 1, %s14
  %s17 = scalar_select 0, %s16, %s14
  $region1: #{tpu_custom_call.1} parent=0
    #allocation2 [shape = 'u8[4096]{0}', space=vmem, size = 0x1000, scoped, tag = 'input window, operand 0, single buffered']
    #allocation3 [shape = 's32[1]{0}', space=sflag, size = 0x4, scoped, tag = 'scoped memory for tpu_custom_call.1']
    #allocation4 [shape = 's32[1]{0}', space=sflag, size = 0x4, scoped, tag = 'scoped memory for tpu_custom_call.1']
    #allocation5 [shape = 'u8[131072]{0}', space=vmem, size = 0x20000, scoped, tag = 'input window, operand 1, single buffered']
    #allocation6 [shape = 's32[1]{0}', space=sflag, size = 0x4, scoped, tag = 'scoped memory for tpu_custom_call.1']
    #allocation7 [shape = 'u8[2048]{0}', space=vmem, size = 0x800, scoped, tag = 'input window, operand 2, single buffered']
    #allocation8 [shape = 'u8[2048]{0}', space=vmem, size = 0x800, scoped, tag = 'input window, operand 4, single buffered']
    #allocation9 [shape = 's32[1]{0}', space=sflag, size = 0x4, scoped, tag = 'scoped memory for tpu_custom_call.1']
    #allocation10 [shape = 'u8[524288]{0}', space=vmem, size = 0x80000, scoped, tag = 'input window, operand 5, single buffered']
    #allocation11 [shape = 'u8[8192]{0}', space=vmem, size = 0x2000, scoped, tag = 'input window, operand 6, single buffered']
    #allocation12 [shape = 's32[1]{0}', space=sflag, size = 0x4, scoped, tag = 'scoped memory for tpu_custom_call.1']
    #allocation13 [shape = 'u8[524288]{0}', space=vmem, size = 0x80000, scoped, tag = 'input window, operand 7, single buffered']
    #allocation14 [shape = 'u8[2048]{0}', space=vmem, size = 0x800, scoped, tag = 'input window, operand 9, single buffered']
    #allocation15 [shape = 's32[1]{0}', space=sflag, size = 0x4, scoped, tag = 'scoped memory for tpu_custom_call.1']
    #allocation16 [shape = 'u8[196608]{0}', space=vmem, size = 0x30000, scoped, tag = 'input window, operand 11, single buffered']
    #allocation17 [shape = 'u8[24576]{0}', space=vmem, size = 0x6000, scoped, tag = 'output window, operand 0, single buffered']
    %18 = vsyncpa [#allocation3], 0
    %19 = vsyncpa [#allocation6], 0
    %20 = vsyncpa [#allocation9], 0
    %21 = vsyncpa [#allocation12], 0
    %22 = vsyncpa [#allocation15], 0
    %23 = vsyncpa [#allocation4], 0
    // Predicated region
    $region2: #{tpu_custom_call.1} parent=1 // pred_check
      _
    $region3: #{tpu_custom_call.1} parent=1 // pred_check_branch
      %25 = sbr.rel (0) target = $region5
    $region4: #{tpu_custom_call.1} parent=1 // pred_region
      %s27 = ssub.s32 128, 128
      %28 = vsyncadd [#allocation3], %s27
      %s29 = sshll.u32 [#allocation2], 4
      %s30 = int_to_ptr.vmem [resolvable:$true] %s29
      %35 = dma.hbm_to_vmem [thread:$0]  %s0, 128, %s30, [#allocation3], 64, 64, 4
    $region5: #{tpu_custom_call.1} parent=1 // pred_fallthru
      _
    // Predicated region
    $region6: #{tpu_custom_call.1} parent=1 // pred_check
      _
    $region7: #{tpu_custom_call.1} parent=1 // pred_check_branch
      %37 = sbr.rel (0) target = $region9
    $region8: #{tpu_custom_call.1} parent=1 // pred_region
      %s39 = ssub.s32 4096, 4096
      %40 = vsyncadd [#allocation6], %s39
      %s41 = sshll.u32 [#allocation5], 4
      %s42 = int_to_ptr.vmem [resolvable:$true] %s41
      %47 = dma.hbm_to_vmem [thread:$0]  %s1, 4096, %s42, [#allocation6], 64, 64, 4
    $region9: #{tpu_custom_call.1} parent=1 // pred_fallthru
      _
    // Predicated region
    $region10: #{tpu_custom_call.1} parent=1 // pred_check
      _
    $region11: #{tpu_custom_call.1} parent=1 // pred_check_branch
      %49 = sbr.rel (0) target = $region13
    $region12: #{tpu_custom_call.1} parent=1 // pred_region
      %s51 = ssub.s32 64, 64
      %52 = vsyncadd [#allocation6], %s51
      %s53 = sshll.u32 [#allocation7], 4
      %s54 = int_to_ptr.vmem [resolvable:$true] %s53
      %59 = dma.hbm_to_vmem [thread:$0]  %s2, 64, %s54, [#allocation6], 16, 16, 1
    $region13: #{tpu_custom_call.1} parent=1 // pred_fallthru
      _
    // Predicated region
    $region14: #{tpu_custom_call.1} parent=1 // pred_check
      _
    $region15: #{tpu_custom_call.1} parent=1 // pred_check_branch
      %61 = sbr.rel (0) target = $region17
    $region16: #{tpu_custom_call.1} parent=1 // pred_region
      _
    $region17: #{tpu_custom_call.1} parent=1 // pred_fallthru
      _
    // Predicated region
    $region18: #{tpu_custom_call.1} parent=1 // pred_check
      _
    $region19: #{tpu_custom_call.1} parent=1 // pred_check_branch
      %63 = sbr.rel (0) target = $region21
    $region20: #{tpu_custom_call.1} parent=1 // pred_region
      %s65 = ssub.s32 64, 64
      %66 = vsyncadd [#allocation9], %s65
      %s67 = sshll.u32 [#allocation8], 4
      %s68 = int_to_ptr.vmem [resolvable:$true] %s67
      %73 = dma.hbm_to_vmem [thread:$0]  %s4, 64, %s68, [#allocation9], 16, 16, 1
    $region21: #{tpu_custom_call.1} parent=1 // pred_fallthru
      _
    // Predicated region
    $region22: #{tpu_custom_call.1} parent=1 // pred_check
      _
    $region23: #{tpu_custom_call.1} parent=1 // pred_check_branch
      %75 = sbr.rel (0) target = $region25
    $region24: #{tpu_custom_call.1} parent=1 // pred_region
      %s77 = ssub.s32 16384, 16384
      %78 = vsyncadd [#allocation9], %s77
      %s79 = sshll.u32 [#allocation10], 4
      %s80 = int_to_ptr.vmem [resolvable:$true] %s79
      %85 = dma.hbm_to_vmem [thread:$0]  %s5, 16384, %s80, [#allocation9], 256, 256, 16
    $region25: #{tpu_custom_call.1} parent=1 // pred_fallthru
      _
    // Predicated region
    $region26: #{tpu_custom_call.1} parent=1 // pred_check
      _
    $region27: #{tpu_custom_call.1} parent=1 // pred_check_branch
      %87 = sbr.rel (0) target = $region29
    $region28: #{tpu_custom_call.1} parent=1 // pred_region
      %s89 = ssub.s32 256, 256
      %90 = vsyncadd [#allocation12], %s89
      %s91 = sshll.u32 [#allocation11], 4
      %s92 = int_to_ptr.vmem [resolvable:$true] %s91
      %97 = dma.hbm_to_vmem [thread:$0]  %s6, 256, %s92, [#allocation12], 64, 64, 4
    $region29: #{tpu_custom_call.1} parent=1 // pred_fallthru
      _
    // Predicated region
    $region30: #{tpu_custom_call.1} parent=1 // pred_check
      _
    $region31: #{tpu_custom_call.1} parent=1 // pred_check_branch
      %99 = sbr.rel (0) target = $region33
    $region32: #{tpu_custom_call.1} parent=1 // pred_region
      %s101 = ssub.s32 16384, 16384
      %102 = vsyncadd [#allocation12], %s101
      %s103 = sshll.u32 [#allocation13], 4
      %s104 = int_to_ptr.vmem [resolvable:$true] %s103
      %109 = dma.hbm_to_vmem [thread:$0]  %s7, 16384, %s104, [#allocation12], 64, 64, 4
    $region33: #{tpu_custom_call.1} parent=1 // pred_fallthru
      _
    // Predicated region
    $region34: #{tpu_custom_call.1} parent=1 // pred_check
      _
    $region35: #{tpu_custom_call.1} parent=1 // pred_check_branch
      %111 = sbr.rel (0) target = $region37
    $region36: #{tpu_custom_call.1} parent=1 // pred_region
      _
    $region37: #{tpu_custom_call.1} parent=1 // pred_fallthru
      _
    // Predicated region
    $region38: #{tpu_custom_call.1} parent=1 // pred_check
      _
    $region39: #{tpu_custom_call.1} parent=1 // pred_check_branch
      %113 = sbr.rel (0) target = $region41
    $region40: #{tpu_custom_call.1} parent=1 // pred_region
      %s115 = ssub.s32 64, 64
      %116 = vsyncadd [#allocation15], %s115
      %s117 = sshll.u32 [#allocation14], 4
      %s118 = int_to_ptr.vmem [resolvable:$true] %s117
      %123 = dma.hbm_to_vmem [thread:$0]  %s9, 64, %s118, [#allocation15], 16, 16, 1
    $region41: #{tpu_custom_call.1} parent=1 // pred_fallthru
      _
    // Predicated region
    $region42: #{tpu_custom_call.1} parent=1 // pred_check
      _
    $region43: #{tpu_custom_call.1} parent=1 // pred_check_branch
      %125 = sbr.rel (0) target = $region45
    $region44: #{tpu_custom_call.1} parent=1 // pred_region
      _
    $region45: #{tpu_custom_call.1} parent=1 // pred_fallthru
      _
    // Predicated region
    $region46: #{tpu_custom_call.1} parent=1 // pred_check
      _
    $region47: #{tpu_custom_call.1} parent=1 // pred_check_branch
      %127 = sbr.rel (0) target = $region49
    $region48: #{tpu_custom_call.1} parent=1 // pred_region
      %s129 = ssub.s32 6144, 6144
      %130 = vsyncadd [#allocation15], %s129
      %s131 = sshll.u32 [#allocation16], 4
      %s132 = int_to_ptr.vmem [resolvable:$true] %s131
      %137 = dma.hbm_to_vmem [thread:$0]  %s11, 6144, %s132, [#allocation15], 384, 384, 24
    $region49: #{tpu_custom_call.1} parent=1 // pred_fallthru
      _
    // Predicated region
    $region50: #{tpu_custom_call.1} parent=1 // pred_check
      _
    $region51: #{tpu_custom_call.1} parent=1 // pred_check_branch
      %139 = sbr.rel (0) target = $region53
    $region52: #{tpu_custom_call.1} parent=1 // pred_region
      _
    $region53: #{tpu_custom_call.1} parent=1 // pred_fallthru
      _
    // Predicated region
    $region54: #{tpu_custom_call.1} parent=1 // pred_check
      _
    $region55: #{tpu_custom_call.1} parent=1 // pred_check_branch
      %141 = sbr.rel (0) target = $region57
    $region56: #{tpu_custom_call.1} parent=1 // pred_region
      %142 = dma.done [#allocation3], 128
    $region57: #{tpu_custom_call.1} parent=1 // pred_fallthru
      _
    // Predicated region
    $region58: #{tpu_custom_call.1} parent=1 // pred_check
      _
    $region59: #{tpu_custom_call.1} parent=1 // pred_check_branch
      %144 = sbr.rel (0) target = $region61
    $region60: #{tpu_custom_call.1} parent=1 // pred_region
      %145 = dma.done [#allocation6], 4096
    $region61: #{tpu_custom_call.1} parent=1 // pred_fallthru
      _
    // Predicated region
    $region62: #{tpu_custom_call.1} parent=1 // pred_check
      _
    $region63: #{tpu_custom_call.1} parent=1 // pred_check_branch
      %147 = sbr.rel (0) target = $region65
    $region64: #{tpu_custom_call.1} parent=1 // pred_region
      %148 = dma.done [#allocation6], 64
    $region65: #{tpu_custom_call.1} parent=1 // pred_fallthru
      _
    // Predicated region
    $region66: #{tpu_custom_call.1} parent=1 // pred_check
      _
    $region67: #{tpu_custom_call.1} parent=1 // pred_check_branch
      %150 = sbr.rel (0) target = $region69
    $region68: #{tpu_custom_call.1} parent=1 // pred_region
      %151 = dma.done [#allocation9], 64
    $region69: #{tpu_custom_call.1} parent=1 // pred_fallthru
      _
    // Predicated region
    $region70: #{tpu_custom_call.1} parent=1 // pred_check
      _
    $region71: #{tpu_custom_call.1} parent=1 // pred_check_branch
      %153 = sbr.rel (0) target = $region73
    $region72: #{tpu_custom_call.1} parent=1 // pred_region
      %154 = dma.done [#allocation9], 16384
    $region73: #{tpu_custom_call.1} parent=1 // pred_fallthru
      _
    // Predicated region
    $region74: #{tpu_custom_call.1} parent=1 // pred_check
      _
    $region75: #{tpu_custom_call.1} parent=1 // pred_check_branch
      %156 = sbr.rel (0) target = $region77
    $region76: #{tpu_custom_call.1} parent=1 // pred_region
      %157 = dma.done [#allocation12], 256
    $region77: #{tpu_custom_call.1} parent=1 // pred_fallthru
      _
    // Predicated region
    $region78: #{tpu_custom_call.1} parent=1 // pred_check
      _
    $region79: #{tpu_custom_call.1} parent=1 // pred_check_branch
      %159 = sbr.rel (0) target = $region81
    $region80: #{tpu_custom_call.1} parent=1 // pred_region
      %160 = dma.done [#allocation12], 16384
    $region81: #{tpu_custom_call.1} parent=1 // pred_fallthru
      _
    // Predicated region
    $region82: #{tpu_custom_call.1} parent=1 // pred_check
      _
    $region83: #{tpu_custom_call.1} parent=1 // pred_check_branch
      %162 = sbr.rel (0) target = $region85
    $region84: #{tpu_custom_call.1} parent=1 // pred_region
      %163 = dma.done [#allocation15], 64
    $region85: #{tpu_custom_call.1} parent=1 // pred_fallthru
      _
    // Predicated region
    $region86: #{tpu_custom_call.1} parent=1 // pred_check
      _
    $region87: #{tpu_custom_call.1} parent=1 // pred_check_branch
      %165 = sbr.rel (0) target = $region89
    $region88: #{tpu_custom_call.1} parent=1 // pred_region
      %166 = dma.done [#allocation15], 6144
    $region89: #{tpu_custom_call.1} parent=1 // pred_fallthru
      _
    %v168 = vld [vmem:[#allocation2] sm:$0xf]
    %v169 = vld [vmem:[#allocation2 + $0x4] sm:$0xf]
    %v170 = vunpack.c.l.bf16 %v168
    %v171 = vunpack.c.l.bf16 %v169
    %v172 = vld [vmem:[#allocation5] sm:$0xf]
    %v173 = vld [vmem:[#allocation5 + $0x4] sm:$0xf]
    %v174 = vld [vmem:[#allocation5 + $0x8] sm:$0xf]
    %v175 = vld [vmem:[#allocation5 + $0xc] sm:$0xf]
    %v176 = vld [vmem:[#allocation5 + $0x10] sm:$0xf]
    %v177 = vld [vmem:[#allocation5 + $0x14] sm:$0xf]
    %v178 = vld [vmem:[#allocation5 + $0x18] sm:$0xf]
    %v179 = vld [vmem:[#allocation5 + $0x1c] sm:$0xf]
    %v180 = vld [vmem:[#allocation5 + $0x20] sm:$0xf]
    %v181 = vld [vmem:[#allocation5 + $0x24] sm:$0xf]
    %v182 = vld [vmem:[#allocation5 + $0x28] sm:$0xf]
    %v183 = vld [vmem:[#allocation5 + $0x2c] sm:$0xf]
    %v184 = vld [vmem:[#allocation5 + $0x30] sm:$0xf]
    %v185 = vld [vmem:[#allocation5 + $0x34] sm:$0xf]
    %v186 = vld [vmem:[#allocation5 + $0x38] sm:$0xf]
    %v187 = vld [vmem:[#allocation5 + $0x3c] sm:$0xf]
    %v188 = vld [vmem:[#allocation7] sm:$0x1]
    %v190 = vlaneseq
    %v191 = vshrl.u32 %v190, 7
    %v192 = vsub.s32 0, %v191
    %v193 = vrot.slane %v188, %v192
    %v197 = vunpack.c.l.b16 %v168
    %v198 = vunpack.c.l.b16 %v169
    %v199 = vpack.c.b16 %v198, %v197
    %v217 = vunpack.c.l.b16 %v172
    %v218 = vunpack.c.l.b16 %v173
    %v219 = vunpack.c.l.b16 %v174
    %v220 = vunpack.c.l.b16 %v175
    %v221 = vunpack.c.l.b16 %v176
    %v222 = vunpack.c.l.b16 %v177
    %v223 = vunpack.c.l.b16 %v178
    %v224 = vunpack.c.l.b16 %v179
    %v225 = vunpack.c.l.b16 %v180
    %v226 = vunpack.c.l.b16 %v181
    %v227 = vunpack.c.l.b16 %v182
    %v228 = vunpack.c.l.b16 %v183
    %v229 = vunpack.c.l.b16 %v184
    %v230 = vunpack.c.l.b16 %v185
    %v231 = vunpack.c.l.b16 %v186
    %v232 = vunpack.c.l.b16 %v187
    %v233 = vpack.c.b16 %v218, %v217
    %v234 = vpack.c.b16 %v220, %v219
    %v235 = vpack.c.b16 %v222, %v221
    %v236 = vpack.c.b16 %v224, %v223
    %v237 = vpack.c.b16 %v226, %v225
    %v238 = vpack.c.b16 %v228, %v227
    %v239 = vpack.c.b16 %v230, %v229
    %v240 = vpack.c.b16 %v232, %v231
    %249 = vmatprep.subr.bf16.mxu0 0
    %250 = vmatpush1.bf16.msra.mxu0 %v240
    %251 = vmatprep.subr.bf16.mxu0 0
    %252 = vmatpush1.bf16.msra.mxu0 %v239
    %253 = vmatprep.subr.bf16.mxu0 0
    %254 = vmatpush1.bf16.msra.mxu0 %v238
    %255 = vmatprep.subr.bf16.mxu0 0
    %256 = vmatpush1.bf16.msra.mxu0 %v237
    %257 = vmatprep.subr.bf16.mxu0 0
    %258 = vmatpush1.bf16.msra.mxu0 %v236
    %259 = vmatprep.subr.bf16.mxu0 0
    %260 = vmatpush1.bf16.msra.mxu0 %v235
    %261 = vmatprep.subr.bf16.mxu0 0
    %262 = vmatpush1.bf16.msra.mxu0 %v234
    %263 = vmatprep.subr.bf16.mxu0 0
    %264 = vmatpush1.bf16.msra.mxu0 %v233
    %265 = vmatprep.subr.bf16.mxu0 0
    %266 = vmatpush2.bf16.msra.mxu0 0
    %267 = vmatprep.subr.bf16.mxu0 0
    %268 = vmatpush2.bf16.msra.mxu0 0
    %269 = vmatprep.subr.bf16.mxu0 0
    %270 = vmatpush2.bf16.msra.mxu0 0
    %271 = vmatprep.subr.bf16.mxu0 0
    %272 = vmatpush2.bf16.msra.mxu0 0
    %273 = vmatprep.subr.bf16.mxu0 0
    %274 = vmatpush2.bf16.msra.mxu0 0
    %275 = vmatprep.subr.bf16.mxu0 0
    %276 = vmatpush2.bf16.msra.mxu0 0
    %277 = vmatprep.subr.bf16.mxu0 0
    %278 = vmatpush2.bf16.msra.mxu0 0
    %279 = vmatprep.subr.bf16.mxu0 0
    %280 = vmatpush2.bf16.msra.mxu0 0
    %281 = vmatprep.mubr.bf16.mxu0 0
    %282 = vmatmul.mubr.bf16.gmra.mxu0 %v199
    %v283 = vpop.f32.mrf.mxu0
    %v284 = vadd.f32 %v193, %v283
    %v285 = vpop.f32.mrf.mxu0
    %v286 = vpop.f32.mrf.mxu0
    %v287 = vadd.f32 %v193, %v286
    %v288 = vpop.f32.mrf.mxu0
    %289 = vdwg.mxu0
    %v290 = vadd.f32 %v170, %v284
    %v291 = vadd.f32 %v171, %v287
    %v292 = vld [vmem:[%s3] sm:$0x1]
    %v293 = vld [vmem:[#allocation8] sm:$0x1]
    %294 = vadd.xlane.f32.xlu0 %v290
    %v295 = vpop.xlane.xlu0 %294
    %296 = vadd.xlane.f32.xlu0 %v291
    %v297 = vpop.xlane.xlu0 %296
    %v298 = vrcp.pop 128.0
    %v299 = vmul.f32 %v295, %v298
    %v300 = vmul.f32 %v297, %v298
    %v301 = vmul.f32 %v290, %v290
    %v302 = vmul.f32 %v291, %v291
    %303 = vadd.xlane.f32.xlu0 %v301
    %v304 = vpop.xlane.xlu0 %303
    %305 = vadd.xlane.f32.xlu0 %v302
    %v306 = vpop.xlane.xlu0 %305
    %v307 = vmul.f32 %v304, %v298
    %v308 = vmul.f32 %v306, %v298
    %v309 = vmul.f32 %v299, %v299
    %v310 = vmul.f32 %v300, %v300
    %v311 = vsub.f32 %v307, %v309
    %v312 = vsub.f32 %v308, %v310
    %v313 = vadd.f32 %v311, 1e-05
    %v314 = vadd.f32 %v312, 1e-05
    %v315 = vrsqrt.pop %v313
    %v316 = vrsqrt.pop %v314
    %v317 = vsub.f32 %v290, %v299
    %v318 = vsub.f32 %v291, %v300
    %v319 = vmul.f32 %v317, %v315
    %v320 = vmul.f32 %v318, %v316
    %v322 = vlaneseq
    %v323 = vshrl.u32 %v322, 7
    %v324 = vsub.s32 0, %v323
    %v325 = vrot.slane %v292, %v324
    %v327 = vmul.f32 %v319, %v325
    %v328 = vmul.f32 %v320, %v325
    %v330 = vlaneseq
    %v331 = vshrl.u32 %v330, 7
    %v332 = vsub.s32 0, %v331
    %v333 = vrot.slane %v293, %v332
    %v335 = vadd.f32 %v327, %v333
    %v336 = vadd.f32 %v328, %v333
    %v337 = vpack.c.bf16 %v336, %v335
    %v338 = vld [vmem:[#allocation10] sm:$0xff]
    %v339 = vld [vmem:[#allocation10 + $0x8] sm:$0xff]
    %v340 = vld [vmem:[#allocation10 + $0x10] sm:$0xff]
    %v341 = vld [vmem:[#allocation10 + $0x18] sm:$0xff]
    %v342 = vld [vmem:[#allocation10 + $0x20] sm:$0xff]
    %v343 = vld [vmem:[#allocation10 + $0x28] sm:$0xff]
    %v344 = vld [vmem:[#allocation10 + $0x30] sm:$0xff]
    %v345 = vld [vmem:[#allocation10 + $0x38] sm:$0xff]
    %v346 = vld [vmem:[#allocation10 + $0x40] sm:$0xff]
    %v347 = vld [vmem:[#allocation10 + $0x48] sm:$0xff]
    %v348 = vld [vmem:[#allocation10 + $0x50] sm:$0xff]
    %v349 = vld [vmem:[#allocation10 + $0x58] sm:$0xff]
    %v350 = vld [vmem:[#allocation10 + $0x60] sm:$0xff]
    %v351 = vld [vmem:[#allocation10 + $0x68] sm:$0xff]
    %v352 = vld [vmem:[#allocation10 + $0x70] sm:$0xff]
    %v353 = vld [vmem:[#allocation10 + $0x78] sm:$0xff]
    %v354 = vld [vmem:[#allocation10 + $0x80] sm:$0xff]
    %v355 = vld [vmem:[#allocation10 + $0x88] sm:$0xff]
    %v356 = vld [vmem:[#allocation10 + $0x90] sm:$0xff]
    %v357 = vld [vmem:[#allocation10 + $0x98] sm:$0xff]
    %v358 = vld [vmem:[#allocation10 + $0xa0] sm:$0xff]
    %v359 = vld [vmem:[#allocation10 + $0xa8] sm:$0xff]
    %v360 = vld [vmem:[#allocation10 + $0xb0] sm:$0xff]
    %v361 = vld [vmem:[#allocation10 + $0xb8] sm:$0xff]
    %v362 = vld [vmem:[#allocation10 + $0xc0] sm:$0xff]
    %v363 = vld [vmem:[#allocation10 + $0xc8] sm:$0xff]
    %v364 = vld [vmem:[#allocation10 + $0xd0] sm:$0xff]
    %v365 = vld [vmem:[#allocation10 + $0xd8] sm:$0xff]
    %v366 = vld [vmem:[#allocation10 + $0xe0] sm:$0xff]
    %v367 = vld [vmem:[#allocation10 + $0xe8] sm:$0xff]
    %v368 = vld [vmem:[#allocation10 + $0xf0] sm:$0xff]
    %v369 = vld [vmem:[#allocation10 + $0xf8] sm:$0xff]
    %v370 = vld [vmem:[#allocation11] sm:$0xf]
    %v372 = vlaneseq
    %v373 = vshrl.u32 %v372, 7
    %v374 = vsub.s32 0, %v373
    %v375 = vrot.slane %v370, %v374
    %v376 = vlaneseq
    %v377 = vshrl.u32 %v376, 7
    %v378 = vsub.s32 1, %v377
    %v379 = vrot.slane %v370, %v378
    %v380 = vlaneseq
    %v381 = vshrl.u32 %v380, 7
    %v382 = vsub.s32 2, %v381
    %v383 = vrot.slane %v370, %v382
    %v384 = vlaneseq
    %v385 = vshrl.u32 %v384, 7
    %v386 = vsub.s32 3, %v385
    %v387 = vrot.slane %v370, %v386
    %v424 = vunpack.c.l.b16 %v338
    %v425 = vunpack.c.h.b16 %v338
    %v426 = vunpack.c.l.b16 %v339
    %v427 = vunpack.c.h.b16 %v339
    %v428 = vunpack.c.l.b16 %v340
    %v429 = vunpack.c.h.b16 %v340
    %v430 = vunpack.c.l.b16 %v341
    %v431 = vunpack.c.h.b16 %v341
    %v432 = vunpack.c.l.b16 %v342
    %v433 = vunpack.c.h.b16 %v342
    %v434 = vunpack.c.l.b16 %v343
    %v435 = vunpack.c.h.b16 %v343
    %v436 = vunpack.c.l.b16 %v344
    %v437 = vunpack.c.h.b16 %v344
    %v438 = vunpack.c.l.b16 %v345
    %v439 = vunpack.c.h.b16 %v345
    %v440 = vunpack.c.l.b16 %v346
    %v441 = vunpack.c.h.b16 %v346
    %v442 = vunpack.c.l.b16 %v347
    %v443 = vunpack.c.h.b16 %v347
    %v444 = vunpack.c.l.b16 %v348
    %v445 = vunpack.c.h.b16 %v348
    %v446 = vunpack.c.l.b16 %v349
    %v447 = vunpack.c.h.b16 %v349
    %v448 = vunpack.c.l.b16 %v350
    %v449 = vunpack.c.h.b16 %v350
    %v450 = vunpack.c.l.b16 %v351
    %v451 = vunpack.c.h.b16 %v351
    %v452 = vunpack.c.l.b16 %v352
    %v453 = vunpack.c.h.b16 %v352
    %v454 = vunpack.c.l.b16 %v353
    %v455 = vunpack.c.h.b16 %v353
    %v456 = vunpack.c.l.b16 %v354
    %v457 = vunpack.c.h.b16 %v354
    %v458 = vunpack.c.l.b16 %v355
    %v459 = vunpack.c.h.b16 %v355
    %v460 = vunpack.c.l.b16 %v356
    %v461 = vunpack.c.h.b16 %v356
    %v462 = vunpack.c.l.b16 %v357
    %v463 = vunpack.c.h.b16 %v357
    %v464 = vunpack.c.l.b16 %v358
    %v465 = vunpack.c.h.b16 %v358
    %v466 = vunpack.c.l.b16 %v359
    %v467 = vunpack.c.h.b16 %v359
    %v468 = vunpack.c.l.b16 %v360
    %v469 = vunpack.c.h.b16 %v360
    %v470 = vunpack.c.l.b16 %v361
    %v471 = vunpack.c.h.b16 %v361
    %v472 = vunpack.c.l.b16 %v362
    %v473 = vunpack.c.h.b16 %v362
    %v474 = vunpack.c.l.b16 %v363
    %v475 = vunpack.c.h.b16 %v363
    %v476 = vunpack.c.l.b16 %v364
    %v477 = vunpack.c.h.b16 %v364
    %v478 = vunpack.c.l.b16 %v365
    %v479 = vunpack.c.h.b16 %v365
    %v480 = vunpack.c.l.b16 %v366
    %v481 = vunpack.c.h.b16 %v366
    %v482 = vunpack.c.l.b16 %v367
    %v483 = vunpack.c.h.b16 %v367
    %v484 = vunpack.c.l.b16 %v368
    %v485 = vunpack.c.h.b16 %v368
    %v486 = vunpack.c.l.b16 %v369
    %v487 = vunpack.c.h.b16 %v369
    %v488 = vpack.c.b16 %v428, %v424
    %v489 = vpack.c.b16 %v429, %v425
    %v490 = vpack.c.b16 %v430, %v426
    %v491 = vpack.c.b16 %v431, %v427
    %v492 = vpack.c.b16 %v436, %v432
    %v493 = vpack.c.b16 %v437, %v433
    %v494 = vpack.c.b16 %v438, %v434
    %v495 = vpack.c.b16 %v439, %v435
    %v496 = vpack.c.b16 %v444, %v440
    %v497 = vpack.c.b16 %v445, %v441
    %v498 = vpack.c.b16 %v446, %v442
    %v499 = vpack.c.b16 %v447, %v443
    %v500 = vpack.c.b16 %v452, %v448
    %v501 = vpack.c.b16 %v453, %v449
    %v502 = vpack.c.b16 %v454, %v450
    %v503 = vpack.c.b16 %v455, %v451
    %v504 = vpack.c.b16 %v460, %v456
    %v505 = vpack.c.b16 %v461, %v457
    %v506 = vpack.c.b16 %v462, %v458
    %v507 = vpack.c.b16 %v463, %v459
    %v508 = vpack.c.b16 %v468, %v464
    %v509 = vpack.c.b16 %v469, %v465
    %v510 = vpack.c.b16 %v470, %v466
    %v511 = vpack.c.b16 %v471, %v467
    %v512 = vpack.c.b16 %v476, %v472
    %v513 = vpack.c.b16 %v477, %v473
    %v514 = vpack.c.b16 %v478, %v474
    %v515 = vpack.c.b16 %v479, %v475
    %v516 = vpack.c.b16 %v484, %v480
    %v517 = vpack.c.b16 %v485, %v481
    %v518 = vpack.c.b16 %v486, %v482
    %v519 = vpack.c.b16 %v487, %v483
    %552 = vmatprep.subr.bf16.mxu0 %v517
    %553 = vmatpush1.bf16.msra.mxu0 %v516
    %554 = vmatprep.subr.bf16.mxu0 %v513
    %555 = vmatpush1.bf16.msra.mxu0 %v512
    %556 = vmatprep.subr.bf16.mxu0 %v509
    %557 = vmatpush1.bf16.msra.mxu0 %v508
    %558 = vmatprep.subr.bf16.mxu0 %v505
    %559 = vmatpush1.bf16.msra.mxu0 %v504
    %560 = vmatprep.subr.bf16.mxu0 %v501
    %561 = vmatpush1.bf16.msra.mxu0 %v500
    %562 = vmatprep.subr.bf16.mxu0 %v497
    %563 = vmatpush1.bf16.msra.mxu0 %v496
    %564 = vmatprep.subr.bf16.mxu0 %v493
    %565 = vmatpush1.bf16.msra.mxu0 %v492
    %566 = vmatprep.subr.bf16.mxu0 %v489
    %567 = vmatpush1.bf16.msra.mxu0 %v488
    %568 = vmatprep.subr.bf16.mxu0 0
    %569 = vmatpush2.bf16.msra.mxu0 0
    %570 = vmatprep.subr.bf16.mxu0 0
    %571 = vmatpush2.bf16.msra.mxu0 0
    %572 = vmatprep.subr.bf16.mxu0 0
    %573 = vmatpush2.bf16.msra.mxu0 0
    %574 = vmatprep.subr.bf16.mxu0 0
    %575 = vmatpush2.bf16.msra.mxu0 0
    %576 = vmatprep.subr.bf16.mxu0 0
    %577 = vmatpush2.bf16.msra.mxu0 0
    %578 = vmatprep.subr.bf16.mxu0 0
    %579 = vmatpush2.bf16.msra.mxu0 0
    %580 = vmatprep.subr.bf16.mxu0 0
    %581 = vmatpush2.bf16.msra.mxu0 0
    %582 = vmatprep.subr.bf16.mxu0 0
    %583 = vmatpush2.bf16.msra.mxu0 0
    %584 = vmatprep.mubr.bf16.mxu0 0
    %585 = vmatmul.mubr.bf16.gmra.mxu0 %v337
    %v586 = vpop.f32.mrf.mxu0
    %v587 = vadd.f32 %v375, %v586
    %v588 = vpop.f32.mrf.mxu0
    %v589 = vadd.f32 %v379, %v588
    %v590 = vpop.f32.mrf.mxu0
    %v591 = vadd.f32 %v375, %v590
    %v592 = vpop.f32.mrf.mxu0
    %v593 = vadd.f32 %v379, %v592
    %594 = vdwg.mxu0
    %595 = vmatprep.subr.bf16.mxu0 %v519
    %596 = vmatpush1.bf16.msra.mxu0 %v518
    %597 = vmatprep.subr.bf16.mxu0 %v515
    %598 = vmatpush1.bf16.msra.mxu0 %v514
    %599 = vmatprep.subr.bf16.mxu0 %v511
    %600 = vmatpush1.bf16.msra.mxu0 %v510
    %601 = vmatprep.subr.bf16.mxu0 %v507
    %602 = vmatpush1.bf16.msra.mxu0 %v506
    %603 = vmatprep.subr.bf16.mxu0 %v503
    %604 = vmatpush1.bf16.msra.mxu0 %v502
    %605 = vmatprep.subr.bf16.mxu0 %v499
    %606 = vmatpush1.bf16.msra.mxu0 %v498
    %607 = vmatprep.subr.bf16.mxu0 %v495
    %608 = vmatpush1.bf16.msra.mxu0 %v494
    %609 = vmatprep.subr.bf16.mxu0 %v491
    %610 = vmatpush1.bf16.msra.mxu0 %v490
    %611 = vmatprep.subr.bf16.mxu0 0
    %612 = vmatpush2.bf16.msra.mxu0 0
    %613 = vmatprep.subr.bf16.mxu0 0
    %614 = vmatpush2.bf16.msra.mxu0 0
    %615 = vmatprep.subr.bf16.mxu0 0
    %616 = vmatpush2.bf16.msra.mxu0 0
    %617 = vmatprep.subr.bf16.mxu0 0
    %618 = vmatpush2.bf16.msra.mxu0 0
    %619 = vmatprep.subr.bf16.mxu0 0
    %620 = vmatpush2.bf16.msra.mxu0 0
    %621 = vmatprep.subr.bf16.mxu0 0
    %622 = vmatpush2.bf16.msra.mxu0 0
    %623 = vmatprep.subr.bf16.mxu0 0
    %624 = vmatpush2.bf16.msra.mxu0 0
    %625 = vmatprep.subr.bf16.mxu0 0
    %626 = vmatpush2.bf16.msra.mxu0 0
    %627 = vmatprep.mubr.bf16.mxu0 0
    %628 = vmatmul.mubr.bf16.gmra.mxu0 %v337
    %v629 = vpop.f32.mrf.mxu0
    %v630 = vadd.f32 %v383, %v629
    %v631 = vpop.f32.mrf.mxu0
    %v632 = vadd.f32 %v387, %v631
    %v633 = vpop.f32.mrf.mxu0
    %v634 = vadd.f32 %v383, %v633
    %v635 = vpop.f32.mrf.mxu0
    %v636 = vadd.f32 %v387, %v635
    %637 = vdwg.mxu0
    %v638 = vmax.f32 %v587, 0.0
    %v639 = vmax.f32 %v589, 0.0
    %v640 = vmax.f32 %v630, 0.0
    %v641 = vmax.f32 %v632, 0.0
    %v642 = vmax.f32 %v591, 0.0
    %v643 = vmax.f32 %v593, 0.0
    %v644 = vmax.f32 %v634, 0.0
    %v645 = vmax.f32 %v636, 0.0
    %v646 = vpack.c.bf16 %v642, %v638
    %v647 = vpack.c.bf16 %v643, %v639
    %v648 = vpack.c.bf16 %v644, %v640
    %v649 = vpack.c.bf16 %v645, %v641
    %v650 = vld [vmem:[#allocation13] sm:$0xf]
    %v651 = vld [vmem:[#allocation13 + $0x4] sm:$0xf]
    %v652 = vld [vmem:[#allocation13 + $0x8] sm:$0xf]
    %v653 = vld [vmem:[#allocation13 + $0xc] sm:$0xf]
    %v654 = vld [vmem:[#allocation13 + $0x10] sm:$0xf]
    %v655 = vld [vmem:[#allocation13 + $0x14] sm:$0xf]
    %v656 = vld [vmem:[#allocation13 + $0x18] sm:$0xf]
    %v657 = vld [vmem:[#allocation13 + $0x1c] sm:$0xf]
    %v658 = vld [vmem:[#allocation13 + $0x20] sm:$0xf]
    %v659 = vld [vmem:[#allocation13 + $0x24] sm:$0xf]
    %v660 = vld [vmem:[#allocation13 + $0x28] sm:$0xf]
    %v661 = vld [vmem:[#allocation13 + $0x2c] sm:$0xf]
    %v662 = vld [vmem:[#allocation13 + $0x30] sm:$0xf]
    %v663 = vld [vmem:[#allocation13 + $0x34] sm:$0xf]
    %v664 = vld [vmem:[#allocation13 + $0x38] sm:$0xf]
    %v665 = vld [vmem:[#allocation13 + $0x3c] sm:$0xf]
    %v666 = vld [vmem:[#allocation13 + $0x40] sm:$0xf]
    %v667 = vld [vmem:[#allocation13 + $0x44] sm:$0xf]
    %v668 = vld [vmem:[#allocation13 + $0x48] sm:$0xf]
    %v669 = vld [vmem:[#allocation13 + $0x4c] sm:$0xf]
    %v670 = vld [vmem:[#allocation13 + $0x50] sm:$0xf]
    %v671 = vld [vmem:[#allocation13 + $0x54] sm:$0xf]
    %v672 = vld [vmem:[#allocation13 + $0x58] sm:$0xf]
    %v673 = vld [vmem:[#allocation13 + $0x5c] sm:$0xf]
    %v674 = vld [vmem:[#allocation13 + $0x60] sm:$0xf]
    %v675 = vld [vmem:[#allocation13 + $0x64] sm:$0xf]
    %v676 = vld [vmem:[#allocation13 + $0x68] sm:$0xf]
    %v677 = vld [vmem:[#allocation13 + $0x6c] sm:$0xf]
    %v678 = vld [vmem:[#allocation13 + $0x70] sm:$0xf]
    %v679 = vld [vmem:[#allocation13 + $0x74] sm:$0xf]
    %v680 = vld [vmem:[#allocation13 + $0x78] sm:$0xf]
    %v681 = vld [vmem:[#allocation13 + $0x7c] sm:$0xf]
    %v682 = vld [vmem:[#allocation13 + $0x80] sm:$0xf]
    %v683 = vld [vmem:[#allocation13 + $0x84] sm:$0xf]
    %v684 = vld [vmem:[#allocation13 + $0x88] sm:$0xf]
    %v685 = vld [vmem:[#allocation13 + $0x8c] sm:$0xf]
    %v686 = vld [vmem:[#allocation13 + $0x90] sm:$0xf]
    %v687 = vld [vmem:[#allocation13 + $0x94] sm:$0xf]
    %v688 = vld [vmem:[#allocation13 + $0x98] sm:$0xf]
    %v689 = vld [vmem:[#allocation13 + $0x9c] sm:$0xf]
    %v690 = vld [vmem:[#allocation13 + $0xa0] sm:$0xf]
    %v691 = vld [vmem:[#allocation13 + $0xa4] sm:$0xf]
    %v692 = vld [vmem:[#allocation13 + $0xa8] sm:$0xf]
    %v693 = vld [vmem:[#allocation13 + $0xac] sm:$0xf]
    %v694 = vld [vmem:[#allocation13 + $0xb0] sm:$0xf]
    %v695 = vld [vmem:[#allocation13 + $0xb4] sm:$0xf]
    %v696 = vld [vmem:[#allocation13 + $0xb8] sm:$0xf]
    %v697 = vld [vmem:[#allocation13 + $0xbc] sm:$0xf]
    %v698 = vld [vmem:[#allocation13 + $0xc0] sm:$0xf]
    %v699 = vld [vmem:[#allocation13 + $0xc4] sm:$0xf]
    %v700 = vld [vmem:[#allocation13 + $0xc8] sm:$0xf]
    %v701 = vld [vmem:[#allocation13 + $0xcc] sm:$0xf]
    %v702 = vld [vmem:[#allocation13 + $0xd0] sm:$0xf]
    %v703 = vld [vmem:[#allocation13 + $0xd4] sm:$0xf]
    %v704 = vld [vmem:[#allocation13 + $0xd8] sm:$0xf]
    %v705 = vld [vmem:[#allocation13 + $0xdc] sm:$0xf]
    %v706 = vld [vmem:[#allocation13 + $0xe0] sm:$0xf]
    %v707 = vld [vmem:[#allocation13 + $0xe4] sm:$0xf]
    %v708 = vld [vmem:[#allocation13 + $0xe8] sm:$0xf]
    %v709 = vld [vmem:[#allocation13 + $0xec] sm:$0xf]
    %v710 = vld [vmem:[#allocation13 + $0xf0] sm:$0xf]
    %v711 = vld [vmem:[#allocation13 + $0xf4] sm:$0xf]
    %v712 = vld [vmem:[#allocation13 + $0xf8] sm:$0xf]
    %v713 = vld [vmem:[#allocation13 + $0xfc] sm:$0xf]
    %v714 = vld [vmem:[%s8] sm:$0x1]
    %v716 = vlaneseq
    %v717 = vshrl.u32 %v716, 7
    %v718 = vsub.s32 0, %v717
    %v719 = vrot.slane %v714, %v718
    %v785 = vunpack.c.l.b16 %v650
    %v786 = vunpack.c.l.b16 %v651
    %v787 = vunpack.c.l.b16 %v652
    %v788 = vunpack.c.l.b16 %v653
    %v789 = vunpack.c.l.b16 %v654
    %v790 = vunpack.c.l.b16 %v655
    %v791 = vunpack.c.l.b16 %v656
    %v792 = vunpack.c.l.b16 %v657
    %v793 = vunpack.c.l.b16 %v658
    %v794 = vunpack.c.l.b16 %v659
    %v795 = vunpack.c.l.b16 %v660
    %v796 = vunpack.c.l.b16 %v661
    %v797 = vunpack.c.l.b16 %v662
    %v798 = vunpack.c.l.b16 %v663
    %v799 = vunpack.c.l.b16 %v664
    %v800 = vunpack.c.l.b16 %v665
    %v801 = vunpack.c.l.b16 %v666
    %v802 = vunpack.c.l.b16 %v667
    %v803 = vunpack.c.l.b16 %v668
    %v804 = vunpack.c.l.b16 %v669
    %v805 = vunpack.c.l.b16 %v670
    %v806 = vunpack.c.l.b16 %v671
    %v807 = vunpack.c.l.b16 %v672
    %v808 = vunpack.c.l.b16 %v673
    %v809 = vunpack.c.l.b16 %v674
    %v810 = vunpack.c.l.b16 %v675
    %v811 = vunpack.c.l.b16 %v676
    %v812 = vunpack.c.l.b16 %v677
    %v813 = vunpack.c.l.b16 %v678
    %v814 = vunpack.c.l.b16 %v679
    %v815 = vunpack.c.l.b16 %v680
    %v816 = vunpack.c.l.b16 %v681
    %v817 = vunpack.c.l.b16 %v682
    %v818 = vunpack.c.l.b16 %v683
    %v819 = vunpack.c.l.b16 %v684
    %v820 = vunpack.c.l.b16 %v685
    %v821 = vunpack.c.l.b16 %v686
    %v822 = vunpack.c.l.b16 %v687
    %v823 = vunpack.c.l.b16 %v688
    %v824 = vunpack.c.l.b16 %v689
    %v825 = vunpack.c.l.b16 %v690
    %v826 = vunpack.c.l.b16 %v691
    %v827 = vunpack.c.l.b16 %v692
    %v828 = vunpack.c.l.b16 %v693
    %v829 = vunpack.c.l.b16 %v694
    %v830 = vunpack.c.l.b16 %v695
    %v831 = vunpack.c.l.b16 %v696
    %v832 = vunpack.c.l.b16 %v697
    %v833 = vunpack.c.l.b16 %v698
    %v834 = vunpack.c.l.b16 %v699
    %v835 = vunpack.c.l.b16 %v700
    %v836 = vunpack.c.l.b16 %v701
    %v837 = vunpack.c.l.b16 %v702
    %v838 = vunpack.c.l.b16 %v703
    %v839 = vunpack.c.l.b16 %v704
    %v840 = vunpack.c.l.b16 %v705
    %v841 = vunpack.c.l.b16 %v706
    %v842 = vunpack.c.l.b16 %v707
    %v843 = vunpack.c.l.b16 %v708
    %v844 = vunpack.c.l.b16 %v709
    %v845 = vunpack.c.l.b16 %v710
    %v846 = vunpack.c.l.b16 %v711
    %v847 = vunpack.c.l.b16 %v712
    %v848 = vunpack.c.l.b16 %v713
    %v849 = vpack.c.b16 %v786, %v785
    %v850 = vpack.c.b16 %v788, %v787
    %v851 = vpack.c.b16 %v790, %v789
    %v852 = vpack.c.b16 %v792, %v791
    %v853 = vpack.c.b16 %v794, %v793
    %v854 = vpack.c.b16 %v796, %v795
    %v855 = vpack.c.b16 %v798, %v797
    %v856 = vpack.c.b16 %v800, %v799
    %v857 = vpack.c.b16 %v802, %v801
    %v858 = vpack.c.b16 %v804, %v803
    %v859 = vpack.c.b16 %v806, %v805
    %v860 = vpack.c.b16 %v808, %v807
    %v861 = vpack.c.b16 %v810, %v809
    %v862 = vpack.c.b16 %v812, %v811
    %v863 = vpack.c.b16 %v814, %v813
    %v864 = vpack.c.b16 %v816, %v815
    %v865 = vpack.c.b16 %v818, %v817
    %v866 = vpack.c.b16 %v820, %v819
    %v867 = vpack.c.b16 %v822, %v821
    %v868 = vpack.c.b16 %v824, %v823
    %v869 = vpack.c.b16 %v826, %v825
    %v870 = vpack.c.b16 %v828, %v827
    %v871 = vpack.c.b16 %v830, %v829
    %v872 = vpack.c.b16 %v832, %v831
    %v873 = vpack.c.b16 %v834, %v833
    %v874 = vpack.c.b16 %v836, %v835
    %v875 = vpack.c.b16 %v838, %v837
    %v876 = vpack.c.b16 %v840, %v839
    %v877 = vpack.c.b16 %v842, %v841
    %v878 = vpack.c.b16 %v844, %v843
    %v879 = vpack.c.b16 %v846, %v845
    %v880 = vpack.c.b16 %v848, %v847
    %913 = vmatprep.subr.bf16.mxu0 0
    %914 = vmatpush1.bf16.msra.mxu0 %v856
    %915 = vmatprep.subr.bf16.mxu0 0
    %916 = vmatpush1.bf16.msra.mxu0 %v855
    %917 = vmatprep.subr.bf16.mxu0 0
    %918 = vmatpush1.bf16.msra.mxu0 %v854
    %919 = vmatprep.subr.bf16.mxu0 0
    %920 = vmatpush1.bf16.msra.mxu0 %v853
    %921 = vmatprep.subr.bf16.mxu0 0
    %922 = vmatpush1.bf16.msra.mxu0 %v852
    %923 = vmatprep.subr.bf16.mxu0 0
    %924 = vmatpush1.bf16.msra.mxu0 %v851
    %925 = vmatprep.subr.bf16.mxu0 0
    %926 = vmatpush1.bf16.msra.mxu0 %v850
    %927 = vmatprep.subr.bf16.mxu0 0
    %928 = vmatpush1.bf16.msra.mxu0 %v849
    %929 = vmatprep.subr.bf16.mxu0 0
    %930 = vmatpush2.bf16.msra.mxu0 %v864
    %931 = vmatprep.subr.bf16.mxu0 0
    %932 = vmatpush2.bf16.msra.mxu0 %v863
    %933 = vmatprep.subr.bf16.mxu0 0
    %934 = vmatpush2.bf16.msra.mxu0 %v862
    %935 = vmatprep.subr.bf16.mxu0 0
    %936 = vmatpush2.bf16.msra.mxu0 %v861
    %937 = vmatprep.subr.bf16.mxu0 0
    %938 = vmatpush2.bf16.msra.mxu0 %v860
    %939 = vmatprep.subr.bf16.mxu0 0
    %940 = vmatpush2.bf16.msra.mxu0 %v859
    %941 = vmatprep.subr.bf16.mxu0 0
    %942 = vmatpush2.bf16.msra.mxu0 %v858
    %943 = vmatprep.subr.bf16.mxu0 0
    %944 = vmatpush2.bf16.msra.mxu0 %v857
    %945 = vmatprep.mubr.bf16.mxu0 %v647
    %946 = vmatmul.mubr.bf16.gmra.mxu0 %v646
    %v947 = vpop.f32.mrf.mxu0
    %v948 = vadd.f32 %v719, %v947
    %v949 = vpop.f32.mrf.mxu0
    %v950 = vpop.f32.mrf.mxu0
    %v951 = vadd.f32 %v719, %v950
    %v952 = vpop.f32.mrf.mxu0
    %953 = vdwg.mxu0
    %954 = vmatprep.subr.bf16.mxu0 0
    %955 = vmatpush1.bf16.msra.mxu0 %v872
    %956 = vmatprep.subr.bf16.mxu0 0
    %957 = vmatpush1.bf16.msra.mxu0 %v871
    %958 = vmatprep.subr.bf16.mxu0 0
    %959 = vmatpush1.bf16.msra.mxu0 %v870
    %960 = vmatprep.subr.bf16.mxu0 0
    %961 = vmatpush1.bf16.msra.mxu0 %v869
    %962 = vmatprep.subr.bf16.mxu0 0
    %963 = vmatpush1.bf16.msra.mxu0 %v868
    %964 = vmatprep.subr.bf16.mxu0 0
    %965 = vmatpush1.bf16.msra.mxu0 %v867
    %966 = vmatprep.subr.bf16.mxu0 0
    %967 = vmatpush1.bf16.msra.mxu0 %v866
    %968 = vmatprep.subr.bf16.mxu0 0
    %969 = vmatpush1.bf16.msra.mxu0 %v865
    %970 = vmatprep.subr.bf16.mxu0 0
    %971 = vmatpush2.bf16.msra.mxu0 %v880
    %972 = vmatprep.subr.bf16.mxu0 0
    %973 = vmatpush2.bf16.msra.mxu0 %v879
    %974 = vmatprep.subr.bf16.mxu0 0
    %975 = vmatpush2.bf16.msra.mxu0 %v878
    %976 = vmatprep.subr.bf16.mxu0 0
    %977 = vmatpush2.bf16.msra.mxu0 %v877
    %978 = vmatprep.subr.bf16.mxu0 0
    %979 = vmatpush2.bf16.msra.mxu0 %v876
    %980 = vmatprep.subr.bf16.mxu0 0
    %981 = vmatpush2.bf16.msra.mxu0 %v875
    %982 = vmatprep.subr.bf16.mxu0 0
    %983 = vmatpush2.bf16.msra.mxu0 %v874
    %984 = vmatprep.subr.bf16.mxu0 0
    %985 = vmatpush2.bf16.msra.mxu0 %v873
    %986 = vmatprep.mubr.bf16.mxu0 %v649
    %987 = vmatmul.mubr.bf16.gmra.mxu0 %v648
    %v988 = vpop.f32.mrf.mxu0
    %v989 = vadd.f32 %v948, %v988
    %v990 = vpop.f32.mrf.mxu0
    %v991 = vpop.f32.mrf.mxu0
    %v992 = vadd.f32 %v951, %v991
    %v993 = vpop.f32.mrf.mxu0
    %994 = vdwg.mxu0
    %v995 = vadd.f32 %v335, %v989
    %v996 = vadd.f32 %v336, %v992
    %v997 = vld [vmem:[#allocation14] sm:$0x1]
    %v998 = vld [vmem:[%s10] sm:$0x1]
    %999 = vadd.xlane.f32.xlu0 %v995
    %v1000 = vpop.xlane.xlu0 %999
    %1001 = vadd.xlane.f32.xlu0 %v996
    %v1002 = vpop.xlane.xlu0 %1001
    %v1003 = vmul.f32 %v1000, %v298
    %v1004 = vmul.f32 %v1002, %v298
    %v1005 = vmul.f32 %v995, %v995
    %v1006 = vmul.f32 %v996, %v996
    %1007 = vadd.xlane.f32.xlu0 %v1005
    %v1008 = vpop.xlane.xlu0 %1007
    %1009 = vadd.xlane.f32.xlu0 %v1006
    %v1010 = vpop.xlane.xlu0 %1009
    %v1011 = vmul.f32 %v1008, %v298
    %v1012 = vmul.f32 %v1010, %v298
    %v1013 = vmul.f32 %v1003, %v1003
    %v1014 = vmul.f32 %v1004, %v1004
    %v1015 = vsub.f32 %v1011, %v1013
    %v1016 = vsub.f32 %v1012, %v1014
    %v1017 = vadd.f32 %v1015, 1e-05
    %v1018 = vadd.f32 %v1016, 1e-05
    %v1019 = vrsqrt.pop %v1017
    %v1020 = vrsqrt.pop %v1018
    %v1021 = vsub.f32 %v995, %v1003
    %v1022 = vsub.f32 %v996, %v1004
    %v1023 = vmul.f32 %v1021, %v1019
    %v1024 = vmul.f32 %v1022, %v1020
    %v1026 = vlaneseq
    %v1027 = vshrl.u32 %v1026, 7
    %v1028 = vsub.s32 0, %v1027
    %v1029 = vrot.slane %v997, %v1028
    %v1031 = vmul.f32 %v1023, %v1029
    %v1032 = vmul.f32 %v1024, %v1029
    %v1034 = vlaneseq
    %v1035 = vshrl.u32 %v1034, 7
    %v1036 = vsub.s32 0, %v1035
    %v1037 = vrot.slane %v998, %v1036
    %v1039 = vadd.f32 %v1031, %v1037
    %v1040 = vadd.f32 %v1032, %v1037
    %v1041 = vpack.c.bf16 %v1040, %v1039
    %s1042 = scalar_lea.vmem [#allocation5], 64
    %v1043 = vld [vmem:[%s1042] sm:$0xf]
    %v1044 = vld [vmem:[%s1042 + $0x4] sm:$0xf]
    %v1045 = vld [vmem:[%s1042 + $0x8] sm:$0xf]
    %v1046 = vld [vmem:[%s1042 + $0xc] sm:$0xf]
    %v1047 = vld [vmem:[%s1042 + $0x10] sm:$0xf]
    %v1048 = vld [vmem:[%s1042 + $0x14] sm:$0xf]
    %v1049 = vld [vmem:[%s1042 + $0x18] sm:$0xf]
    %v1050 = vld [vmem:[%s1042 + $0x1c] sm:$0xf]
    %v1051 = vld [vmem:[%s1042 + $0x20] sm:$0xf]
    %v1052 = vld [vmem:[%s1042 + $0x24] sm:$0xf]
    %v1053 = vld [vmem:[%s1042 + $0x28] sm:$0xf]
    %v1054 = vld [vmem:[%s1042 + $0x2c] sm:$0xf]
    %v1055 = vld [vmem:[%s1042 + $0x30] sm:$0xf]
    %v1056 = vld [vmem:[%s1042 + $0x34] sm:$0xf]
    %v1057 = vld [vmem:[%s1042 + $0x38] sm:$0xf]
    %v1058 = vld [vmem:[%s1042 + $0x3c] sm:$0xf]
    %s1059 = scalar_lea.vmem [#allocation7], 1
    %v1060 = vld [vmem:[%s1059] sm:$0x1]
    %v1062 = vlaneseq
    %v1063 = vshrl.u32 %v1062, 7
    %v1064 = vsub.s32 0, %v1063
    %v1065 = vrot.slane %v1060, %v1064
    %v1083 = vunpack.c.l.b16 %v1043
    %v1084 = vunpack.c.l.b16 %v1044
    %v1085 = vunpack.c.l.b16 %v1045
    %v1086 = vunpack.c.l.b16 %v1046
    %v1087 = vunpack.c.l.b16 %v1047
    %v1088 = vunpack.c.l.b16 %v1048
    %v1089 = vunpack.c.l.b16 %v1049
    %v1090 = vunpack.c.l.b16 %v1050
    %v1091 = vunpack.c.l.b16 %v1051
    %v1092 = vunpack.c.l.b16 %v1052
    %v1093 = vunpack.c.l.b16 %v1053
    %v1094 = vunpack.c.l.b16 %v1054
    %v1095 = vunpack.c.l.b16 %v1055
    %v1096 = vunpack.c.l.b16 %v1056
    %v1097 = vunpack.c.l.b16 %v1057
    %v1098 = vunpack.c.l.b16 %v1058
    %v1099 = vpack.c.b16 %v1084, %v1083
    %v1100 = vpack.c.b16 %v1086, %v1085
    %v1101 = vpack.c.b16 %v1088, %v1087
    %v1102 = vpack.c.b16 %v1090, %v1089
    %v1103 = vpack.c.b16 %v1092, %v1091
    %v1104 = vpack.c.b16 %v1094, %v1093
    %v1105 = vpack.c.b16 %v1096, %v1095
    %v1106 = vpack.c.b16 %v1098, %v1097
    %1115 = vmatprep.subr.bf16.mxu0 0
    %1116 = vmatpush1.bf16.msra.mxu0 %v1106
    %1117 = vmatprep.subr.bf16.mxu0 0
    %1118 = vmatpush1.bf16.msra.mxu0 %v1105
    %1119 = vmatprep.subr.bf16.mxu0 0
    %1120 = vmatpush1.bf16.msra.mxu0 %v1104
    %1121 = vmatprep.subr.bf16.mxu0 0
    %1122 = vmatpush1.bf16.msra.mxu0 %v1103
    %1123 = vmatprep.subr.bf16.mxu0 0
    %1124 = vmatpush1.bf16.msra.mxu0 %v1102
    %1125 = vmatprep.subr.bf16.mxu0 0
    %1126 = vmatpush1.bf16.msra.mxu0 %v1101
    %1127 = vmatprep.subr.bf16.mxu0 0
    %1128 = vmatpush1.bf16.msra.mxu0 %v1100
    %1129 = vmatprep.subr.bf16.mxu0 0
    %1130 = vmatpush1.bf16.msra.mxu0 %v1099
    %1131 = vmatprep.subr.bf16.mxu0 0
    %1132 = vmatpush2.bf16.msra.mxu0 0
    %1133 = vmatprep.subr.bf16.mxu0 0
    %1134 = vmatpush2.bf16.msra.mxu0 0
    %1135 = vmatprep.subr.bf16.mxu0 0
    %1136 = vmatpush2.bf16.msra.mxu0 0
    %1137 = vmatprep.subr.bf16.mxu0 0
    %1138 = vmatpush2.bf16.msra.mxu0 0
    %1139 = vmatprep.subr.bf16.mxu0 0
    %1140 = vmatpush2.bf16.msra.mxu0 0
    %1141 = vmatprep.subr.bf16.mxu0 0
    %1142 = vmatpush2.bf16.msra.mxu0 0
    %1143 = vmatprep.subr.bf16.mxu0 0
    %1144 = vmatpush2.bf16.msra.mxu0 0
    %1145 = vmatprep.subr.bf16.mxu0 0
    %1146 = vmatpush2.bf16.msra.mxu0 0
    %1147 = vmatprep.mubr.bf16.mxu0 0
    %1148 = vmatmul.mubr.bf16.gmra.mxu0 %v1041
    %v1149 = vpop.f32.mrf.mxu0
    %v1150 = vadd.f32 %v1065, %v1149
    %v1151 = vpop.f32.mrf.mxu0
    %v1152 = vpop.f32.mrf.mxu0
    %v1153 = vadd.f32 %v1065, %v1152
    %v1154 = vpop.f32.mrf.mxu0
    %1155 = vdwg.mxu0
    %v1156 = vadd.f32 %v1039, %v1150
    %v1157 = vadd.f32 %v1040, %v1153
    %s1158 = scalar_lea.vmem %s3, 1
    %v1159 = vld [vmem:[%s1158] sm:$0x1]
    %s1160 = scalar_lea.vmem [#allocation8], 1
    %v1161 = vld [vmem:[%s1160] sm:$0x1]
    %1162 = vadd.xlane.f32.xlu0 %v1156
    %v1163 = vpop.xlane.xlu0 %1162
    %1164 = vadd.xlane.f32.xlu0 %v1157
    %v1165 = vpop.xlane.xlu0 %1164
    %v1166 = vmul.f32 %v1163, %v298
    %v1167 = vmul.f32 %v1165, %v298
    %v1168 = vmul.f32 %v1156, %v1156
    %v1169 = vmul.f32 %v1157, %v1157
    %1170 = vadd.xlane.f32.xlu0 %v1168
    %v1171 = vpop.xlane.xlu0 %1170
    %1172 = vadd.xlane.f32.xlu0 %v1169
    %v1173 = vpop.xlane.xlu0 %1172
    %v1174 = vmul.f32 %v1171, %v298
    %v1175 = vmul.f32 %v1173, %v298
    %v1176 = vmul.f32 %v1166, %v1166
    %v1177 = vmul.f32 %v1167, %v1167
    %v1178 = vsub.f32 %v1174, %v1176
    %v1179 = vsub.f32 %v1175, %v1177
    %v1180 = vadd.f32 %v1178, 1e-05
    %v1181 = vadd.f32 %v1179, 1e-05
    %v1182 = vrsqrt.pop %v1180
    %v1183 = vrsqrt.pop %v1181
    %v1184 = vsub.f32 %v1156, %v1166
    %v1185 = vsub.f32 %v1157, %v1167
    %v1186 = vmul.f32 %v1184, %v1182
    %v1187 = vmul.f32 %v1185, %v1183
    %v1189 = vlaneseq
    %v1190 = vshrl.u32 %v1189, 7
    %v1191 = vsub.s32 0, %v1190
    %v1192 = vrot.slane %v1159, %v1191
    %v1194 = vmul.f32 %v1186, %v1192
    %v1195 = vmul.f32 %v1187, %v1192
    %v1197 = vlaneseq
    %v1198 = vshrl.u32 %v1197, 7
    %v1199 = vsub.s32 0, %v1198
    %v1200 = vrot.slane %v1161, %v1199
    %v1202 = vadd.f32 %v1194, %v1200
    %v1203 = vadd.f32 %v1195, %v1200
    %v1204 = vpack.c.bf16 %v1203, %v1202
    %s1205 = scalar_lea.vmem [#allocation10], 256
    %v1206 = vld [vmem:[%s1205] sm:$0xff]
    %v1207 = vld [vmem:[%s1205 + $0x8] sm:$0xff]
    %v1208 = vld [vmem:[%s1205 + $0x10] sm:$0xff]
    %v1209 = vld [vmem:[%s1205 + $0x18] sm:$0xff]
    %v1210 = vld [vmem:[%s1205 + $0x20] sm:$0xff]
    %v1211 = vld [vmem:[%s1205 + $0x28] sm:$0xff]
    %v1212 = vld [vmem:[%s1205 + $0x30] sm:$0xff]
    %v1213 = vld [vmem:[%s1205 + $0x38] sm:$0xff]
    %v1214 = vld [vmem:[%s1205 + $0x40] sm:$0xff]
    %v1215 = vld [vmem:[%s1205 + $0x48] sm:$0xff]
    %v1216 = vld [vmem:[%s1205 + $0x50] sm:$0xff]
    %v1217 = vld [vmem:[%s1205 + $0x58] sm:$0xff]
    %v1218 = vld [vmem:[%s1205 + $0x60] sm:$0xff]
    %v1219 = vld [vmem:[%s1205 + $0x68] sm:$0xff]
    %v1220 = vld [vmem:[%s1205 + $0x70] sm:$0xff]
    %v1221 = vld [vmem:[%s1205 + $0x78] sm:$0xff]
    %v1222 = vld [vmem:[%s1205 + $0x80] sm:$0xff]
    %v1223 = vld [vmem:[%s1205 + $0x88] sm:$0xff]
    %v1224 = vld [vmem:[%s1205 + $0x90] sm:$0xff]
    %v1225 = vld [vmem:[%s1205 + $0x98] sm:$0xff]
    %v1226 = vld [vmem:[%s1205 + $0xa0] sm:$0xff]
    %v1227 = vld [vmem:[%s1205 + $0xa8] sm:$0xff]
    %v1228 = vld [vmem:[%s1205 + $0xb0] sm:$0xff]
    %v1229 = vld [vmem:[%s1205 + $0xb8] sm:$0xff]
    %v1230 = vld [vmem:[%s1205 + $0xc0] sm:$0xff]
    %v1231 = vld [vmem:[%s1205 + $0xc8] sm:$0xff]
    %v1232 = vld [vmem:[%s1205 + $0xd0] sm:$0xff]
    %v1233 = vld [vmem:[%s1205 + $0xd8] sm:$0xff]
    %v1234 = vld [vmem:[%s1205 + $0xe0] sm:$0xff]
    %v1235 = vld [vmem:[%s1205 + $0xe8] sm:$0xff]
    %v1236 = vld [vmem:[%s1205 + $0xf0] sm:$0xff]
    %v1237 = vld [vmem:[%s1205 + $0xf8] sm:$0xff]
    %s1238 = scalar_lea.vmem [#allocation11], 4
    %v1239 = vld [vmem:[%s1238] sm:$0xf]
    %v1241 = vlaneseq
    %v1242 = vshrl.u32 %v1241, 7
    %v1243 = vsub.s32 0, %v1242
    %v1244 = vrot.slane %v1239, %v1243
    %v1245 = vlaneseq
    %v1246 = vshrl.u32 %v1245, 7
    %v1247 = vsub.s32 1, %v1246
    %v1248 = vrot.slane %v1239, %v1247
    %v1249 = vlaneseq
    %v1250 = vshrl.u32 %v1249, 7
    %v1251 = vsub.s32 2, %v1250
    %v1252 = vrot.slane %v1239, %v1251
    %v1253 = vlaneseq
    %v1254 = vshrl.u32 %v1253, 7
    %v1255 = vsub.s32 3, %v1254
    %v1256 = vrot.slane %v1239, %v1255
    %v1293 = vunpack.c.l.b16 %v1206
    %v1294 = vunpack.c.h.b16 %v1206
    %v1295 = vunpack.c.l.b16 %v1207
    %v1296 = vunpack.c.h.b16 %v1207
    %v1297 = vunpack.c.l.b16 %v1208
    %v1298 = vunpack.c.h.b16 %v1208
    %v1299 = vunpack.c.l.b16 %v1209
    %v1300 = vunpack.c.h.b16 %v1209
    %v1301 = vunpack.c.l.b16 %v1210
    %v1302 = vunpack.c.h.b16 %v1210
    %v1303 = vunpack.c.l.b16 %v1211
    %v1304 = vunpack.c.h.b16 %v1211
    %v1305 = vunpack.c.l.b16 %v1212
    %v1306 = vunpack.c.h.b16 %v1212
    %v1307 = vunpack.c.l.b16 %v1213
    %v1308 = vunpack.c.h.b16 %v1213
    %v1309 = vunpack.c.l.b16 %v1214
    %v1310 = vunpack.c.h.b16 %v1214
    %v1311 = vunpack.c.l.b16 %v1215
    %v1312 = vunpack.c.h.b16 %v1215
    %v1313 = vunpack.c.l.b16 %v1216
    %v1314 = vunpack.c.h.b16 %v1216
    %v1315 = vunpack.c.l.b16 %v1217
    %v1316 = vunpack.c.h.b16 %v1217
    %v1317 = vunpack.c.l.b16 %v1218
    %v1318 = vunpack.c.h.b16 %v1218
    %v1319 = vunpack.c.l.b16 %v1219
    %v1320 = vunpack.c.h.b16 %v1219
    %v1321 = vunpack.c.l.b16 %v1220
    %v1322 = vunpack.c.h.b16 %v1220
    %v1323 = vunpack.c.l.b16 %v1221
    %v1324 = vunpack.c.h.b16 %v1221
    %v1325 = vunpack.c.l.b16 %v1222
    %v1326 = vunpack.c.h.b16 %v1222
    %v1327 = vunpack.c.l.b16 %v1223
    %v1328 = vunpack.c.h.b16 %v1223
    %v1329 = vunpack.c.l.b16 %v1224
    %v1330 = vunpack.c.h.b16 %v1224
    %v1331 = vunpack.c.l.b16 %v1225
    %v1332 = vunpack.c.h.b16 %v1225
    %v1333 = vunpack.c.l.b16 %v1226
    %v1334 = vunpack.c.h.b16 %v1226
    %v1335 = vunpack.c.l.b16 %v1227
    %v1336 = vunpack.c.h.b16 %v1227
    %v1337 = vunpack.c.l.b16 %v1228
    %v1338 = vunpack.c.h.b16 %v1228
    %v1339 = vunpack.c.l.b16 %v1229
    %v1340 = vunpack.c.h.b16 %v1229
    %v1341 = vunpack.c.l.b16 %v1230
    %v1342 = vunpack.c.h.b16 %v1230
    %v1343 = vunpack.c.l.b16 %v1231
    %v1344 = vunpack.c.h.b16 %v1231
    %v1345 = vunpack.c.l.b16 %v1232
    %v1346 = vunpack.c.h.b16 %v1232
    %v1347 = vunpack.c.l.b16 %v1233
    %v1348 = vunpack.c.h.b16 %v1233
    %v1349 = vunpack.c.l.b16 %v1234
    %v1350 = vunpack.c.h.b16 %v1234
    %v1351 = vunpack.c.l.b16 %v1235
    %v1352 = vunpack.c.h.b16 %v1235
    %v1353 = vunpack.c.l.b16 %v1236
    %v1354 = vunpack.c.h.b16 %v1236
    %v1355 = vunpack.c.l.b16 %v1237
    %v1356 = vunpack.c.h.b16 %v1237
    %v1357 = vpack.c.b16 %v1297, %v1293
    %v1358 = vpack.c.b16 %v1298, %v1294
    %v1359 = vpack.c.b16 %v1299, %v1295
    %v1360 = vpack.c.b16 %v1300, %v1296
    %v1361 = vpack.c.b16 %v1305, %v1301
    %v1362 = vpack.c.b16 %v1306, %v1302
    %v1363 = vpack.c.b16 %v1307, %v1303
    %v1364 = vpack.c.b16 %v1308, %v1304
    %v1365 = vpack.c.b16 %v1313, %v1309
    %v1366 = vpack.c.b16 %v1314, %v1310
    %v1367 = vpack.c.b16 %v1315, %v1311
    %v1368 = vpack.c.b16 %v1316, %v1312
    %v1369 = vpack.c.b16 %v1321, %v1317
    %v1370 = vpack.c.b16 %v1322, %v1318
    %v1371 = vpack.c.b16 %v1323, %v1319
    %v1372 = vpack.c.b16 %v1324, %v1320
    %v1373 = vpack.c.b16 %v1329, %v1325
    %v1374 = vpack.c.b16 %v1330, %v1326
    %v1375 = vpack.c.b16 %v1331, %v1327
    %v1376 = vpack.c.b16 %v1332, %v1328
    %v1377 = vpack.c.b16 %v1337, %v1333
    %v1378 = vpack.c.b16 %v1338, %v1334
    %v1379 = vpack.c.b16 %v1339, %v1335
    %v1380 = vpack.c.b16 %v1340, %v1336
    %v1381 = vpack.c.b16 %v1345, %v1341
    %v1382 = vpack.c.b16 %v1346, %v1342
    %v1383 = vpack.c.b16 %v1347, %v1343
    %v1384 = vpack.c.b16 %v1348, %v1344
    %v1385 = vpack.c.b16 %v1353, %v1349
    %v1386 = vpack.c.b16 %v1354, %v1350
    %v1387 = vpack.c.b16 %v1355, %v1351
    %v1388 = vpack.c.b16 %v1356, %v1352
    %1421 = vmatprep.subr.bf16.mxu0 %v1386
    %1422 = vmatpush1.bf16.msra.mxu0 %v1385
    %1423 = vmatprep.subr.bf16.mxu0 %v1382
    %1424 = vmatpush1.bf16.msra.mxu0 %v1381
    %1425 = vmatprep.subr.bf16.mxu0 %v1378
    %1426 = vmatpush1.bf16.msra.mxu0 %v1377
    %1427 = vmatprep.subr.bf16.mxu0 %v1374
    %1428 = vmatpush1.bf16.msra.mxu0 %v1373
    %1429 = vmatprep.subr.bf16.mxu0 %v1370
    %1430 = vmatpush1.bf16.msra.mxu0 %v1369
    %1431 = vmatprep.subr.bf16.mxu0 %v1366
    %1432 = vmatpush1.bf16.msra.mxu0 %v1365
    %1433 = vmatprep.subr.bf16.mxu0 %v1362
    %1434 = vmatpush1.bf16.msra.mxu0 %v1361
    %1435 = vmatprep.subr.bf16.mxu0 %v1358
    %1436 = vmatpush1.bf16.msra.mxu0 %v1357
    %1437 = vmatprep.subr.bf16.mxu0 0
    %1438 = vmatpush2.bf16.msra.mxu0 0
    %1439 = vmatprep.subr.bf16.mxu0 0
    %1440 = vmatpush2.bf16.msra.mxu0 0
    %1441 = vmatprep.subr.bf16.mxu0 0
    %1442 = vmatpush2.bf16.msra.mxu0 0
    %1443 = vmatprep.subr.bf16.mxu0 0
    %1444 = vmatpush2.bf16.msra.mxu0 0
    %1445 = vmatprep.subr.bf16.mxu0 0
    %1446 = vmatpush2.bf16.msra.mxu0 0
    %1447 = vmatprep.subr.bf16.mxu0 0
    %1448 = vmatpush2.bf16.msra.mxu0 0
    %1449 = vmatprep.subr.bf16.mxu0 0
    %1450 = vmatpush2.bf16.msra.mxu0 0
    %1451 = vmatprep.subr.bf16.mxu0 0
    %1452 = vmatpush2.bf16.msra.mxu0 0
    %1453 = vmatprep.mubr.bf16.mxu0 0
    %1454 = vmatmul.mubr.bf16.gmra.mxu0 %v1204
    %v1455 = vpop.f32.mrf.mxu0
    %v1456 = vadd.f32 %v1244, %v1455
    %v1457 = vpop.f32.mrf.mxu0
    %v1458 = vadd.f32 %v1248, %v1457
    %v1459 = vpop.f32.mrf.mxu0
    %v1460 = vadd.f32 %v1244, %v1459
    %v1461 = vpop.f32.mrf.mxu0
    %v1462 = vadd.f32 %v1248, %v1461
    %1463 = vdwg.mxu0
    %1464 = vmatprep.subr.bf16.mxu0 %v1388
    %1465 = vmatpush1.bf16.msra.mxu0 %v1387
    %1466 = vmatprep.subr.bf16.mxu0 %v1384
    %1467 = vmatpush1.bf16.msra.mxu0 %v1383
    %1468 = vmatprep.subr.bf16.mxu0 %v1380
    %1469 = vmatpush1.bf16.msra.mxu0 %v1379
    %1470 = vmatprep.subr.bf16.mxu0 %v1376
    %1471 = vmatpush1.bf16.msra.mxu0 %v1375
    %1472 = vmatprep.subr.bf16.mxu0 %v1372
    %1473 = vmatpush1.bf16.msra.mxu0 %v1371
    %1474 = vmatprep.subr.bf16.mxu0 %v1368
    %1475 = vmatpush1.bf16.msra.mxu0 %v1367
    %1476 = vmatprep.subr.bf16.mxu0 %v1364
    %1477 = vmatpush1.bf16.msra.mxu0 %v1363
    %1478 = vmatprep.subr.bf16.mxu0 %v1360
    %1479 = vmatpush1.bf16.msra.mxu0 %v1359
    %1480 = vmatprep.subr.bf16.mxu0 0
    %1481 = vmatpush2.bf16.msra.mxu0 0
    %1482 = vmatprep.subr.bf16.mxu0 0
    %1483 = vmatpush2.bf16.msra.mxu0 0
    %1484 = vmatprep.subr.bf16.mxu0 0
    %1485 = vmatpush2.bf16.msra.mxu0 0
    %1486 = vmatprep.subr.bf16.mxu0 0
    %1487 = vmatpush2.bf16.msra.mxu0 0
    %1488 = vmatprep.subr.bf16.mxu0 0
    %1489 = vmatpush2.bf16.msra.mxu0 0
    %1490 = vmatprep.subr.bf16.mxu0 0
    %1491 = vmatpush2.bf16.msra.mxu0 0
    %1492 = vmatprep.subr.bf16.mxu0 0
    %1493 = vmatpush2.bf16.msra.mxu0 0
    %1494 = vmatprep.subr.bf16.mxu0 0
    %1495 = vmatpush2.bf16.msra.mxu0 0
    %1496 = vmatprep.mubr.bf16.mxu0 0
    %1497 = vmatmul.mubr.bf16.gmra.mxu0 %v1204
    %v1498 = vpop.f32.mrf.mxu0
    %v1499 = vadd.f32 %v1252, %v1498
    %v1500 = vpop.f32.mrf.mxu0
    %v1501 = vadd.f32 %v1256, %v1500
    %v1502 = vpop.f32.mrf.mxu0
    %v1503 = vadd.f32 %v1252, %v1502
    %v1504 = vpop.f32.mrf.mxu0
    %v1505 = vadd.f32 %v1256, %v1504
    %1506 = vdwg.mxu0
    %v1507 = vmax.f32 %v1456, 0.0
    %v1508 = vmax.f32 %v1458, 0.0
    %v1509 = vmax.f32 %v1499, 0.0
    %v1510 = vmax.f32 %v1501, 0.0
    %v1511 = vmax.f32 %v1460, 0.0
    %v1512 = vmax.f32 %v1462, 0.0
    %v1513 = vmax.f32 %v1503, 0.0
    %v1514 = vmax.f32 %v1505, 0.0
    %v1515 = vpack.c.bf16 %v1511, %v1507
    %v1516 = vpack.c.bf16 %v1512, %v1508
    %v1517 = vpack.c.bf16 %v1513, %v1509
    %v1518 = vpack.c.bf16 %v1514, %v1510
    %s1519 = scalar_lea.vmem [#allocation13], 256
    %v1520 = vld [vmem:[%s1519] sm:$0xf]
    %v1521 = vld [vmem:[%s1519 + $0x4] sm:$0xf]
    %v1522 = vld [vmem:[%s1519 + $0x8] sm:$0xf]
    %v1523 = vld [vmem:[%s1519 + $0xc] sm:$0xf]
    %v1524 = vld [vmem:[%s1519 + $0x10] sm:$0xf]
    %v1525 = vld [vmem:[%s1519 + $0x14] sm:$0xf]
    %v1526 = vld [vmem:[%s1519 + $0x18] sm:$0xf]
    %v1527 = vld [vmem:[%s1519 + $0x1c] sm:$0xf]
    %v1528 = vld [vmem:[%s1519 + $0x20] sm:$0xf]
    %v1529 = vld [vmem:[%s1519 + $0x24] sm:$0xf]
    %v1530 = vld [vmem:[%s1519 + $0x28] sm:$0xf]
    %v1531 = vld [vmem:[%s1519 + $0x2c] sm:$0xf]
    %v1532 = vld [vmem:[%s1519 + $0x30] sm:$0xf]
    %v1533 = vld [vmem:[%s1519 + $0x34] sm:$0xf]
    %v1534 = vld [vmem:[%s1519 + $0x38] sm:$0xf]
    %v1535 = vld [vmem:[%s1519 + $0x3c] sm:$0xf]
    %v1536 = vld [vmem:[%s1519 + $0x40] sm:$0xf]
    %v1537 = vld [vmem:[%s1519 + $0x44] sm:$0xf]
    %v1538 = vld [vmem:[%s1519 + $0x48] sm:$0xf]
    %v1539 = vld [vmem:[%s1519 + $0x4c] sm:$0xf]
    %v1540 = vld [vmem:[%s1519 + $0x50] sm:$0xf]
    %v1541 = vld [vmem:[%s1519 + $0x54] sm:$0xf]
    %v1542 = vld [vmem:[%s1519 + $0x58] sm:$0xf]
    %v1543 = vld [vmem:[%s1519 + $0x5c] sm:$0xf]
    %v1544 = vld [vmem:[%s1519 + $0x60] sm:$0xf]
    %v1545 = vld [vmem:[%s1519 + $0x64] sm:$0xf]
    %v1546 = vld [vmem:[%s1519 + $0x68] sm:$0xf]
    %v1547 = vld [vmem:[%s1519 + $0x6c] sm:$0xf]
    %v1548 = vld [vmem:[%s1519 + $0x70] sm:$0xf]
    %v1549 = vld [vmem:[%s1519 + $0x74] sm:$0xf]
    %v1550 = vld [vmem:[%s1519 + $0x78] sm:$0xf]
    %v1551 = vld [vmem:[%s1519 + $0x7c] sm:$0xf]
    %v1552 = vld [vmem:[%s1519 + $0x80] sm:$0xf]
    %v1553 = vld [vmem:[%s1519 + $0x84] sm:$0xf]
    %v1554 = vld [vmem:[%s1519 + $0x88] sm:$0xf]
    %v1555 = vld [vmem:[%s1519 + $0x8c] sm:$0xf]
    %v1556 = vld [vmem:[%s1519 + $0x90] sm:$0xf]
    %v1557 = vld [vmem:[%s1519 + $0x94] sm:$0xf]
    %v1558 = vld [vmem:[%s1519 + $0x98] sm:$0xf]
    %v1559 = vld [vmem:[%s1519 + $0x9c] sm:$0xf]
    %v1560 = vld [vmem:[%s1519 + $0xa0] sm:$0xf]
    %v1561 = vld [vmem:[%s1519 + $0xa4] sm:$0xf]
    %v1562 = vld [vmem:[%s1519 + $0xa8] sm:$0xf]
    %v1563 = vld [vmem:[%s1519 + $0xac] sm:$0xf]
    %v1564 = vld [vmem:[%s1519 + $0xb0] sm:$0xf]
    %v1565 = vld [vmem:[%s1519 + $0xb4] sm:$0xf]
    %v1566 = vld [vmem:[%s1519 + $0xb8] sm:$0xf]
    %v1567 = vld [vmem:[%s1519 + $0xbc] sm:$0xf]
    %v1568 = vld [vmem:[%s1519 + $0xc0] sm:$0xf]
    %v1569 = vld [vmem:[%s1519 + $0xc4] sm:$0xf]
    %v1570 = vld [vmem:[%s1519 + $0xc8] sm:$0xf]
    %v1571 = vld [vmem:[%s1519 + $0xcc] sm:$0xf]
    %v1572 = vld [vmem:[%s1519 + $0xd0] sm:$0xf]
    %v1573 = vld [vmem:[%s1519 + $0xd4] sm:$0xf]
    %v1574 = vld [vmem:[%s1519 + $0xd8] sm:$0xf]
    %v1575 = vld [vmem:[%s1519 + $0xdc] sm:$0xf]
    %v1576 = vld [vmem:[%s1519 + $0xe0] sm:$0xf]
    %v1577 = vld [vmem:[%s1519 + $0xe4] sm:$0xf]
    %v1578 = vld [vmem:[%s1519 + $0xe8] sm:$0xf]
    %v1579 = vld [vmem:[%s1519 + $0xec] sm:$0xf]
    %v1580 = vld [vmem:[%s1519 + $0xf0] sm:$0xf]
    %v1581 = vld [vmem:[%s1519 + $0xf4] sm:$0xf]
    %v1582 = vld [vmem:[%s1519 + $0xf8] sm:$0xf]
    %v1583 = vld [vmem:[%s1519 + $0xfc] sm:$0xf]
    %s1584 = scalar_lea.vmem %s8, 1
    %v1585 = vld [vmem:[%s1584] sm:$0x1]
    %v1587 = vlaneseq
    %v1588 = vshrl.u32 %v1587, 7
    %v1589 = vsub.s32 0, %v1588
    %v1590 = vrot.slane %v1585, %v1589
    %v1656 = vunpack.c.l.b16 %v1520
    %v1657 = vunpack.c.l.b16 %v1521
    %v1658 = vunpack.c.l.b16 %v1522
    %v1659 = vunpack.c.l.b16 %v1523
    %v1660 = vunpack.c.l.b16 %v1524
    %v1661 = vunpack.c.l.b16 %v1525
    %v1662 = vunpack.c.l.b16 %v1526
    %v1663 = vunpack.c.l.b16 %v1527
    %v1664 = vunpack.c.l.b16 %v1528
    %v1665 = vunpack.c.l.b16 %v1529
    %v1666 = vunpack.c.l.b16 %v1530
    %v1667 = vunpack.c.l.b16 %v1531
    %v1668 = vunpack.c.l.b16 %v1532
    %v1669 = vunpack.c.l.b16 %v1533
    %v1670 = vunpack.c.l.b16 %v1534
    %v1671 = vunpack.c.l.b16 %v1535
    %v1672 = vunpack.c.l.b16 %v1536
    %v1673 = vunpack.c.l.b16 %v1537
    %v1674 = vunpack.c.l.b16 %v1538
    %v1675 = vunpack.c.l.b16 %v1539
    %v1676 = vunpack.c.l.b16 %v1540
    %v1677 = vunpack.c.l.b16 %v1541
    %v1678 = vunpack.c.l.b16 %v1542
    %v1679 = vunpack.c.l.b16 %v1543
    %v1680 = vunpack.c.l.b16 %v1544
    %v1681 = vunpack.c.l.b16 %v1545
    %v1682 = vunpack.c.l.b16 %v1546
    %v1683 = vunpack.c.l.b16 %v1547
    %v1684 = vunpack.c.l.b16 %v1548
    %v1685 = vunpack.c.l.b16 %v1549
    %v1686 = vunpack.c.l.b16 %v1550
    %v1687 = vunpack.c.l.b16 %v1551
    %v1688 = vunpack.c.l.b16 %v1552
    %v1689 = vunpack.c.l.b16 %v1553
    %v1690 = vunpack.c.l.b16 %v1554
    %v1691 = vunpack.c.l.b16 %v1555
    %v1692 = vunpack.c.l.b16 %v1556
    %v1693 = vunpack.c.l.b16 %v1557
    %v1694 = vunpack.c.l.b16 %v1558
    %v1695 = vunpack.c.l.b16 %v1559
    %v1696 = vunpack.c.l.b16 %v1560
    %v1697 = vunpack.c.l.b16 %v1561
    %v1698 = vunpack.c.l.b16 %v1562
    %v1699 = vunpack.c.l.b16 %v1563
    %v1700 = vunpack.c.l.b16 %v1564
    %v1701 = vunpack.c.l.b16 %v1565
    %v1702 = vunpack.c.l.b16 %v1566
    %v1703 = vunpack.c.l.b16 %v1567
    %v1704 = vunpack.c.l.b16 %v1568
    %v1705 = vunpack.c.l.b16 %v1569
    %v1706 = vunpack.c.l.b16 %v1570
    %v1707 = vunpack.c.l.b16 %v1571
    %v1708 = vunpack.c.l.b16 %v1572
    %v1709 = vunpack.c.l.b16 %v1573
    %v1710 = vunpack.c.l.b16 %v1574
    %v1711 = vunpack.c.l.b16 %v1575
    %v1712 = vunpack.c.l.b16 %v1576
    %v1713 = vunpack.c.l.b16 %v1577
    %v1714 = vunpack.c.l.b16 %v1578
    %v1715 = vunpack.c.l.b16 %v1579
    %v1716 = vunpack.c.l.b16 %v1580
    %v1717 = vunpack.c.l.b16 %v1581
    %v1718 = vunpack.c.l.b16 %v1582
    %v1719 = vunpack.c.l.b16 %v1583
    %v1720 = vpack.c.b16 %v1657, %v1656
    %v1721 = vpack.c.b16 %v1659, %v1658
    %v1722 = vpack.c.b16 %v1661, %v1660
    %v1723 = vpack.c.b16 %v1663, %v1662
    %v1724 = vpack.c.b16 %v1665, %v1664
    %v1725 = vpack.c.b16 %v1667, %v1666
    %v1726 = vpack.c.b16 %v1669, %v1668
    %v1727 = vpack.c.b16 %v1671, %v1670
    %v1728 = vpack.c.b16 %v1673, %v1672
    %v1729 = vpack.c.b16 %v1675, %v1674
    %v1730 = vpack.c.b16 %v1677, %v1676
    %v1731 = vpack.c.b16 %v1679, %v1678
    %v1732 = vpack.c.b16 %v1681, %v1680
    %v1733 = vpack.c.b16 %v1683, %v1682
    %v1734 = vpack.c.b16 %v1685, %v1684
    %v1735 = vpack.c.b16 %v1687, %v1686
    %v1736 = vpack.c.b16 %v1689, %v1688
    %v1737 = vpack.c.b16 %v1691, %v1690
    %v1738 = vpack.c.b16 %v1693, %v1692
    %v1739 = vpack.c.b16 %v1695, %v1694
    %v1740 = vpack.c.b16 %v1697, %v1696
    %v1741 = vpack.c.b16 %v1699, %v1698
    %v1742 = vpack.c.b16 %v1701, %v1700
    %v1743 = vpack.c.b16 %v1703, %v1702
    %v1744 = vpack.c.b16 %v1705, %v1704
    %v1745 = vpack.c.b16 %v1707, %v1706
    %v1746 = vpack.c.b16 %v1709, %v1708
    %v1747 = vpack.c.b16 %v1711, %v1710
    %v1748 = vpack.c.b16 %v1713, %v1712
    %v1749 = vpack.c.b16 %v1715, %v1714
    %v1750 = vpack.c.b16 %v1717, %v1716
    %v1751 = vpack.c.b16 %v1719, %v1718
    %1784 = vmatprep.subr.bf16.mxu0 0
    %1785 = vmatpush1.bf16.msra.mxu0 %v1727
    %1786 = vmatprep.subr.bf16.mxu0 0
    %1787 = vmatpush1.bf16.msra.mxu0 %v1726
    %1788 = vmatprep.subr.bf16.mxu0 0
    %1789 = vmatpush1.bf16.msra.mxu0 %v1725
    %1790 = vmatprep.subr.bf16.mxu0 0
    %1791 = vmatpush1.bf16.msra.mxu0 %v1724
    %1792 = vmatprep.subr.bf16.mxu0 0
    %1793 = vmatpush1.bf16.msra.mxu0 %v1723
    %1794 = vmatprep.subr.bf16.mxu0 0
    %1795 = vmatpush1.bf16.msra.mxu0 %v1722
    %1796 = vmatprep.subr.bf16.mxu0 0
    %1797 = vmatpush1.bf16.msra.mxu0 %v1721
    %1798 = vmatprep.subr.bf16.mxu0 0
    %1799 = vmatpush1.bf16.msra.mxu0 %v1720
    %1800 = vmatprep.subr.bf16.mxu0 0
    %1801 = vmatpush2.bf16.msra.mxu0 %v1735
    %1802 = vmatprep.subr.bf16.mxu0 0
    %1803 = vmatpush2.bf16.msra.mxu0 %v1734
    %1804 = vmatprep.subr.bf16.mxu0 0
    %1805 = vmatpush2.bf16.msra.mxu0 %v1733
    %1806 = vmatprep.subr.bf16.mxu0 0
    %1807 = vmatpush2.bf16.msra.mxu0 %v1732
    %1808 = vmatprep.subr.bf16.mxu0 0
    %1809 = vmatpush2.bf16.msra.mxu0 %v1731
    %1810 = vmatprep.subr.bf16.mxu0 0
    %1811 = vmatpush2.bf16.msra.mxu0 %v1730
    %1812 = vmatprep.subr.bf16.mxu0 0
    %1813 = vmatpush2.bf16.msra.mxu0 %v1729
    %1814 = vmatprep.subr.bf16.mxu0 0
    %1815 = vmatpush2.bf16.msra.mxu0 %v1728
    %1816 = vmatprep.mubr.bf16.mxu0 %v1516
    %1817 = vmatmul.mubr.bf16.gmra.mxu0 %v1515
    %v1818 = vpop.f32.mrf.mxu0
    %v1819 = vadd.f32 %v1590, %v1818
    %v1820 = vpop.f32.mrf.mxu0
    %v1821 = vpop.f32.mrf.mxu0
    %v1822 = vadd.f32 %v1590, %v1821
    %v1823 = vpop.f32.mrf.mxu0
    %1824 = vdwg.mxu0
    %1825 = vmatprep.subr.bf16.mxu0 0
    %1826 = vmatpush1.bf16.msra.mxu0 %v1743
    %1827 = vmatprep.subr.bf16.mxu0 0
    %1828 = vmatpush1.bf16.msra.mxu0 %v1742
    %1829 = vmatprep.subr.bf16.mxu0 0
    %1830 = vmatpush1.bf16.msra.mxu0 %v1741
    %1831 = vmatprep.subr.bf16.mxu0 0
    %1832 = vmatpush1.bf16.msra.mxu0 %v1740
    %1833 = vmatprep.subr.bf16.mxu0 0
    %1834 = vmatpush1.bf16.msra.mxu0 %v1739
    %1835 = vmatprep.subr.bf16.mxu0 0
    %1836 = vmatpush1.bf16.msra.mxu0 %v1738
    %1837 = vmatprep.subr.bf16.mxu0 0
    %1838 = vmatpush1.bf16.msra.mxu0 %v1737
    %1839 = vmatprep.subr.bf16.mxu0 0
    %1840 = vmatpush1.bf16.msra.mxu0 %v1736
    %1841 = vmatprep.subr.bf16.mxu0 0
    %1842 = vmatpush2.bf16.msra.mxu0 %v1751
    %1843 = vmatprep.subr.bf16.mxu0 0
    %1844 = vmatpush2.bf16.msra.mxu0 %v1750
    %1845 = vmatprep.subr.bf16.mxu0 0
    %1846 = vmatpush2.bf16.msra.mxu0 %v1749
    %1847 = vmatprep.subr.bf16.mxu0 0
    %1848 = vmatpush2.bf16.msra.mxu0 %v1748
    %1849 = vmatprep.subr.bf16.mxu0 0
    %1850 = vmatpush2.bf16.msra.mxu0 %v1747
    %1851 = vmatprep.subr.bf16.mxu0 0
    %1852 = vmatpush2.bf16.msra.mxu0 %v1746
    %1853 = vmatprep.subr.bf16.mxu0 0
    %1854 = vmatpush2.bf16.msra.mxu0 %v1745
    %1855 = vmatprep.subr.bf16.mxu0 0
    %1856 = vmatpush2.bf16.msra.mxu0 %v1744
    %1857 = vmatprep.mubr.bf16.mxu0 %v1518
    %1858 = vmatmul.mubr.bf16.gmra.mxu0 %v1517
    %v1859 = vpop.f32.mrf.mxu0
    %v1860 = vadd.f32 %v1819, %v1859
    %v1861 = vpop.f32.mrf.mxu0
    %v1862 = vpop.f32.mrf.mxu0
    %v1863 = vadd.f32 %v1822, %v1862
    %v1864 = vpop.f32.mrf.mxu0
    %1865 = vdwg.mxu0
    %v1866 = vadd.f32 %v1202, %v1860
    %v1867 = vadd.f32 %v1203, %v1863
    %s1868 = scalar_lea.vmem [#allocation14], 1
    %v1869 = vld [vmem:[%s1868] sm:$0x1]
    %s1870 = scalar_lea.vmem %s10, 1
    %v1871 = vld [vmem:[%s1870] sm:$0x1]
    %1872 = vadd.xlane.f32.xlu0 %v1866
    %v1873 = vpop.xlane.xlu0 %1872
    %1874 = vadd.xlane.f32.xlu0 %v1867
    %v1875 = vpop.xlane.xlu0 %1874
    %v1876 = vmul.f32 %v1873, %v298
    %v1877 = vmul.f32 %v1875, %v298
    %v1878 = vmul.f32 %v1866, %v1866
    %v1879 = vmul.f32 %v1867, %v1867
    %1880 = vadd.xlane.f32.xlu0 %v1878
    %v1881 = vpop.xlane.xlu0 %1880
    %1882 = vadd.xlane.f32.xlu0 %v1879
    %v1883 = vpop.xlane.xlu0 %1882
    %v1884 = vmul.f32 %v1881, %v298
    %v1885 = vmul.f32 %v1883, %v298
    %v1886 = vmul.f32 %v1876, %v1876
    %v1887 = vmul.f32 %v1877, %v1877
    %v1888 = vsub.f32 %v1884, %v1886
    %v1889 = vsub.f32 %v1885, %v1887
    %v1890 = vadd.f32 %v1888, 1e-05
    %v1891 = vadd.f32 %v1889, 1e-05
    %v1892 = vrsqrt.pop %v1890
    %v1893 = vrsqrt.pop %v1891
    %v1894 = vsub.f32 %v1866, %v1876
    %v1895 = vsub.f32 %v1867, %v1877
    %v1896 = vmul.f32 %v1894, %v1892
    %v1897 = vmul.f32 %v1895, %v1893
    %v1899 = vlaneseq
    %v1900 = vshrl.u32 %v1899, 7
    %v1901 = vsub.s32 0, %v1900
    %v1902 = vrot.slane %v1869, %v1901
    %v1904 = vmul.f32 %v1896, %v1902
    %v1905 = vmul.f32 %v1897, %v1902
    %v1907 = vlaneseq
    %v1908 = vshrl.u32 %v1907, 7
    %v1909 = vsub.s32 0, %v1908
    %v1910 = vrot.slane %v1871, %v1909
    %v1912 = vadd.f32 %v1904, %v1910
    %v1913 = vadd.f32 %v1905, %v1910
    %v1914 = vpack.c.bf16 %v1913, %v1912
    %s1915 = scalar_lea.vmem [#allocation5], 128
    %v1916 = vld [vmem:[%s1915] sm:$0xf]
    %v1917 = vld [vmem:[%s1915 + $0x4] sm:$0xf]
    %v1918 = vld [vmem:[%s1915 + $0x8] sm:$0xf]
    %v1919 = vld [vmem:[%s1915 + $0xc] sm:$0xf]
    %v1920 = vld [vmem:[%s1915 + $0x10] sm:$0xf]
    %v1921 = vld [vmem:[%s1915 + $0x14] sm:$0xf]
    %v1922 = vld [vmem:[%s1915 + $0x18] sm:$0xf]
    %v1923 = vld [vmem:[%s1915 + $0x1c] sm:$0xf]
    %v1924 = vld [vmem:[%s1915 + $0x20] sm:$0xf]
    %v1925 = vld [vmem:[%s1915 + $0x24] sm:$0xf]
    %v1926 = vld [vmem:[%s1915 + $0x28] sm:$0xf]
    %v1927 = vld [vmem:[%s1915 + $0x2c] sm:$0xf]
    %v1928 = vld [vmem:[%s1915 + $0x30] sm:$0xf]
    %v1929 = vld [vmem:[%s1915 + $0x34] sm:$0xf]
    %v1930 = vld [vmem:[%s1915 + $0x38] sm:$0xf]
    %v1931 = vld [vmem:[%s1915 + $0x3c] sm:$0xf]
    %s1932 = scalar_lea.vmem [#allocation7], 2
    %v1933 = vld [vmem:[%s1932] sm:$0x1]
    %v1935 = vlaneseq
    %v1936 = vshrl.u32 %v1935, 7
    %v1937 = vsub.s32 0, %v1936
    %v1938 = vrot.slane %v1933, %v1937
    %v1956 = vunpack.c.l.b16 %v1916
    %v1957 = vunpack.c.l.b16 %v1917
    %v1958 = vunpack.c.l.b16 %v1918
    %v1959 = vunpack.c.l.b16 %v1919
    %v1960 = vunpack.c.l.b16 %v1920
    %v1961 = vunpack.c.l.b16 %v1921
    %v1962 = vunpack.c.l.b16 %v1922
    %v1963 = vunpack.c.l.b16 %v1923
    %v1964 = vunpack.c.l.b16 %v1924
    %v1965 = vunpack.c.l.b16 %v1925
    %v1966 = vunpack.c.l.b16 %v1926
    %v1967 = vunpack.c.l.b16 %v1927
    %v1968 = vunpack.c.l.b16 %v1928
    %v1969 = vunpack.c.l.b16 %v1929
    %v1970 = vunpack.c.l.b16 %v1930
    %v1971 = vunpack.c.l.b16 %v1931
    %v1972 = vpack.c.b16 %v1957, %v1956
    %v1973 = vpack.c.b16 %v1959, %v1958
    %v1974 = vpack.c.b16 %v1961, %v1960
    %v1975 = vpack.c.b16 %v1963, %v1962
    %v1976 = vpack.c.b16 %v1965, %v1964
    %v1977 = vpack.c.b16 %v1967, %v1966
    %v1978 = vpack.c.b16 %v1969, %v1968
    %v1979 = vpack.c.b16 %v1971, %v1970
    %1988 = vmatprep.subr.bf16.mxu0 0
    %1989 = vmatpush1.bf16.msra.mxu0 %v1979
    %1990 = vmatprep.subr.bf16.mxu0 0
    %1991 = vmatpush1.bf16.msra.mxu0 %v1978
    %1992 = vmatprep.subr.bf16.mxu0 0
    %1993 = vmatpush1.bf16.msra.mxu0 %v1977
    %1994 = vmatprep.subr.bf16.mxu0 0
    %1995 = vmatpush1.bf16.msra.mxu0 %v1976
    %1996 = vmatprep.subr.bf16.mxu0 0
    %1997 = vmatpush1.bf16.msra.mxu0 %v1975
    %1998 = vmatprep.subr.bf16.mxu0 0
    %1999 = vmatpush1.bf16.msra.mxu0 %v1974
    %2000 = vmatprep.subr.bf16.mxu0 0
    %2001 = vmatpush1.bf16.msra.mxu0 %v1973
    %2002 = vmatprep.subr.bf16.mxu0 0
    %2003 = vmatpush1.bf16.msra.mxu0 %v1972
    %2004 = vmatprep.subr.bf16.mxu0 0
    %2005 = vmatpush2.bf16.msra.mxu0 0
    %2006 = vmatprep.subr.bf16.mxu0 0
    %2007 = vmatpush2.bf16.msra.mxu0 0
    %2008 = vmatprep.subr.bf16.mxu0 0
    %2009 = vmatpush2.bf16.msra.mxu0 0
    %2010 = vmatprep.subr.bf16.mxu0 0
    %2011 = vmatpush2.bf16.msra.mxu0 0
    %2012 = vmatprep.subr.bf16.mxu0 0
    %2013 = vmatpush2.bf16.msra.mxu0 0
    %2014 = vmatprep.subr.bf16.mxu0 0
    %2015 = vmatpush2.bf16.msra.mxu0 0
    %2016 = vmatprep.subr.bf16.mxu0 0
    %2017 = vmatpush2.bf16.msra.mxu0 0
    %2018 = vmatprep.subr.bf16.mxu0 0
    %2019 = vmatpush2.bf16.msra.mxu0 0
    %2020 = vmatprep.mubr.bf16.mxu0 0
    %2021 = vmatmul.mubr.bf16.gmra.mxu0 %v1914
    %v2022 = vpop.f32.mrf.mxu0
    %v2023 = vadd.f32 %v1938, %v2022
    %v2024 = vpop.f32.mrf.mxu0
    %v2025 = vpop.f32.mrf.mxu0
    %v2026 = vadd.f32 %v1938, %v2025
    %v2027 = vpop.f32.mrf.mxu0
    %2028 = vdwg.mxu0
    %v2029 = vadd.f32 %v1912, %v2023
    %v2030 = vadd.f32 %v1913, %v2026
    %s2031 = scalar_lea.vmem %s3, 2
    %v2032 = vld [vmem:[%s2031] sm:$0x1]
    %s2033 = scalar_lea.vmem [#allocation8], 2
    %v2034 = vld [vmem:[%s2033] sm:$0x1]
    %2035 = vadd.xlane.f32.xlu0 %v2029
    %v2036 = vpop.xlane.xlu0 %2035
    %2037 = vadd.xlane.f32.xlu0 %v2030
    %v2038 = vpop.xlane.xlu0 %2037
    %v2039 = vmul.f32 %v2036, %v298
    %v2040 = vmul.f32 %v2038, %v298
    %v2041 = vmul.f32 %v2029, %v2029
    %v2042 = vmul.f32 %v2030, %v2030
    %2043 = vadd.xlane.f32.xlu0 %v2041
    %v2044 = vpop.xlane.xlu0 %2043
    %2045 = vadd.xlane.f32.xlu0 %v2042
    %v2046 = vpop.xlane.xlu0 %2045
    %v2047 = vmul.f32 %v2044, %v298
    %v2048 = vmul.f32 %v2046, %v298
    %v2049 = vmul.f32 %v2039, %v2039
    %v2050 = vmul.f32 %v2040, %v2040
    %v2051 = vsub.f32 %v2047, %v2049
    %v2052 = vsub.f32 %v2048, %v2050
    %v2053 = vadd.f32 %v2051, 1e-05
    %v2054 = vadd.f32 %v2052, 1e-05
    %v2055 = vrsqrt.pop %v2053
    %v2056 = vrsqrt.pop %v2054
    %v2057 = vsub.f32 %v2029, %v2039
    %v2058 = vsub.f32 %v2030, %v2040
    %v2059 = vmul.f32 %v2057, %v2055
    %v2060 = vmul.f32 %v2058, %v2056
    %v2062 = vlaneseq
    %v2063 = vshrl.u32 %v2062, 7
    %v2064 = vsub.s32 0, %v2063
    %v2065 = vrot.slane %v2032, %v2064
    %v2067 = vmul.f32 %v2059, %v2065
    %v2068 = vmul.f32 %v2060, %v2065
    %v2070 = vlaneseq
    %v2071 = vshrl.u32 %v2070, 7
    %v2072 = vsub.s32 0, %v2071
    %v2073 = vrot.slane %v2034, %v2072
    %v2075 = vadd.f32 %v2067, %v2073
    %v2076 = vadd.f32 %v2068, %v2073
    %v2077 = vpack.c.bf16 %v2076, %v2075
    %s2078 = scalar_lea.vmem [#allocation10], 512
    %v2079 = vld [vmem:[%s2078] sm:$0xff]
    %v2080 = vld [vmem:[%s2078 + $0x8] sm:$0xff]
    %v2081 = vld [vmem:[%s2078 + $0x10] sm:$0xff]
    %v2082 = vld [vmem:[%s2078 + $0x18] sm:$0xff]
    %v2083 = vld [vmem:[%s2078 + $0x20] sm:$0xff]
    %v2084 = vld [vmem:[%s2078 + $0x28] sm:$0xff]
    %v2085 = vld [vmem:[%s2078 + $0x30] sm:$0xff]
    %v2086 = vld [vmem:[%s2078 + $0x38] sm:$0xff]
    %v2087 = vld [vmem:[%s2078 + $0x40] sm:$0xff]
    %v2088 = vld [vmem:[%s2078 + $0x48] sm:$0xff]
    %v2089 = vld [vmem:[%s2078 + $0x50] sm:$0xff]
    %v2090 = vld [vmem:[%s2078 + $0x58] sm:$0xff]
    %v2091 = vld [vmem:[%s2078 + $0x60] sm:$0xff]
    %v2092 = vld [vmem:[%s2078 + $0x68] sm:$0xff]
    %v2093 = vld [vmem:[%s2078 + $0x70] sm:$0xff]
    %v2094 = vld [vmem:[%s2078 + $0x78] sm:$0xff]
    %v2095 = vld [vmem:[%s2078 + $0x80] sm:$0xff]
    %v2096 = vld [vmem:[%s2078 + $0x88] sm:$0xff]
    %v2097 = vld [vmem:[%s2078 + $0x90] sm:$0xff]
    %v2098 = vld [vmem:[%s2078 + $0x98] sm:$0xff]
    %v2099 = vld [vmem:[%s2078 + $0xa0] sm:$0xff]
    %v2100 = vld [vmem:[%s2078 + $0xa8] sm:$0xff]
    %v2101 = vld [vmem:[%s2078 + $0xb0] sm:$0xff]
    %v2102 = vld [vmem:[%s2078 + $0xb8] sm:$0xff]
    %v2103 = vld [vmem:[%s2078 + $0xc0] sm:$0xff]
    %v2104 = vld [vmem:[%s2078 + $0xc8] sm:$0xff]
    %v2105 = vld [vmem:[%s2078 + $0xd0] sm:$0xff]
    %v2106 = vld [vmem:[%s2078 + $0xd8] sm:$0xff]
    %v2107 = vld [vmem:[%s2078 + $0xe0] sm:$0xff]
    %v2108 = vld [vmem:[%s2078 + $0xe8] sm:$0xff]
    %v2109 = vld [vmem:[%s2078 + $0xf0] sm:$0xff]
    %v2110 = vld [vmem:[%s2078 + $0xf8] sm:$0xff]
    %s2111 = scalar_lea.vmem [#allocation11], 8
    %v2112 = vld [vmem:[%s2111] sm:$0xf]
    %v2114 = vlaneseq
    %v2115 = vshrl.u32 %v2114, 7
    %v2116 = vsub.s32 0, %v2115
    %v2117 = vrot.slane %v2112, %v2116
    %v2118 = vlaneseq
    %v2119 = vshrl.u32 %v2118, 7
    %v2120 = vsub.s32 1, %v2119
    %v2121 = vrot.slane %v2112, %v2120
    %v2122 = vlaneseq
    %v2123 = vshrl.u32 %v2122, 7
    %v2124 = vsub.s32 2, %v2123
    %v2125 = vrot.slane %v2112, %v2124
    %v2126 = vlaneseq
    %v2127 = vshrl.u32 %v2126, 7
    %v2128 = vsub.s32 3, %v2127
    %v2129 = vrot.slane %v2112, %v2128
    %v2166 = vunpack.c.l.b16 %v2079
    %v2167 = vunpack.c.h.b16 %v2079
    %v2168 = vunpack.c.l.b16 %v2080
    %v2169 = vunpack.c.h.b16 %v2080
    %v2170 = vunpack.c.l.b16 %v2081
    %v2171 = vunpack.c.h.b16 %v2081
    %v2172 = vunpack.c.l.b16 %v2082
    %v2173 = vunpack.c.h.b16 %v2082
    %v2174 = vunpack.c.l.b16 %v2083
    %v2175 = vunpack.c.h.b16 %v2083
    %v2176 = vunpack.c.l.b16 %v2084
    %v2177 = vunpack.c.h.b16 %v2084
    %v2178 = vunpack.c.l.b16 %v2085
    %v2179 = vunpack.c.h.b16 %v2085
    %v2180 = vunpack.c.l.b16 %v2086
    %v2181 = vunpack.c.h.b16 %v2086
    %v2182 = vunpack.c.l.b16 %v2087
    %v2183 = vunpack.c.h.b16 %v2087
    %v2184 = vunpack.c.l.b16 %v2088
    %v2185 = vunpack.c.h.b16 %v2088
    %v2186 = vunpack.c.l.b16 %v2089
    %v2187 = vunpack.c.h.b16 %v2089
    %v2188 = vunpack.c.l.b16 %v2090
    %v2189 = vunpack.c.h.b16 %v2090
    %v2190 = vunpack.c.l.b16 %v2091
    %v2191 = vunpack.c.h.b16 %v2091
    %v2192 = vunpack.c.l.b16 %v2092
    %v2193 = vunpack.c.h.b16 %v2092
    %v2194 = vunpack.c.l.b16 %v2093
    %v2195 = vunpack.c.h.b16 %v2093
    %v2196 = vunpack.c.l.b16 %v2094
    %v2197 = vunpack.c.h.b16 %v2094
    %v2198 = vunpack.c.l.b16 %v2095
    %v2199 = vunpack.c.h.b16 %v2095
    %v2200 = vunpack.c.l.b16 %v2096
    %v2201 = vunpack.c.h.b16 %v2096
    %v2202 = vunpack.c.l.b16 %v2097
    %v2203 = vunpack.c.h.b16 %v2097
    %v2204 = vunpack.c.l.b16 %v2098
    %v2205 = vunpack.c.h.b16 %v2098
    %v2206 = vunpack.c.l.b16 %v2099
    %v2207 = vunpack.c.h.b16 %v2099
    %v2208 = vunpack.c.l.b16 %v2100
    %v2209 = vunpack.c.h.b16 %v2100
    %v2210 = vunpack.c.l.b16 %v2101
    %v2211 = vunpack.c.h.b16 %v2101
    %v2212 = vunpack.c.l.b16 %v2102
    %v2213 = vunpack.c.h.b16 %v2102
    %v2214 = vunpack.c.l.b16 %v2103
    %v2215 = vunpack.c.h.b16 %v2103
    %v2216 = vunpack.c.l.b16 %v2104
    %v2217 = vunpack.c.h.b16 %v2104
    %v2218 = vunpack.c.l.b16 %v2105
    %v2219 = vunpack.c.h.b16 %v2105
    %v2220 = vunpack.c.l.b16 %v2106
    %v2221 = vunpack.c.h.b16 %v2106
    %v2222 = vunpack.c.l.b16 %v2107
    %v2223 = vunpack.c.h.b16 %v2107
    %v2224 = vunpack.c.l.b16 %v2108
    %v2225 = vunpack.c.h.b16 %v2108
    %v2226 = vunpack.c.l.b16 %v2109
    %v2227 = vunpack.c.h.b16 %v2109
    %v2228 = vunpack.c.l.b16 %v2110
    %v2229 = vunpack.c.h.b16 %v2110
    %v2230 = vpack.c.b16 %v2170, %v2166
    %v2231 = vpack.c.b16 %v2171, %v2167
    %v2232 = vpack.c.b16 %v2172, %v2168
    %v2233 = vpack.c.b16 %v2173, %v2169
    %v2234 = vpack.c.b16 %v2178, %v2174
    %v2235 = vpack.c.b16 %v2179, %v2175
    %v2236 = vpack.c.b16 %v2180, %v2176
    %v2237 = vpack.c.b16 %v2181, %v2177
    %v2238 = vpack.c.b16 %v2186, %v2182
    %v2239 = vpack.c.b16 %v2187, %v2183
    %v2240 = vpack.c.b16 %v2188, %v2184
    %v2241 = vpack.c.b16 %v2189, %v2185
    %v2242 = vpack.c.b16 %v2194, %v2190
    %v2243 = vpack.c.b16 %v2195, %v2191
    %v2244 = vpack.c.b16 %v2196, %v2192
    %v2245 = vpack.c.b16 %v2197, %v2193
    %v2246 = vpack.c.b16 %v2202, %v2198
    %v2247 = vpack.c.b16 %v2203, %v2199
    %v2248 = vpack.c.b16 %v2204, %v2200
    %v2249 = vpack.c.b16 %v2205, %v2201
    %v2250 = vpack.c.b16 %v2210, %v2206
    %v2251 = vpack.c.b16 %v2211, %v2207
    %v2252 = vpack.c.b16 %v2212, %v2208
    %v2253 = vpack.c.b16 %v2213, %v2209
    %v2254 = vpack.c.b16 %v2218, %v2214
    %v2255 = vpack.c.b16 %v2219, %v2215
    %v2256 = vpack.c.b16 %v2220, %v2216
    %v2257 = vpack.c.b16 %v2221, %v2217
    %v2258 = vpack.c.b16 %v2226, %v2222
    %v2259 = vpack.c.b16 %v2227, %v2223
    %v2260 = vpack.c.b16 %v2228, %v2224
    %v2261 = vpack.c.b16 %v2229, %v2225
    %2294 = vmatprep.subr.bf16.mxu0 %v2259
    %2295 = vmatpush1.bf16.msra.mxu0 %v2258
    %2296 = vmatprep.subr.bf16.mxu0 %v2255
    %2297 = vmatpush1.bf16.msra.mxu0 %v2254
    %2298 = vmatprep.subr.bf16.mxu0 %v2251
    %2299 = vmatpush1.bf16.msra.mxu0 %v2250
    %2300 = vmatprep.subr.bf16.mxu0 %v2247
    %2301 = vmatpush1.bf16.msra.mxu0 %v2246
    %2302 = vmatprep.subr.bf16.mxu0 %v2243
    %2303 = vmatpush1.bf16.msra.mxu0 %v2242
    %2304 = vmatprep.subr.bf16.mxu0 %v2239
    %2305 = vmatpush1.bf16.msra.mxu0 %v2238
    %2306 = vmatprep.subr.bf16.mxu0 %v2235
    %2307 = vmatpush1.bf16.msra.mxu0 %v2234
    %2308 = vmatprep.subr.bf16.mxu0 %v2231
    %2309 = vmatpush1.bf16.msra.mxu0 %v2230
    %2310 = vmatprep.subr.bf16.mxu0 0
    %2311 = vmatpush2.bf16.msra.mxu0 0
    %2312 = vmatprep.subr.bf16.mxu0 0
    %2313 = vmatpush2.bf16.msra.mxu0 0
    %2314 = vmatprep.subr.bf16.mxu0 0
    %2315 = vmatpush2.bf16.msra.mxu0 0
    %2316 = vmatprep.subr.bf16.mxu0 0
    %2317 = vmatpush2.bf16.msra.mxu0 0
    %2318 = vmatprep.subr.bf16.mxu0 0
    %2319 = vmatpush2.bf16.msra.mxu0 0
    %2320 = vmatprep.subr.bf16.mxu0 0
    %2321 = vmatpush2.bf16.msra.mxu0 0
    %2322 = vmatprep.subr.bf16.mxu0 0
    %2323 = vmatpush2.bf16.msra.mxu0 0
    %2324 = vmatprep.subr.bf16.mxu0 0
    %2325 = vmatpush2.bf16.msra.mxu0 0
    %2326 = vmatprep.mubr.bf16.mxu0 0
    %2327 = vmatmul.mubr.bf16.gmra.mxu0 %v2077
    %v2328 = vpop.f32.mrf.mxu0
    %v2329 = vadd.f32 %v2117, %v2328
    %v2330 = vpop.f32.mrf.mxu0
    %v2331 = vadd.f32 %v2121, %v2330
    %v2332 = vpop.f32.mrf.mxu0
    %v2333 = vadd.f32 %v2117, %v2332
    %v2334 = vpop.f32.mrf.mxu0
    %v2335 = vadd.f32 %v2121, %v2334
    %2336 = vdwg.mxu0
    %2337 = vmatprep.subr.bf16.mxu0 %v2261
    %2338 = vmatpush1.bf16.msra.mxu0 %v2260
    %2339 = vmatprep.subr.bf16.mxu0 %v2257
    %2340 = vmatpush1.bf16.msra.mxu0 %v2256
    %2341 = vmatprep.subr.bf16.mxu0 %v2253
    %2342 = vmatpush1.bf16.msra.mxu0 %v2252
    %2343 = vmatprep.subr.bf16.mxu0 %v2249
    %2344 = vmatpush1.bf16.msra.mxu0 %v2248
    %2345 = vmatprep.subr.bf16.mxu0 %v2245
    %2346 = vmatpush1.bf16.msra.mxu0 %v2244
    %2347 = vmatprep.subr.bf16.mxu0 %v2241
    %2348 = vmatpush1.bf16.msra.mxu0 %v2240
    %2349 = vmatprep.subr.bf16.mxu0 %v2237
    %2350 = vmatpush1.bf16.msra.mxu0 %v2236
    %2351 = vmatprep.subr.bf16.mxu0 %v2233
    %2352 = vmatpush1.bf16.msra.mxu0 %v2232
    %2353 = vmatprep.subr.bf16.mxu0 0
    %2354 = vmatpush2.bf16.msra.mxu0 0
    %2355 = vmatprep.subr.bf16.mxu0 0
    %2356 = vmatpush2.bf16.msra.mxu0 0
    %2357 = vmatprep.subr.bf16.mxu0 0
    %2358 = vmatpush2.bf16.msra.mxu0 0
    %2359 = vmatprep.subr.bf16.mxu0 0
    %2360 = vmatpush2.bf16.msra.mxu0 0
    %2361 = vmatprep.subr.bf16.mxu0 0
    %2362 = vmatpush2.bf16.msra.mxu0 0
    %2363 = vmatprep.subr.bf16.mxu0 0
    %2364 = vmatpush2.bf16.msra.mxu0 0
    %2365 = vmatprep.subr.bf16.mxu0 0
    %2366 = vmatpush2.bf16.msra.mxu0 0
    %2367 = vmatprep.subr.bf16.mxu0 0
    %2368 = vmatpush2.bf16.msra.mxu0 0
    %2369 = vmatprep.mubr.bf16.mxu0 0
    %2370 = vmatmul.mubr.bf16.gmra.mxu0 %v2077
    %v2371 = vpop.f32.mrf.mxu0
    %v2372 = vadd.f32 %v2125, %v2371
    %v2373 = vpop.f32.mrf.mxu0
    %v2374 = vadd.f32 %v2129, %v2373
    %v2375 = vpop.f32.mrf.mxu0
    %v2376 = vadd.f32 %v2125, %v2375
    %v2377 = vpop.f32.mrf.mxu0
    %v2378 = vadd.f32 %v2129, %v2377
    %2379 = vdwg.mxu0
    %v2380 = vmax.f32 %v2329, 0.0
    %v2381 = vmax.f32 %v2331, 0.0
    %v2382 = vmax.f32 %v2372, 0.0
    %v2383 = vmax.f32 %v2374, 0.0
    %v2384 = vmax.f32 %v2333, 0.0
    %v2385 = vmax.f32 %v2335, 0.0
    %v2386 = vmax.f32 %v2376, 0.0
    %v2387 = vmax.f32 %v2378, 0.0
    %v2388 = vpack.c.bf16 %v2384, %v2380
    %v2389 = vpack.c.bf16 %v2385, %v2381
    %v2390 = vpack.c.bf16 %v2386, %v2382
    %v2391 = vpack.c.bf16 %v2387, %v2383
    %s2392 = scalar_lea.vmem [#allocation13], 512
    %v2393 = vld [vmem:[%s2392] sm:$0xf]
    %v2394 = vld [vmem:[%s2392 + $0x4] sm:$0xf]
    %v2395 = vld [vmem:[%s2392 + $0x8] sm:$0xf]
    %v2396 = vld [vmem:[%s2392 + $0xc] sm:$0xf]
    %v2397 = vld [vmem:[%s2392 + $0x10] sm:$0xf]
    %v2398 = vld [vmem:[%s2392 + $0x14] sm:$0xf]
    %v2399 = vld [vmem:[%s2392 + $0x18] sm:$0xf]
    %v2400 = vld [vmem:[%s2392 + $0x1c] sm:$0xf]
    %v2401 = vld [vmem:[%s2392 + $0x20] sm:$0xf]
    %v2402 = vld [vmem:[%s2392 + $0x24] sm:$0xf]
    %v2403 = vld [vmem:[%s2392 + $0x28] sm:$0xf]
    %v2404 = vld [vmem:[%s2392 + $0x2c] sm:$0xf]
    %v2405 = vld [vmem:[%s2392 + $0x30] sm:$0xf]
    %v2406 = vld [vmem:[%s2392 + $0x34] sm:$0xf]
    %v2407 = vld [vmem:[%s2392 + $0x38] sm:$0xf]
    %v2408 = vld [vmem:[%s2392 + $0x3c] sm:$0xf]
    %v2409 = vld [vmem:[%s2392 + $0x40] sm:$0xf]
    %v2410 = vld [vmem:[%s2392 + $0x44] sm:$0xf]
    %v2411 = vld [vmem:[%s2392 + $0x48] sm:$0xf]
    %v2412 = vld [vmem:[%s2392 + $0x4c] sm:$0xf]
    %v2413 = vld [vmem:[%s2392 + $0x50] sm:$0xf]
    %v2414 = vld [vmem:[%s2392 + $0x54] sm:$0xf]
    %v2415 = vld [vmem:[%s2392 + $0x58] sm:$0xf]
    %v2416 = vld [vmem:[%s2392 + $0x5c] sm:$0xf]
    %v2417 = vld [vmem:[%s2392 + $0x60] sm:$0xf]
    %v2418 = vld [vmem:[%s2392 + $0x64] sm:$0xf]
    %v2419 = vld [vmem:[%s2392 + $0x68] sm:$0xf]
    %v2420 = vld [vmem:[%s2392 + $0x6c] sm:$0xf]
    %v2421 = vld [vmem:[%s2392 + $0x70] sm:$0xf]
    %v2422 = vld [vmem:[%s2392 + $0x74] sm:$0xf]
    %v2423 = vld [vmem:[%s2392 + $0x78] sm:$0xf]
    %v2424 = vld [vmem:[%s2392 + $0x7c] sm:$0xf]
    %v2425 = vld [vmem:[%s2392 + $0x80] sm:$0xf]
    %v2426 = vld [vmem:[%s2392 + $0x84] sm:$0xf]
    %v2427 = vld [vmem:[%s2392 + $0x88] sm:$0xf]
    %v2428 = vld [vmem:[%s2392 + $0x8c] sm:$0xf]
    %v2429 = vld [vmem:[%s2392 + $0x90] sm:$0xf]
    %v2430 = vld [vmem:[%s2392 + $0x94] sm:$0xf]
    %v2431 = vld [vmem:[%s2392 + $0x98] sm:$0xf]
    %v2432 = vld [vmem:[%s2392 + $0x9c] sm:$0xf]
    %v2433 = vld [vmem:[%s2392 + $0xa0] sm:$0xf]
    %v2434 = vld [vmem:[%s2392 + $0xa4] sm:$0xf]
    %v2435 = vld [vmem:[%s2392 + $0xa8] sm:$0xf]
    %v2436 = vld [vmem:[%s2392 + $0xac] sm:$0xf]
    %v2437 = vld [vmem:[%s2392 + $0xb0] sm:$0xf]
    %v2438 = vld [vmem:[%s2392 + $0xb4] sm:$0xf]
    %v2439 = vld [vmem:[%s2392 + $0xb8] sm:$0xf]
    %v2440 = vld [vmem:[%s2392 + $0xbc] sm:$0xf]
    %v2441 = vld [vmem:[%s2392 + $0xc0] sm:$0xf]
    %v2442 = vld [vmem:[%s2392 + $0xc4] sm:$0xf]
    %v2443 = vld [vmem:[%s2392 + $0xc8] sm:$0xf]
    %v2444 = vld [vmem:[%s2392 + $0xcc] sm:$0xf]
    %v2445 = vld [vmem:[%s2392 + $0xd0] sm:$0xf]
    %v2446 = vld [vmem:[%s2392 + $0xd4] sm:$0xf]
    %v2447 = vld [vmem:[%s2392 + $0xd8] sm:$0xf]
    %v2448 = vld [vmem:[%s2392 + $0xdc] sm:$0xf]
    %v2449 = vld [vmem:[%s2392 + $0xe0] sm:$0xf]
    %v2450 = vld [vmem:[%s2392 + $0xe4] sm:$0xf]
    %v2451 = vld [vmem:[%s2392 + $0xe8] sm:$0xf]
    %v2452 = vld [vmem:[%s2392 + $0xec] sm:$0xf]
    %v2453 = vld [vmem:[%s2392 + $0xf0] sm:$0xf]
    %v2454 = vld [vmem:[%s2392 + $0xf4] sm:$0xf]
    %v2455 = vld [vmem:[%s2392 + $0xf8] sm:$0xf]
    %v2456 = vld [vmem:[%s2392 + $0xfc] sm:$0xf]
    %s2457 = scalar_lea.vmem %s8, 2
    %v2458 = vld [vmem:[%s2457] sm:$0x1]
    %v2460 = vlaneseq
    %v2461 = vshrl.u32 %v2460, 7
    %v2462 = vsub.s32 0, %v2461
    %v2463 = vrot.slane %v2458, %v2462
    %v2529 = vunpack.c.l.b16 %v2393
    %v2530 = vunpack.c.l.b16 %v2394
    %v2531 = vunpack.c.l.b16 %v2395
    %v2532 = vunpack.c.l.b16 %v2396
    %v2533 = vunpack.c.l.b16 %v2397
    %v2534 = vunpack.c.l.b16 %v2398
    %v2535 = vunpack.c.l.b16 %v2399
    %v2536 = vunpack.c.l.b16 %v2400
    %v2537 = vunpack.c.l.b16 %v2401
    %v2538 = vunpack.c.l.b16 %v2402
    %v2539 = vunpack.c.l.b16 %v2403
    %v2540 = vunpack.c.l.b16 %v2404
    %v2541 = vunpack.c.l.b16 %v2405
    %v2542 = vunpack.c.l.b16 %v2406
    %v2543 = vunpack.c.l.b16 %v2407
    %v2544 = vunpack.c.l.b16 %v2408
    %v2545 = vunpack.c.l.b16 %v2409
    %v2546 = vunpack.c.l.b16 %v2410
    %v2547 = vunpack.c.l.b16 %v2411
    %v2548 = vunpack.c.l.b16 %v2412
    %v2549 = vunpack.c.l.b16 %v2413
    %v2550 = vunpack.c.l.b16 %v2414
    %v2551 = vunpack.c.l.b16 %v2415
    %v2552 = vunpack.c.l.b16 %v2416
    %v2553 = vunpack.c.l.b16 %v2417
    %v2554 = vunpack.c.l.b16 %v2418
    %v2555 = vunpack.c.l.b16 %v2419
    %v2556 = vunpack.c.l.b16 %v2420
    %v2557 = vunpack.c.l.b16 %v2421
    %v2558 = vunpack.c.l.b16 %v2422
    %v2559 = vunpack.c.l.b16 %v2423
    %v2560 = vunpack.c.l.b16 %v2424
    %v2561 = vunpack.c.l.b16 %v2425
    %v2562 = vunpack.c.l.b16 %v2426
    %v2563 = vunpack.c.l.b16 %v2427
    %v2564 = vunpack.c.l.b16 %v2428
    %v2565 = vunpack.c.l.b16 %v2429
    %v2566 = vunpack.c.l.b16 %v2430
    %v2567 = vunpack.c.l.b16 %v2431
    %v2568 = vunpack.c.l.b16 %v2432
    %v2569 = vunpack.c.l.b16 %v2433
    %v2570 = vunpack.c.l.b16 %v2434
    %v2571 = vunpack.c.l.b16 %v2435
    %v2572 = vunpack.c.l.b16 %v2436
    %v2573 = vunpack.c.l.b16 %v2437
    %v2574 = vunpack.c.l.b16 %v2438
    %v2575 = vunpack.c.l.b16 %v2439
    %v2576 = vunpack.c.l.b16 %v2440
    %v2577 = vunpack.c.l.b16 %v2441
    %v2578 = vunpack.c.l.b16 %v2442
    %v2579 = vunpack.c.l.b16 %v2443
    %v2580 = vunpack.c.l.b16 %v2444
    %v2581 = vunpack.c.l.b16 %v2445
    %v2582 = vunpack.c.l.b16 %v2446
    %v2583 = vunpack.c.l.b16 %v2447
    %v2584 = vunpack.c.l.b16 %v2448
    %v2585 = vunpack.c.l.b16 %v2449
    %v2586 = vunpack.c.l.b16 %v2450
    %v2587 = vunpack.c.l.b16 %v2451
    %v2588 = vunpack.c.l.b16 %v2452
    %v2589 = vunpack.c.l.b16 %v2453
    %v2590 = vunpack.c.l.b16 %v2454
    %v2591 = vunpack.c.l.b16 %v2455
    %v2592 = vunpack.c.l.b16 %v2456
    %v2593 = vpack.c.b16 %v2530, %v2529
    %v2594 = vpack.c.b16 %v2532, %v2531
    %v2595 = vpack.c.b16 %v2534, %v2533
    %v2596 = vpack.c.b16 %v2536, %v2535
    %v2597 = vpack.c.b16 %v2538, %v2537
    %v2598 = vpack.c.b16 %v2540, %v2539
    %v2599 = vpack.c.b16 %v2542, %v2541
    %v2600 = vpack.c.b16 %v2544, %v2543
    %v2601 = vpack.c.b16 %v2546, %v2545
    %v2602 = vpack.c.b16 %v2548, %v2547
    %v2603 = vpack.c.b16 %v2550, %v2549
    %v2604 = vpack.c.b16 %v2552, %v2551
    %v2605 = vpack.c.b16 %v2554, %v2553
    %v2606 = vpack.c.b16 %v2556, %v2555
    %v2607 = vpack.c.b16 %v2558, %v2557
    %v2608 = vpack.c.b16 %v2560, %v2559
    %v2609 = vpack.c.b16 %v2562, %v2561
    %v2610 = vpack.c.b16 %v2564, %v2563
    %v2611 = vpack.c.b16 %v2566, %v2565
    %v2612 = vpack.c.b16 %v2568, %v2567
    %v2613 = vpack.c.b16 %v2570, %v2569
    %v2614 = vpack.c.b16 %v2572, %v2571
    %v2615 = vpack.c.b16 %v2574, %v2573
    %v2616 = vpack.c.b16 %v2576, %v2575
    %v2617 = vpack.c.b16 %v2578, %v2577
    %v2618 = vpack.c.b16 %v2580, %v2579
    %v2619 = vpack.c.b16 %v2582, %v2581
    %v2620 = vpack.c.b16 %v2584, %v2583
    %v2621 = vpack.c.b16 %v2586, %v2585
    %v2622 = vpack.c.b16 %v2588, %v2587
    %v2623 = vpack.c.b16 %v2590, %v2589
    %v2624 = vpack.c.b16 %v2592, %v2591
    %2657 = vmatprep.subr.bf16.mxu0 0
    %2658 = vmatpush1.bf16.msra.mxu0 %v2600
    %2659 = vmatprep.subr.bf16.mxu0 0
    %2660 = vmatpush1.bf16.msra.mxu0 %v2599
    %2661 = vmatprep.subr.bf16.mxu0 0
    %2662 = vmatpush1.bf16.msra.mxu0 %v2598
    %2663 = vmatprep.subr.bf16.mxu0 0
    %2664 = vmatpush1.bf16.msra.mxu0 %v2597
    %2665 = vmatprep.subr.bf16.mxu0 0
    %2666 = vmatpush1.bf16.msra.mxu0 %v2596
    %2667 = vmatprep.subr.bf16.mxu0 0
    %2668 = vmatpush1.bf16.msra.mxu0 %v2595
    %2669 = vmatprep.subr.bf16.mxu0 0
    %2670 = vmatpush1.bf16.msra.mxu0 %v2594
    %2671 = vmatprep.subr.bf16.mxu0 0
    %2672 = vmatpush1.bf16.msra.mxu0 %v2593
    %2673 = vmatprep.subr.bf16.mxu0 0
    %2674 = vmatpush2.bf16.msra.mxu0 %v2608
    %2675 = vmatprep.subr.bf16.mxu0 0
    %2676 = vmatpush2.bf16.msra.mxu0 %v2607
    %2677 = vmatprep.subr.bf16.mxu0 0
    %2678 = vmatpush2.bf16.msra.mxu0 %v2606
    %2679 = vmatprep.subr.bf16.mxu0 0
    %2680 = vmatpush2.bf16.msra.mxu0 %v2605
    %2681 = vmatprep.subr.bf16.mxu0 0
    %2682 = vmatpush2.bf16.msra.mxu0 %v2604
    %2683 = vmatprep.subr.bf16.mxu0 0
    %2684 = vmatpush2.bf16.msra.mxu0 %v2603
    %2685 = vmatprep.subr.bf16.mxu0 0
    %2686 = vmatpush2.bf16.msra.mxu0 %v2602
    %2687 = vmatprep.subr.bf16.mxu0 0
    %2688 = vmatpush2.bf16.msra.mxu0 %v2601
    %2689 = vmatprep.mubr.bf16.mxu0 %v2389
    %2690 = vmatmul.mubr.bf16.gmra.mxu0 %v2388
    %v2691 = vpop.f32.mrf.mxu0
    %v2692 = vadd.f32 %v2463, %v2691
    %v2693 = vpop.f32.mrf.mxu0
    %v2694 = vpop.f32.mrf.mxu0
    %v2695 = vadd.f32 %v2463, %v2694
    %v2696 = vpop.f32.mrf.mxu0
    %2697 = vdwg.mxu0
    %2698 = vmatprep.subr.bf16.mxu0 0
    %2699 = vmatpush1.bf16.msra.mxu0 %v2616
    %2700 = vmatprep.subr.bf16.mxu0 0
    %2701 = vmatpush1.bf16.msra.mxu0 %v2615
    %2702 = vmatprep.subr.bf16.mxu0 0
    %2703 = vmatpush1.bf16.msra.mxu0 %v2614
    %2704 = vmatprep.subr.bf16.mxu0 0
    %2705 = vmatpush1.bf16.msra.mxu0 %v2613
    %2706 = vmatprep.subr.bf16.mxu0 0
    %2707 = vmatpush1.bf16.msra.mxu0 %v2612
    %2708 = vmatprep.subr.bf16.mxu0 0
    %2709 = vmatpush1.bf16.msra.mxu0 %v2611
    %2710 = vmatprep.subr.bf16.mxu0 0
    %2711 = vmatpush1.bf16.msra.mxu0 %v2610
    %2712 = vmatprep.subr.bf16.mxu0 0
    %2713 = vmatpush1.bf16.msra.mxu0 %v2609
    %2714 = vmatprep.subr.bf16.mxu0 0
    %2715 = vmatpush2.bf16.msra.mxu0 %v2624
    %2716 = vmatprep.subr.bf16.mxu0 0
    %2717 = vmatpush2.bf16.msra.mxu0 %v2623
    %2718 = vmatprep.subr.bf16.mxu0 0
    %2719 = vmatpush2.bf16.msra.mxu0 %v2622
    %2720 = vmatprep.subr.bf16.mxu0 0
    %2721 = vmatpush2.bf16.msra.mxu0 %v2621
    %2722 = vmatprep.subr.bf16.mxu0 0
    %2723 = vmatpush2.bf16.msra.mxu0 %v2620
    %2724 = vmatprep.subr.bf16.mxu0 0
    %2725 = vmatpush2.bf16.msra.mxu0 %v2619
    %2726 = vmatprep.subr.bf16.mxu0 0
    %2727 = vmatpush2.bf16.msra.mxu0 %v2618
    %2728 = vmatprep.subr.bf16.mxu0 0
    %2729 = vmatpush2.bf16.msra.mxu0 %v2617
    %2730 = vmatprep.mubr.bf16.mxu0 %v2391
    %2731 = vmatmul.mubr.bf16.gmra.mxu0 %v2390
    %v2732 = vpop.f32.mrf.mxu0
    %v2733 = vadd.f32 %v2692, %v2732
    %v2734 = vpop.f32.mrf.mxu0
    %v2735 = vpop.f32.mrf.mxu0
    %v2736 = vadd.f32 %v2695, %v2735
    %v2737 = vpop.f32.mrf.mxu0
    %2738 = vdwg.mxu0
    %v2739 = vadd.f32 %v2075, %v2733
    %v2740 = vadd.f32 %v2076, %v2736
    %s2741 = scalar_lea.vmem [#allocation14], 2
    %v2742 = vld [vmem:[%s2741] sm:$0x1]
    %s2743 = scalar_lea.vmem %s10, 2
    %v2744 = vld [vmem:[%s2743] sm:$0x1]
    %2745 = vadd.xlane.f32.xlu0 %v2739
    %v2746 = vpop.xlane.xlu0 %2745
    %2747 = vadd.xlane.f32.xlu0 %v2740
    %v2748 = vpop.xlane.xlu0 %2747
    %v2749 = vmul.f32 %v2746, %v298
    %v2750 = vmul.f32 %v2748, %v298
    %v2751 = vmul.f32 %v2739, %v2739
    %v2752 = vmul.f32 %v2740, %v2740
    %2753 = vadd.xlane.f32.xlu0 %v2751
    %v2754 = vpop.xlane.xlu0 %2753
    %2755 = vadd.xlane.f32.xlu0 %v2752
    %v2756 = vpop.xlane.xlu0 %2755
    %v2757 = vmul.f32 %v2754, %v298
    %v2758 = vmul.f32 %v2756, %v298
    %v2759 = vmul.f32 %v2749, %v2749
    %v2760 = vmul.f32 %v2750, %v2750
    %v2761 = vsub.f32 %v2757, %v2759
    %v2762 = vsub.f32 %v2758, %v2760
    %v2763 = vadd.f32 %v2761, 1e-05
    %v2764 = vadd.f32 %v2762, 1e-05
    %v2765 = vrsqrt.pop %v2763
    %v2766 = vrsqrt.pop %v2764
    %v2767 = vsub.f32 %v2739, %v2749
    %v2768 = vsub.f32 %v2740, %v2750
    %v2769 = vmul.f32 %v2767, %v2765
    %v2770 = vmul.f32 %v2768, %v2766
    %v2772 = vlaneseq
    %v2773 = vshrl.u32 %v2772, 7
    %v2774 = vsub.s32 0, %v2773
    %v2775 = vrot.slane %v2742, %v2774
    %v2777 = vmul.f32 %v2769, %v2775
    %v2778 = vmul.f32 %v2770, %v2775
    %v2780 = vlaneseq
    %v2781 = vshrl.u32 %v2780, 7
    %v2782 = vsub.s32 0, %v2781
    %v2783 = vrot.slane %v2744, %v2782
    %v2785 = vadd.f32 %v2777, %v2783
    %v2786 = vadd.f32 %v2778, %v2783
    %v2787 = vpack.c.bf16 %v2786, %v2785
    %s2788 = scalar_lea.vmem [#allocation5], 192
    %v2789 = vld [vmem:[%s2788] sm:$0xf]
    %v2790 = vld [vmem:[%s2788 + $0x4] sm:$0xf]
    %v2791 = vld [vmem:[%s2788 + $0x8] sm:$0xf]
    %v2792 = vld [vmem:[%s2788 + $0xc] sm:$0xf]
    %v2793 = vld [vmem:[%s2788 + $0x10] sm:$0xf]
    %v2794 = vld [vmem:[%s2788 + $0x14] sm:$0xf]
    %v2795 = vld [vmem:[%s2788 + $0x18] sm:$0xf]
    %v2796 = vld [vmem:[%s2788 + $0x1c] sm:$0xf]
    %v2797 = vld [vmem:[%s2788 + $0x20] sm:$0xf]
    %v2798 = vld [vmem:[%s2788 + $0x24] sm:$0xf]
    %v2799 = vld [vmem:[%s2788 + $0x28] sm:$0xf]
    %v2800 = vld [vmem:[%s2788 + $0x2c] sm:$0xf]
    %v2801 = vld [vmem:[%s2788 + $0x30] sm:$0xf]
    %v2802 = vld [vmem:[%s2788 + $0x34] sm:$0xf]
    %v2803 = vld [vmem:[%s2788 + $0x38] sm:$0xf]
    %v2804 = vld [vmem:[%s2788 + $0x3c] sm:$0xf]
    %s2805 = scalar_lea.vmem [#allocation7], 3
    %v2806 = vld [vmem:[%s2805] sm:$0x1]
    %v2808 = vlaneseq
    %v2809 = vshrl.u32 %v2808, 7
    %v2810 = vsub.s32 0, %v2809
    %v2811 = vrot.slane %v2806, %v2810
    %v2829 = vunpack.c.l.b16 %v2789
    %v2830 = vunpack.c.l.b16 %v2790
    %v2831 = vunpack.c.l.b16 %v2791
    %v2832 = vunpack.c.l.b16 %v2792
    %v2833 = vunpack.c.l.b16 %v2793
    %v2834 = vunpack.c.l.b16 %v2794
    %v2835 = vunpack.c.l.b16 %v2795
    %v2836 = vunpack.c.l.b16 %v2796
    %v2837 = vunpack.c.l.b16 %v2797
    %v2838 = vunpack.c.l.b16 %v2798
    %v2839 = vunpack.c.l.b16 %v2799
    %v2840 = vunpack.c.l.b16 %v2800
    %v2841 = vunpack.c.l.b16 %v2801
    %v2842 = vunpack.c.l.b16 %v2802
    %v2843 = vunpack.c.l.b16 %v2803
    %v2844 = vunpack.c.l.b16 %v2804
    %v2845 = vpack.c.b16 %v2830, %v2829
    %v2846 = vpack.c.b16 %v2832, %v2831
    %v2847 = vpack.c.b16 %v2834, %v2833
    %v2848 = vpack.c.b16 %v2836, %v2835
    %v2849 = vpack.c.b16 %v2838, %v2837
    %v2850 = vpack.c.b16 %v2840, %v2839
    %v2851 = vpack.c.b16 %v2842, %v2841
    %v2852 = vpack.c.b16 %v2844, %v2843
    %2861 = vmatprep.subr.bf16.mxu0 0
    %2862 = vmatpush1.bf16.msra.mxu0 %v2852
    %2863 = vmatprep.subr.bf16.mxu0 0
    %2864 = vmatpush1.bf16.msra.mxu0 %v2851
    %2865 = vmatprep.subr.bf16.mxu0 0
    %2866 = vmatpush1.bf16.msra.mxu0 %v2850
    %2867 = vmatprep.subr.bf16.mxu0 0
    %2868 = vmatpush1.bf16.msra.mxu0 %v2849
    %2869 = vmatprep.subr.bf16.mxu0 0
    %2870 = vmatpush1.bf16.msra.mxu0 %v2848
    %2871 = vmatprep.subr.bf16.mxu0 0
    %2872 = vmatpush1.bf16.msra.mxu0 %v2847
    %2873 = vmatprep.subr.bf16.mxu0 0
    %2874 = vmatpush1.bf16.msra.mxu0 %v2846
    %2875 = vmatprep.subr.bf16.mxu0 0
    %2876 = vmatpush1.bf16.msra.mxu0 %v2845
    %2877 = vmatprep.subr.bf16.mxu0 0
    %2878 = vmatpush2.bf16.msra.mxu0 0
    %2879 = vmatprep.subr.bf16.mxu0 0
    %2880 = vmatpush2.bf16.msra.mxu0 0
    %2881 = vmatprep.subr.bf16.mxu0 0
    %2882 = vmatpush2.bf16.msra.mxu0 0
    %2883 = vmatprep.subr.bf16.mxu0 0
    %2884 = vmatpush2.bf16.msra.mxu0 0
    %2885 = vmatprep.subr.bf16.mxu0 0
    %2886 = vmatpush2.bf16.msra.mxu0 0
    %2887 = vmatprep.subr.bf16.mxu0 0
    %2888 = vmatpush2.bf16.msra.mxu0 0
    %2889 = vmatprep.subr.bf16.mxu0 0
    %2890 = vmatpush2.bf16.msra.mxu0 0
    %2891 = vmatprep.subr.bf16.mxu0 0
    %2892 = vmatpush2.bf16.msra.mxu0 0
    %2893 = vmatprep.mubr.bf16.mxu0 0
    %2894 = vmatmul.mubr.bf16.gmra.mxu0 %v2787
    %v2895 = vpop.f32.mrf.mxu0
    %v2896 = vadd.f32 %v2811, %v2895
    %v2897 = vpop.f32.mrf.mxu0
    %v2898 = vpop.f32.mrf.mxu0
    %v2899 = vadd.f32 %v2811, %v2898
    %v2900 = vpop.f32.mrf.mxu0
    %2901 = vdwg.mxu0
    %v2902 = vadd.f32 %v2785, %v2896
    %v2903 = vadd.f32 %v2786, %v2899
    %s2904 = scalar_lea.vmem %s3, 3
    %v2905 = vld [vmem:[%s2904] sm:$0x1]
    %s2906 = scalar_lea.vmem [#allocation8], 3
    %v2907 = vld [vmem:[%s2906] sm:$0x1]
    %2908 = vadd.xlane.f32.xlu0 %v2902
    %v2909 = vpop.xlane.xlu0 %2908
    %2910 = vadd.xlane.f32.xlu0 %v2903
    %v2911 = vpop.xlane.xlu0 %2910
    %v2912 = vmul.f32 %v2909, %v298
    %v2913 = vmul.f32 %v2911, %v298
    %v2914 = vmul.f32 %v2902, %v2902
    %v2915 = vmul.f32 %v2903, %v2903
    %2916 = vadd.xlane.f32.xlu0 %v2914
    %v2917 = vpop.xlane.xlu0 %2916
    %2918 = vadd.xlane.f32.xlu0 %v2915
    %v2919 = vpop.xlane.xlu0 %2918
    %v2920 = vmul.f32 %v2917, %v298
    %v2921 = vmul.f32 %v2919, %v298
    %v2922 = vmul.f32 %v2912, %v2912
    %v2923 = vmul.f32 %v2913, %v2913
    %v2924 = vsub.f32 %v2920, %v2922
    %v2925 = vsub.f32 %v2921, %v2923
    %v2926 = vadd.f32 %v2924, 1e-05
    %v2927 = vadd.f32 %v2925, 1e-05
    %v2928 = vrsqrt.pop %v2926
    %v2929 = vrsqrt.pop %v2927
    %v2930 = vsub.f32 %v2902, %v2912
    %v2931 = vsub.f32 %v2903, %v2913
    %v2932 = vmul.f32 %v2930, %v2928
    %v2933 = vmul.f32 %v2931, %v2929
    %v2935 = vlaneseq
    %v2936 = vshrl.u32 %v2935, 7
    %v2937 = vsub.s32 0, %v2936
    %v2938 = vrot.slane %v2905, %v2937
    %v2940 = vmul.f32 %v2932, %v2938
    %v2941 = vmul.f32 %v2933, %v2938
    %v2943 = vlaneseq
    %v2944 = vshrl.u32 %v2943, 7
    %v2945 = vsub.s32 0, %v2944
    %v2946 = vrot.slane %v2907, %v2945
    %v2948 = vadd.f32 %v2940, %v2946
    %v2949 = vadd.f32 %v2941, %v2946
    %v2950 = vpack.c.bf16 %v2949, %v2948
    %s2951 = scalar_lea.vmem [#allocation10], 768
    %v2952 = vld [vmem:[%s2951] sm:$0xff]
    %v2953 = vld [vmem:[%s2951 + $0x8] sm:$0xff]
    %v2954 = vld [vmem:[%s2951 + $0x10] sm:$0xff]
    %v2955 = vld [vmem:[%s2951 + $0x18] sm:$0xff]
    %v2956 = vld [vmem:[%s2951 + $0x20] sm:$0xff]
    %v2957 = vld [vmem:[%s2951 + $0x28] sm:$0xff]
    %v2958 = vld [vmem:[%s2951 + $0x30] sm:$0xff]
    %v2959 = vld [vmem:[%s2951 + $0x38] sm:$0xff]
    %v2960 = vld [vmem:[%s2951 + $0x40] sm:$0xff]
    %v2961 = vld [vmem:[%s2951 + $0x48] sm:$0xff]
    %v2962 = vld [vmem:[%s2951 + $0x50] sm:$0xff]
    %v2963 = vld [vmem:[%s2951 + $0x58] sm:$0xff]
    %v2964 = vld [vmem:[%s2951 + $0x60] sm:$0xff]
    %v2965 = vld [vmem:[%s2951 + $0x68] sm:$0xff]
    %v2966 = vld [vmem:[%s2951 + $0x70] sm:$0xff]
    %v2967 = vld [vmem:[%s2951 + $0x78] sm:$0xff]
    %v2968 = vld [vmem:[%s2951 + $0x80] sm:$0xff]
    %v2969 = vld [vmem:[%s2951 + $0x88] sm:$0xff]
    %v2970 = vld [vmem:[%s2951 + $0x90] sm:$0xff]
    %v2971 = vld [vmem:[%s2951 + $0x98] sm:$0xff]
    %v2972 = vld [vmem:[%s2951 + $0xa0] sm:$0xff]
    %v2973 = vld [vmem:[%s2951 + $0xa8] sm:$0xff]
    %v2974 = vld [vmem:[%s2951 + $0xb0] sm:$0xff]
    %v2975 = vld [vmem:[%s2951 + $0xb8] sm:$0xff]
    %v2976 = vld [vmem:[%s2951 + $0xc0] sm:$0xff]
    %v2977 = vld [vmem:[%s2951 + $0xc8] sm:$0xff]
    %v2978 = vld [vmem:[%s2951 + $0xd0] sm:$0xff]
    %v2979 = vld [vmem:[%s2951 + $0xd8] sm:$0xff]
    %v2980 = vld [vmem:[%s2951 + $0xe0] sm:$0xff]
    %v2981 = vld [vmem:[%s2951 + $0xe8] sm:$0xff]
    %v2982 = vld [vmem:[%s2951 + $0xf0] sm:$0xff]
    %v2983 = vld [vmem:[%s2951 + $0xf8] sm:$0xff]
    %s2984 = scalar_lea.vmem [#allocation11], 12
    %v2985 = vld [vmem:[%s2984] sm:$0xf]
    %v2987 = vlaneseq
    %v2988 = vshrl.u32 %v2987, 7
    %v2989 = vsub.s32 0, %v2988
    %v2990 = vrot.slane %v2985, %v2989
    %v2991 = vlaneseq
    %v2992 = vshrl.u32 %v2991, 7
    %v2993 = vsub.s32 1, %v2992
    %v2994 = vrot.slane %v2985, %v2993
    %v2995 = vlaneseq
    %v2996 = vshrl.u32 %v2995, 7
    %v2997 = vsub.s32 2, %v2996
    %v2998 = vrot.slane %v2985, %v2997
    %v2999 = vlaneseq
    %v3000 = vshrl.u32 %v2999, 7
    %v3001 = vsub.s32 3, %v3000
    %v3002 = vrot.slane %v2985, %v3001
    %v3039 = vunpack.c.l.b16 %v2952
    %v3040 = vunpack.c.h.b16 %v2952
    %v3041 = vunpack.c.l.b16 %v2953
    %v3042 = vunpack.c.h.b16 %v2953
    %v3043 = vunpack.c.l.b16 %v2954
    %v3044 = vunpack.c.h.b16 %v2954
    %v3045 = vunpack.c.l.b16 %v2955
    %v3046 = vunpack.c.h.b16 %v2955
    %v3047 = vunpack.c.l.b16 %v2956
    %v3048 = vunpack.c.h.b16 %v2956
    %v3049 = vunpack.c.l.b16 %v2957
    %v3050 = vunpack.c.h.b16 %v2957
    %v3051 = vunpack.c.l.b16 %v2958
    %v3052 = vunpack.c.h.b16 %v2958
    %v3053 = vunpack.c.l.b16 %v2959
    %v3054 = vunpack.c.h.b16 %v2959
    %v3055 = vunpack.c.l.b16 %v2960
    %v3056 = vunpack.c.h.b16 %v2960
    %v3057 = vunpack.c.l.b16 %v2961
    %v3058 = vunpack.c.h.b16 %v2961
    %v3059 = vunpack.c.l.b16 %v2962
    %v3060 = vunpack.c.h.b16 %v2962
    %v3061 = vunpack.c.l.b16 %v2963
    %v3062 = vunpack.c.h.b16 %v2963
    %v3063 = vunpack.c.l.b16 %v2964
    %v3064 = vunpack.c.h.b16 %v2964
    %v3065 = vunpack.c.l.b16 %v2965
    %v3066 = vunpack.c.h.b16 %v2965
    %v3067 = vunpack.c.l.b16 %v2966
    %v3068 = vunpack.c.h.b16 %v2966
    %v3069 = vunpack.c.l.b16 %v2967
    %v3070 = vunpack.c.h.b16 %v2967
    %v3071 = vunpack.c.l.b16 %v2968
    %v3072 = vunpack.c.h.b16 %v2968
    %v3073 = vunpack.c.l.b16 %v2969
    %v3074 = vunpack.c.h.b16 %v2969
    %v3075 = vunpack.c.l.b16 %v2970
    %v3076 = vunpack.c.h.b16 %v2970
    %v3077 = vunpack.c.l.b16 %v2971
    %v3078 = vunpack.c.h.b16 %v2971
    %v3079 = vunpack.c.l.b16 %v2972
    %v3080 = vunpack.c.h.b16 %v2972
    %v3081 = vunpack.c.l.b16 %v2973
    %v3082 = vunpack.c.h.b16 %v2973
    %v3083 = vunpack.c.l.b16 %v2974
    %v3084 = vunpack.c.h.b16 %v2974
    %v3085 = vunpack.c.l.b16 %v2975
    %v3086 = vunpack.c.h.b16 %v2975
    %v3087 = vunpack.c.l.b16 %v2976
    %v3088 = vunpack.c.h.b16 %v2976
    %v3089 = vunpack.c.l.b16 %v2977
    %v3090 = vunpack.c.h.b16 %v2977
    %v3091 = vunpack.c.l.b16 %v2978
    %v3092 = vunpack.c.h.b16 %v2978
    %v3093 = vunpack.c.l.b16 %v2979
    %v3094 = vunpack.c.h.b16 %v2979
    %v3095 = vunpack.c.l.b16 %v2980
    %v3096 = vunpack.c.h.b16 %v2980
    %v3097 = vunpack.c.l.b16 %v2981
    %v3098 = vunpack.c.h.b16 %v2981
    %v3099 = vunpack.c.l.b16 %v2982
    %v3100 = vunpack.c.h.b16 %v2982
    %v3101 = vunpack.c.l.b16 %v2983
    %v3102 = vunpack.c.h.b16 %v2983
    %v3103 = vpack.c.b16 %v3043, %v3039
    %v3104 = vpack.c.b16 %v3044, %v3040
    %v3105 = vpack.c.b16 %v3045, %v3041
    %v3106 = vpack.c.b16 %v3046, %v3042
    %v3107 = vpack.c.b16 %v3051, %v3047
    %v3108 = vpack.c.b16 %v3052, %v3048
    %v3109 = vpack.c.b16 %v3053, %v3049
    %v3110 = vpack.c.b16 %v3054, %v3050
    %v3111 = vpack.c.b16 %v3059, %v3055
    %v3112 = vpack.c.b16 %v3060, %v3056
    %v3113 = vpack.c.b16 %v3061, %v3057
    %v3114 = vpack.c.b16 %v3062, %v3058
    %v3115 = vpack.c.b16 %v3067, %v3063
    %v3116 = vpack.c.b16 %v3068, %v3064
    %v3117 = vpack.c.b16 %v3069, %v3065
    %v3118 = vpack.c.b16 %v3070, %v3066
    %v3119 = vpack.c.b16 %v3075, %v3071
    %v3120 = vpack.c.b16 %v3076, %v3072
    %v3121 = vpack.c.b16 %v3077, %v3073
    %v3122 = vpack.c.b16 %v3078, %v3074
    %v3123 = vpack.c.b16 %v3083, %v3079
    %v3124 = vpack.c.b16 %v3084, %v3080
    %v3125 = vpack.c.b16 %v3085, %v3081
    %v3126 = vpack.c.b16 %v3086, %v3082
    %v3127 = vpack.c.b16 %v3091, %v3087
    %v3128 = vpack.c.b16 %v3092, %v3088
    %v3129 = vpack.c.b16 %v3093, %v3089
    %v3130 = vpack.c.b16 %v3094, %v3090
    %v3131 = vpack.c.b16 %v3099, %v3095
    %v3132 = vpack.c.b16 %v3100, %v3096
    %v3133 = vpack.c.b16 %v3101, %v3097
    %v3134 = vpack.c.b16 %v3102, %v3098
    %3167 = vmatprep.subr.bf16.mxu0 %v3132
    %3168 = vmatpush1.bf16.msra.mxu0 %v3131
    %3169 = vmatprep.subr.bf16.mxu0 %v3128
    %3170 = vmatpush1.bf16.msra.mxu0 %v3127
    %3171 = vmatprep.subr.bf16.mxu0 %v3124
    %3172 = vmatpush1.bf16.msra.mxu0 %v3123
    %3173 = vmatprep.subr.bf16.mxu0 %v3120
    %3174 = vmatpush1.bf16.msra.mxu0 %v3119
    %3175 = vmatprep.subr.bf16.mxu0 %v3116
    %3176 = vmatpush1.bf16.msra.mxu0 %v3115
    %3177 = vmatprep.subr.bf16.mxu0 %v3112
    %3178 = vmatpush1.bf16.msra.mxu0 %v3111
    %3179 = vmatprep.subr.bf16.mxu0 %v3108
    %3180 = vmatpush1.bf16.msra.mxu0 %v3107
    %3181 = vmatprep.subr.bf16.mxu0 %v3104
    %3182 = vmatpush1.bf16.msra.mxu0 %v3103
    %3183 = vmatprep.subr.bf16.mxu0 0
    %3184 = vmatpush2.bf16.msra.mxu0 0
    %3185 = vmatprep.subr.bf16.mxu0 0
    %3186 = vmatpush2.bf16.msra.mxu0 0
    %3187 = vmatprep.subr.bf16.mxu0 0
    %3188 = vmatpush2.bf16.msra.mxu0 0
    %3189 = vmatprep.subr.bf16.mxu0 0
    %3190 = vmatpush2.bf16.msra.mxu0 0
    %3191 = vmatprep.subr.bf16.mxu0 0
    %3192 = vmatpush2.bf16.msra.mxu0 0
    %3193 = vmatprep.subr.bf16.mxu0 0
    %3194 = vmatpush2.bf16.msra.mxu0 0
    %3195 = vmatprep.subr.bf16.mxu0 0
    %3196 = vmatpush2.bf16.msra.mxu0 0
    %3197 = vmatprep.subr.bf16.mxu0 0
    %3198 = vmatpush2.bf16.msra.mxu0 0
    %3199 = vmatprep.mubr.bf16.mxu0 0
    %3200 = vmatmul.mubr.bf16.gmra.mxu0 %v2950
    %v3201 = vpop.f32.mrf.mxu0
    %v3202 = vadd.f32 %v2990, %v3201
    %v3203 = vpop.f32.mrf.mxu0
    %v3204 = vadd.f32 %v2994, %v3203
    %v3205 = vpop.f32.mrf.mxu0
    %v3206 = vadd.f32 %v2990, %v3205
    %v3207 = vpop.f32.mrf.mxu0
    %v3208 = vadd.f32 %v2994, %v3207
    %3209 = vdwg.mxu0
    %3210 = vmatprep.subr.bf16.mxu0 %v3134
    %3211 = vmatpush1.bf16.msra.mxu0 %v3133
    %3212 = vmatprep.subr.bf16.mxu0 %v3130
    %3213 = vmatpush1.bf16.msra.mxu0 %v3129
    %3214 = vmatprep.subr.bf16.mxu0 %v3126
    %3215 = vmatpush1.bf16.msra.mxu0 %v3125
    %3216 = vmatprep.subr.bf16.mxu0 %v3122
    %3217 = vmatpush1.bf16.msra.mxu0 %v3121
    %3218 = vmatprep.subr.bf16.mxu0 %v3118
    %3219 = vmatpush1.bf16.msra.mxu0 %v3117
    %3220 = vmatprep.subr.bf16.mxu0 %v3114
    %3221 = vmatpush1.bf16.msra.mxu0 %v3113
    %3222 = vmatprep.subr.bf16.mxu0 %v3110
    %3223 = vmatpush1.bf16.msra.mxu0 %v3109
    %3224 = vmatprep.subr.bf16.mxu0 %v3106
    %3225 = vmatpush1.bf16.msra.mxu0 %v3105
    %3226 = vmatprep.subr.bf16.mxu0 0
    %3227 = vmatpush2.bf16.msra.mxu0 0
    %3228 = vmatprep.subr.bf16.mxu0 0
    %3229 = vmatpush2.bf16.msra.mxu0 0
    %3230 = vmatprep.subr.bf16.mxu0 0
    %3231 = vmatpush2.bf16.msra.mxu0 0
    %3232 = vmatprep.subr.bf16.mxu0 0
    %3233 = vmatpush2.bf16.msra.mxu0 0
    %3234 = vmatprep.subr.bf16.mxu0 0
    %3235 = vmatpush2.bf16.msra.mxu0 0
    %3236 = vmatprep.subr.bf16.mxu0 0
    %3237 = vmatpush2.bf16.msra.mxu0 0
    %3238 = vmatprep.subr.bf16.mxu0 0
    %3239 = vmatpush2.bf16.msra.mxu0 0
    %3240 = vmatprep.subr.bf16.mxu0 0
    %3241 = vmatpush2.bf16.msra.mxu0 0
    %3242 = vmatprep.mubr.bf16.mxu0 0
    %3243 = vmatmul.mubr.bf16.gmra.mxu0 %v2950
    %v3244 = vpop.f32.mrf.mxu0
    %v3245 = vadd.f32 %v2998, %v3244
    %v3246 = vpop.f32.mrf.mxu0
    %v3247 = vadd.f32 %v3002, %v3246
    %v3248 = vpop.f32.mrf.mxu0
    %v3249 = vadd.f32 %v2998, %v3248
    %v3250 = vpop.f32.mrf.mxu0
    %v3251 = vadd.f32 %v3002, %v3250
    %3252 = vdwg.mxu0
    %v3253 = vmax.f32 %v3202, 0.0
    %v3254 = vmax.f32 %v3204, 0.0
    %v3255 = vmax.f32 %v3245, 0.0
    %v3256 = vmax.f32 %v3247, 0.0
    %v3257 = vmax.f32 %v3206, 0.0
    %v3258 = vmax.f32 %v3208, 0.0
    %v3259 = vmax.f32 %v3249, 0.0
    %v3260 = vmax.f32 %v3251, 0.0
    %v3261 = vpack.c.bf16 %v3257, %v3253
    %v3262 = vpack.c.bf16 %v3258, %v3254
    %v3263 = vpack.c.bf16 %v3259, %v3255
    %v3264 = vpack.c.bf16 %v3260, %v3256
    %s3265 = scalar_lea.vmem [#allocation13], 768
    %v3266 = vld [vmem:[%s3265] sm:$0xf]
    %v3267 = vld [vmem:[%s3265 + $0x4] sm:$0xf]
    %v3268 = vld [vmem:[%s3265 + $0x8] sm:$0xf]
    %v3269 = vld [vmem:[%s3265 + $0xc] sm:$0xf]
    %v3270 = vld [vmem:[%s3265 + $0x10] sm:$0xf]
    %v3271 = vld [vmem:[%s3265 + $0x14] sm:$0xf]
    %v3272 = vld [vmem:[%s3265 + $0x18] sm:$0xf]
    %v3273 = vld [vmem:[%s3265 + $0x1c] sm:$0xf]
    %v3274 = vld [vmem:[%s3265 + $0x20] sm:$0xf]
    %v3275 = vld [vmem:[%s3265 + $0x24] sm:$0xf]
    %v3276 = vld [vmem:[%s3265 + $0x28] sm:$0xf]
    %v3277 = vld [vmem:[%s3265 + $0x2c] sm:$0xf]
    %v3278 = vld [vmem:[%s3265 + $0x30] sm:$0xf]
    %v3279 = vld [vmem:[%s3265 + $0x34] sm:$0xf]
    %v3280 = vld [vmem:[%s3265 + $0x38] sm:$0xf]
    %v3281 = vld [vmem:[%s3265 + $0x3c] sm:$0xf]
    %v3282 = vld [vmem:[%s3265 + $0x40] sm:$0xf]
    %v3283 = vld [vmem:[%s3265 + $0x44] sm:$0xf]
    %v3284 = vld [vmem:[%s3265 + $0x48] sm:$0xf]
    %v3285 = vld [vmem:[%s3265 + $0x4c] sm:$0xf]
    %v3286 = vld [vmem:[%s3265 + $0x50] sm:$0xf]
    %v3287 = vld [vmem:[%s3265 + $0x54] sm:$0xf]
    %v3288 = vld [vmem:[%s3265 + $0x58] sm:$0xf]
    %v3289 = vld [vmem:[%s3265 + $0x5c] sm:$0xf]
    %v3290 = vld [vmem:[%s3265 + $0x60] sm:$0xf]
    %v3291 = vld [vmem:[%s3265 + $0x64] sm:$0xf]
    %v3292 = vld [vmem:[%s3265 + $0x68] sm:$0xf]
    %v3293 = vld [vmem:[%s3265 + $0x6c] sm:$0xf]
    %v3294 = vld [vmem:[%s3265 + $0x70] sm:$0xf]
    %v3295 = vld [vmem:[%s3265 + $0x74] sm:$0xf]
    %v3296 = vld [vmem:[%s3265 + $0x78] sm:$0xf]
    %v3297 = vld [vmem:[%s3265 + $0x7c] sm:$0xf]
    %v3298 = vld [vmem:[%s3265 + $0x80] sm:$0xf]
    %v3299 = vld [vmem:[%s3265 + $0x84] sm:$0xf]
    %v3300 = vld [vmem:[%s3265 + $0x88] sm:$0xf]
    %v3301 = vld [vmem:[%s3265 + $0x8c] sm:$0xf]
    %v3302 = vld [vmem:[%s3265 + $0x90] sm:$0xf]
    %v3303 = vld [vmem:[%s3265 + $0x94] sm:$0xf]
    %v3304 = vld [vmem:[%s3265 + $0x98] sm:$0xf]
    %v3305 = vld [vmem:[%s3265 + $0x9c] sm:$0xf]
    %v3306 = vld [vmem:[%s3265 + $0xa0] sm:$0xf]
    %v3307 = vld [vmem:[%s3265 + $0xa4] sm:$0xf]
    %v3308 = vld [vmem:[%s3265 + $0xa8] sm:$0xf]
    %v3309 = vld [vmem:[%s3265 + $0xac] sm:$0xf]
    %v3310 = vld [vmem:[%s3265 + $0xb0] sm:$0xf]
    %v3311 = vld [vmem:[%s3265 + $0xb4] sm:$0xf]
    %v3312 = vld [vmem:[%s3265 + $0xb8] sm:$0xf]
    %v3313 = vld [vmem:[%s3265 + $0xbc] sm:$0xf]
    %v3314 = vld [vmem:[%s3265 + $0xc0] sm:$0xf]
    %v3315 = vld [vmem:[%s3265 + $0xc4] sm:$0xf]
    %v3316 = vld [vmem:[%s3265 + $0xc8] sm:$0xf]
    %v3317 = vld [vmem:[%s3265 + $0xcc] sm:$0xf]
    %v3318 = vld [vmem:[%s3265 + $0xd0] sm:$0xf]
    %v3319 = vld [vmem:[%s3265 + $0xd4] sm:$0xf]
    %v3320 = vld [vmem:[%s3265 + $0xd8] sm:$0xf]
    %v3321 = vld [vmem:[%s3265 + $0xdc] sm:$0xf]
    %v3322 = vld [vmem:[%s3265 + $0xe0] sm:$0xf]
    %v3323 = vld [vmem:[%s3265 + $0xe4] sm:$0xf]
    %v3324 = vld [vmem:[%s3265 + $0xe8] sm:$0xf]
    %v3325 = vld [vmem:[%s3265 + $0xec] sm:$0xf]
    %v3326 = vld [vmem:[%s3265 + $0xf0] sm:$0xf]
    %v3327 = vld [vmem:[%s3265 + $0xf4] sm:$0xf]
    %v3328 = vld [vmem:[%s3265 + $0xf8] sm:$0xf]
    %v3329 = vld [vmem:[%s3265 + $0xfc] sm:$0xf]
    %s3330 = scalar_lea.vmem %s8, 3
    %v3331 = vld [vmem:[%s3330] sm:$0x1]
    %v3333 = vlaneseq
    %v3334 = vshrl.u32 %v3333, 7
    %v3335 = vsub.s32 0, %v3334
    %v3336 = vrot.slane %v3331, %v3335
    %v3402 = vunpack.c.l.b16 %v3266
    %v3403 = vunpack.c.l.b16 %v3267
    %v3404 = vunpack.c.l.b16 %v3268
    %v3405 = vunpack.c.l.b16 %v3269
    %v3406 = vunpack.c.l.b16 %v3270
    %v3407 = vunpack.c.l.b16 %v3271
    %v3408 = vunpack.c.l.b16 %v3272
    %v3409 = vunpack.c.l.b16 %v3273
    %v3410 = vunpack.c.l.b16 %v3274
    %v3411 = vunpack.c.l.b16 %v3275
    %v3412 = vunpack.c.l.b16 %v3276
    %v3413 = vunpack.c.l.b16 %v3277
    %v3414 = vunpack.c.l.b16 %v3278
    %v3415 = vunpack.c.l.b16 %v3279
    %v3416 = vunpack.c.l.b16 %v3280
    %v3417 = vunpack.c.l.b16 %v3281
    %v3418 = vunpack.c.l.b16 %v3282
    %v3419 = vunpack.c.l.b16 %v3283
    %v3420 = vunpack.c.l.b16 %v3284
    %v3421 = vunpack.c.l.b16 %v3285
    %v3422 = vunpack.c.l.b16 %v3286
    %v3423 = vunpack.c.l.b16 %v3287
    %v3424 = vunpack.c.l.b16 %v3288
    %v3425 = vunpack.c.l.b16 %v3289
    %v3426 = vunpack.c.l.b16 %v3290
    %v3427 = vunpack.c.l.b16 %v3291
    %v3428 = vunpack.c.l.b16 %v3292
    %v3429 = vunpack.c.l.b16 %v3293
    %v3430 = vunpack.c.l.b16 %v3294
    %v3431 = vunpack.c.l.b16 %v3295
    %v3432 = vunpack.c.l.b16 %v3296
    %v3433 = vunpack.c.l.b16 %v3297
    %v3434 = vunpack.c.l.b16 %v3298
    %v3435 = vunpack.c.l.b16 %v3299
    %v3436 = vunpack.c.l.b16 %v3300
    %v3437 = vunpack.c.l.b16 %v3301
    %v3438 = vunpack.c.l.b16 %v3302
    %v3439 = vunpack.c.l.b16 %v3303
    %v3440 = vunpack.c.l.b16 %v3304
    %v3441 = vunpack.c.l.b16 %v3305
    %v3442 = vunpack.c.l.b16 %v3306
    %v3443 = vunpack.c.l.b16 %v3307
    %v3444 = vunpack.c.l.b16 %v3308
    %v3445 = vunpack.c.l.b16 %v3309
    %v3446 = vunpack.c.l.b16 %v3310
    %v3447 = vunpack.c.l.b16 %v3311
    %v3448 = vunpack.c.l.b16 %v3312
    %v3449 = vunpack.c.l.b16 %v3313
    %v3450 = vunpack.c.l.b16 %v3314
    %v3451 = vunpack.c.l.b16 %v3315
    %v3452 = vunpack.c.l.b16 %v3316
    %v3453 = vunpack.c.l.b16 %v3317
    %v3454 = vunpack.c.l.b16 %v3318
    %v3455 = vunpack.c.l.b16 %v3319
    %v3456 = vunpack.c.l.b16 %v3320
    %v3457 = vunpack.c.l.b16 %v3321
    %v3458 = vunpack.c.l.b16 %v3322
    %v3459 = vunpack.c.l.b16 %v3323
    %v3460 = vunpack.c.l.b16 %v3324
    %v3461 = vunpack.c.l.b16 %v3325
    %v3462 = vunpack.c.l.b16 %v3326
    %v3463 = vunpack.c.l.b16 %v3327
    %v3464 = vunpack.c.l.b16 %v3328
    %v3465 = vunpack.c.l.b16 %v3329
    %v3466 = vpack.c.b16 %v3403, %v3402
    %v3467 = vpack.c.b16 %v3405, %v3404
    %v3468 = vpack.c.b16 %v3407, %v3406
    %v3469 = vpack.c.b16 %v3409, %v3408
    %v3470 = vpack.c.b16 %v3411, %v3410
    %v3471 = vpack.c.b16 %v3413, %v3412
    %v3472 = vpack.c.b16 %v3415, %v3414
    %v3473 = vpack.c.b16 %v3417, %v3416
    %v3474 = vpack.c.b16 %v3419, %v3418
    %v3475 = vpack.c.b16 %v3421, %v3420
    %v3476 = vpack.c.b16 %v3423, %v3422
    %v3477 = vpack.c.b16 %v3425, %v3424
    %v3478 = vpack.c.b16 %v3427, %v3426
    %v3479 = vpack.c.b16 %v3429, %v3428
    %v3480 = vpack.c.b16 %v3431, %v3430
    %v3481 = vpack.c.b16 %v3433, %v3432
    %v3482 = vpack.c.b16 %v3435, %v3434
    %v3483 = vpack.c.b16 %v3437, %v3436
    %v3484 = vpack.c.b16 %v3439, %v3438
    %v3485 = vpack.c.b16 %v3441, %v3440
    %v3486 = vpack.c.b16 %v3443, %v3442
    %v3487 = vpack.c.b16 %v3445, %v3444
    %v3488 = vpack.c.b16 %v3447, %v3446
    %v3489 = vpack.c.b16 %v3449, %v3448
    %v3490 = vpack.c.b16 %v3451, %v3450
    %v3491 = vpack.c.b16 %v3453, %v3452
    %v3492 = vpack.c.b16 %v3455, %v3454
    %v3493 = vpack.c.b16 %v3457, %v3456
    %v3494 = vpack.c.b16 %v3459, %v3458
    %v3495 = vpack.c.b16 %v3461, %v3460
    %v3496 = vpack.c.b16 %v3463, %v3462
    %v3497 = vpack.c.b16 %v3465, %v3464
    %3530 = vmatprep.subr.bf16.mxu0 0
    %3531 = vmatpush1.bf16.msra.mxu0 %v3473
    %3532 = vmatprep.subr.bf16.mxu0 0
    %3533 = vmatpush1.bf16.msra.mxu0 %v3472
    %3534 = vmatprep.subr.bf16.mxu0 0
    %3535 = vmatpush1.bf16.msra.mxu0 %v3471
    %3536 = vmatprep.subr.bf16.mxu0 0
    %3537 = vmatpush1.bf16.msra.mxu0 %v3470
    %3538 = vmatprep.subr.bf16.mxu0 0
    %3539 = vmatpush1.bf16.msra.mxu0 %v3469
    %3540 = vmatprep.subr.bf16.mxu0 0
    %3541 = vmatpush1.bf16.msra.mxu0 %v3468
    %3542 = vmatprep.subr.bf16.mxu0 0
    %3543 = vmatpush1.bf16.msra.mxu0 %v3467
    %3544 = vmatprep.subr.bf16.mxu0 0
    %3545 = vmatpush1.bf16.msra.mxu0 %v3466
    %3546 = vmatprep.subr.bf16.mxu0 0
    %3547 = vmatpush2.bf16.msra.mxu0 %v3481
    %3548 = vmatprep.subr.bf16.mxu0 0
    %3549 = vmatpush2.bf16.msra.mxu0 %v3480
    %3550 = vmatprep.subr.bf16.mxu0 0
    %3551 = vmatpush2.bf16.msra.mxu0 %v3479
    %3552 = vmatprep.subr.bf16.mxu0 0
    %3553 = vmatpush2.bf16.msra.mxu0 %v3478
    %3554 = vmatprep.subr.bf16.mxu0 0
    %3555 = vmatpush2.bf16.msra.mxu0 %v3477
    %3556 = vmatprep.subr.bf16.mxu0 0
    %3557 = vmatpush2.bf16.msra.mxu0 %v3476
    %3558 = vmatprep.subr.bf16.mxu0 0
    %3559 = vmatpush2.bf16.msra.mxu0 %v3475
    %3560 = vmatprep.subr.bf16.mxu0 0
    %3561 = vmatpush2.bf16.msra.mxu0 %v3474
    %3562 = vmatprep.mubr.bf16.mxu0 %v3262
    %3563 = vmatmul.mubr.bf16.gmra.mxu0 %v3261
    %v3564 = vpop.f32.mrf.mxu0
    %v3565 = vadd.f32 %v3336, %v3564
    %v3566 = vpop.f32.mrf.mxu0
    %v3567 = vpop.f32.mrf.mxu0
    %v3568 = vadd.f32 %v3336, %v3567
    %v3569 = vpop.f32.mrf.mxu0
    %3570 = vdwg.mxu0
    %3571 = vmatprep.subr.bf16.mxu0 0
    %3572 = vmatpush1.bf16.msra.mxu0 %v3489
    %3573 = vmatprep.subr.bf16.mxu0 0
    %3574 = vmatpush1.bf16.msra.mxu0 %v3488
    %3575 = vmatprep.subr.bf16.mxu0 0
    %3576 = vmatpush1.bf16.msra.mxu0 %v3487
    %3577 = vmatprep.subr.bf16.mxu0 0
    %3578 = vmatpush1.bf16.msra.mxu0 %v3486
    %3579 = vmatprep.subr.bf16.mxu0 0
    %3580 = vmatpush1.bf16.msra.mxu0 %v3485
    %3581 = vmatprep.subr.bf16.mxu0 0
    %3582 = vmatpush1.bf16.msra.mxu0 %v3484
    %3583 = vmatprep.subr.bf16.mxu0 0
    %3584 = vmatpush1.bf16.msra.mxu0 %v3483
    %3585 = vmatprep.subr.bf16.mxu0 0
    %3586 = vmatpush1.bf16.msra.mxu0 %v3482
    %3587 = vmatprep.subr.bf16.mxu0 0
    %3588 = vmatpush2.bf16.msra.mxu0 %v3497
    %3589 = vmatprep.subr.bf16.mxu0 0
    %3590 = vmatpush2.bf16.msra.mxu0 %v3496
    %3591 = vmatprep.subr.bf16.mxu0 0
    %3592 = vmatpush2.bf16.msra.mxu0 %v3495
    %3593 = vmatprep.subr.bf16.mxu0 0
    %3594 = vmatpush2.bf16.msra.mxu0 %v3494
    %3595 = vmatprep.subr.bf16.mxu0 0
    %3596 = vmatpush2.bf16.msra.mxu0 %v3493
    %3597 = vmatprep.subr.bf16.mxu0 0
    %3598 = vmatpush2.bf16.msra.mxu0 %v3492
    %3599 = vmatprep.subr.bf16.mxu0 0
    %3600 = vmatpush2.bf16.msra.mxu0 %v3491
    %3601 = vmatprep.subr.bf16.mxu0 0
    %3602 = vmatpush2.bf16.msra.mxu0 %v3490
    %3603 = vmatprep.mubr.bf16.mxu0 %v3264
    %3604 = vmatmul.mubr.bf16.gmra.mxu0 %v3263
    %v3605 = vpop.f32.mrf.mxu0
    %v3606 = vadd.f32 %v3565, %v3605
    %v3607 = vpop.f32.mrf.mxu0
    %v3608 = vpop.f32.mrf.mxu0
    %v3609 = vadd.f32 %v3568, %v3608
    %v3610 = vpop.f32.mrf.mxu0
    %3611 = vdwg.mxu0
    %v3612 = vadd.f32 %v2948, %v3606
    %v3613 = vadd.f32 %v2949, %v3609
    %s3614 = scalar_lea.vmem [#allocation14], 3
    %v3615 = vld [vmem:[%s3614] sm:$0x1]
    %s3616 = scalar_lea.vmem %s10, 3
    %v3617 = vld [vmem:[%s3616] sm:$0x1]
    %3618 = vadd.xlane.f32.xlu0 %v3612
    %v3619 = vpop.xlane.xlu0 %3618
    %3620 = vadd.xlane.f32.xlu0 %v3613
    %v3621 = vpop.xlane.xlu0 %3620
    %v3622 = vmul.f32 %v3619, %v298
    %v3623 = vmul.f32 %v3621, %v298
    %v3624 = vmul.f32 %v3612, %v3612
    %v3625 = vmul.f32 %v3613, %v3613
    %3626 = vadd.xlane.f32.xlu0 %v3624
    %v3627 = vpop.xlane.xlu0 %3626
    %3628 = vadd.xlane.f32.xlu0 %v3625
    %v3629 = vpop.xlane.xlu0 %3628
    %v3630 = vmul.f32 %v3627, %v298
    %v3631 = vmul.f32 %v3629, %v298
    %v3632 = vmul.f32 %v3622, %v3622
    %v3633 = vmul.f32 %v3623, %v3623
    %v3634 = vsub.f32 %v3630, %v3632
    %v3635 = vsub.f32 %v3631, %v3633
    %v3636 = vadd.f32 %v3634, 1e-05
    %v3637 = vadd.f32 %v3635, 1e-05
    %v3638 = vrsqrt.pop %v3636
    %v3639 = vrsqrt.pop %v3637
    %v3640 = vsub.f32 %v3612, %v3622
    %v3641 = vsub.f32 %v3613, %v3623
    %v3642 = vmul.f32 %v3640, %v3638
    %v3643 = vmul.f32 %v3641, %v3639
    %v3645 = vlaneseq
    %v3646 = vshrl.u32 %v3645, 7
    %v3647 = vsub.s32 0, %v3646
    %v3648 = vrot.slane %v3615, %v3647
    %v3650 = vmul.f32 %v3642, %v3648
    %v3651 = vmul.f32 %v3643, %v3648
    %v3653 = vlaneseq
    %v3654 = vshrl.u32 %v3653, 7
    %v3655 = vsub.s32 0, %v3654
    %v3656 = vrot.slane %v3617, %v3655
    %v3658 = vadd.f32 %v3650, %v3656
    %v3659 = vadd.f32 %v3651, %v3656
    %v3660 = vpack.c.bf16 %v3659, %v3658
    %v3661 = vld [vmem:[#allocation16] sm:$0xff]
    %v3662 = vld [vmem:[#allocation16 + $0x8] sm:$0xff]
    %v3663 = vld [vmem:[#allocation16 + $0x10] sm:$0xff]
    %v3664 = vld [vmem:[#allocation16 + $0x18] sm:$0xff]
    %v3665 = vld [vmem:[#allocation16 + $0x20] sm:$0xff]
    %v3666 = vld [vmem:[#allocation16 + $0x28] sm:$0xff]
    %v3667 = vld [vmem:[#allocation16 + $0x30] sm:$0xff]
    %v3668 = vld [vmem:[#allocation16 + $0x38] sm:$0xff]
    %v3669 = vld [vmem:[#allocation16 + $0x40] sm:$0xff]
    %v3670 = vld [vmem:[#allocation16 + $0x48] sm:$0xff]
    %v3671 = vld [vmem:[#allocation16 + $0x50] sm:$0xff]
    %v3672 = vld [vmem:[#allocation16 + $0x58] sm:$0xff]
    %v3673 = vld [vmem:[#allocation16 + $0x60] sm:$0xff]
    %v3674 = vld [vmem:[#allocation16 + $0x68] sm:$0xff]
    %v3675 = vld [vmem:[#allocation16 + $0x70] sm:$0xff]
    %v3676 = vld [vmem:[#allocation16 + $0x78] sm:$0xff]
    %v3677 = vld [vmem:[#allocation16 + $0x80] sm:$0xff]
    %v3678 = vld [vmem:[#allocation16 + $0x88] sm:$0xff]
    %v3679 = vld [vmem:[#allocation16 + $0x90] sm:$0xff]
    %v3680 = vld [vmem:[#allocation16 + $0x98] sm:$0xff]
    %v3681 = vld [vmem:[#allocation16 + $0xa0] sm:$0xff]
    %v3682 = vld [vmem:[#allocation16 + $0xa8] sm:$0xff]
    %v3683 = vld [vmem:[#allocation16 + $0xb0] sm:$0xff]
    %v3684 = vld [vmem:[#allocation16 + $0xb8] sm:$0xff]
    %v3685 = vld [vmem:[#allocation16 + $0xc0] sm:$0xff]
    %v3686 = vld [vmem:[#allocation16 + $0xc8] sm:$0xff]
    %v3687 = vld [vmem:[#allocation16 + $0xd0] sm:$0xff]
    %v3688 = vld [vmem:[#allocation16 + $0xd8] sm:$0xff]
    %v3689 = vld [vmem:[#allocation16 + $0xe0] sm:$0xff]
    %v3690 = vld [vmem:[#allocation16 + $0xe8] sm:$0xff]
    %v3691 = vld [vmem:[#allocation16 + $0xf0] sm:$0xff]
    %v3692 = vld [vmem:[#allocation16 + $0xf8] sm:$0xff]
    %v3693 = vld [vmem:[#allocation16 + $0x100] sm:$0xff]
    %v3694 = vld [vmem:[#allocation16 + $0x108] sm:$0xff]
    %v3695 = vld [vmem:[#allocation16 + $0x110] sm:$0xff]
    %v3696 = vld [vmem:[#allocation16 + $0x118] sm:$0xff]
    %v3697 = vld [vmem:[#allocation16 + $0x120] sm:$0xff]
    %v3698 = vld [vmem:[#allocation16 + $0x128] sm:$0xff]
    %v3699 = vld [vmem:[#allocation16 + $0x130] sm:$0xff]
    %v3700 = vld [vmem:[#allocation16 + $0x138] sm:$0xff]
    %v3701 = vld [vmem:[#allocation16 + $0x140] sm:$0xff]
    %v3702 = vld [vmem:[#allocation16 + $0x148] sm:$0xff]
    %v3703 = vld [vmem:[#allocation16 + $0x150] sm:$0xff]
    %v3704 = vld [vmem:[#allocation16 + $0x158] sm:$0xff]
    %v3705 = vld [vmem:[#allocation16 + $0x160] sm:$0xff]
    %v3706 = vld [vmem:[#allocation16 + $0x168] sm:$0xff]
    %v3707 = vld [vmem:[#allocation16 + $0x170] sm:$0xff]
    %v3708 = vld [vmem:[#allocation16 + $0x178] sm:$0xff]
    %v3709 = vld [vmem:[%s12] sm:$0x3f]
    %v3711 = vlaneseq
    %v3712 = vshrl.u32 %v3711, 7
    %v3713 = vsub.s32 0, %v3712
    %v3714 = vrot.slane %v3709, %v3713
    %v3715 = vlaneseq
    %v3716 = vshrl.u32 %v3715, 7
    %v3717 = vsub.s32 1, %v3716
    %v3718 = vrot.slane %v3709, %v3717
    %v3719 = vlaneseq
    %v3720 = vshrl.u32 %v3719, 7
    %v3721 = vsub.s32 2, %v3720
    %v3722 = vrot.slane %v3709, %v3721
    %v3723 = vlaneseq
    %v3724 = vshrl.u32 %v3723, 7
    %v3725 = vsub.s32 3, %v3724
    %v3726 = vrot.slane %v3709, %v3725
    %v3727 = vlaneseq
    %v3728 = vshrl.u32 %v3727, 7
    %v3729 = vsub.s32 4, %v3728
    %v3730 = vrot.slane %v3709, %v3729
    %v3731 = vlaneseq
    %v3732 = vshrl.u32 %v3731, 7
    %v3733 = vsub.s32 5, %v3732
    %v3734 = vrot.slane %v3709, %v3733
    %v3789 = vunpack.c.l.b16 %v3661
    %v3790 = vunpack.c.h.b16 %v3661
    %v3791 = vunpack.c.l.b16 %v3662
    %v3792 = vunpack.c.h.b16 %v3662
    %v3793 = vunpack.c.l.b16 %v3663
    %v3794 = vunpack.c.h.b16 %v3663
    %v3795 = vunpack.c.l.b16 %v3664
    %v3796 = vunpack.c.h.b16 %v3664
    %v3797 = vunpack.c.l.b16 %v3665
    %v3798 = vunpack.c.h.b16 %v3665
    %v3799 = vunpack.c.l.b16 %v3666
    %v3800 = vunpack.c.h.b16 %v3666
    %v3801 = vunpack.c.l.b16 %v3667
    %v3802 = vunpack.c.h.b16 %v3667
    %v3803 = vunpack.c.l.b16 %v3668
    %v3804 = vunpack.c.h.b16 %v3668
    %v3805 = vunpack.c.l.b16 %v3669
    %v3806 = vunpack.c.h.b16 %v3669
    %v3807 = vunpack.c.l.b16 %v3670
    %v3808 = vunpack.c.h.b16 %v3670
    %v3809 = vunpack.c.l.b16 %v3671
    %v3810 = vunpack.c.h.b16 %v3671
    %v3811 = vunpack.c.l.b16 %v3672
    %v3812 = vunpack.c.h.b16 %v3672
    %v3813 = vunpack.c.l.b16 %v3673
    %v3814 = vunpack.c.h.b16 %v3673
    %v3815 = vunpack.c.l.b16 %v3674
    %v3816 = vunpack.c.h.b16 %v3674
    %v3817 = vunpack.c.l.b16 %v3675
    %v3818 = vunpack.c.h.b16 %v3675
    %v3819 = vunpack.c.l.b16 %v3676
    %v3820 = vunpack.c.h.b16 %v3676
    %v3821 = vunpack.c.l.b16 %v3677
    %v3822 = vunpack.c.h.b16 %v3677
    %v3823 = vunpack.c.l.b16 %v3678
    %v3824 = vunpack.c.h.b16 %v3678
    %v3825 = vunpack.c.l.b16 %v3679
    %v3826 = vunpack.c.h.b16 %v3679
    %v3827 = vunpack.c.l.b16 %v3680
    %v3828 = vunpack.c.h.b16 %v3680
    %v3829 = vunpack.c.l.b16 %v3681
    %v3830 = vunpack.c.h.b16 %v3681
    %v3831 = vunpack.c.l.b16 %v3682
    %v3832 = vunpack.c.h.b16 %v3682
    %v3833 = vunpack.c.l.b16 %v3683
    %v3834 = vunpack.c.h.b16 %v3683
    %v3835 = vunpack.c.l.b16 %v3684
    %v3836 = vunpack.c.h.b16 %v3684
    %v3837 = vunpack.c.l.b16 %v3685
    %v3838 = vunpack.c.h.b16 %v3685
    %v3839 = vunpack.c.l.b16 %v3686
    %v3840 = vunpack.c.h.b16 %v3686
    %v3841 = vunpack.c.l.b16 %v3687
    %v3842 = vunpack.c.h.b16 %v3687
    %v3843 = vunpack.c.l.b16 %v3688
    %v3844 = vunpack.c.h.b16 %v3688
    %v3845 = vunpack.c.l.b16 %v3689
    %v3846 = vunpack.c.h.b16 %v3689
    %v3847 = vunpack.c.l.b16 %v3690
    %v3848 = vunpack.c.h.b16 %v3690
    %v3849 = vunpack.c.l.b16 %v3691
    %v3850 = vunpack.c.h.b16 %v3691
    %v3851 = vunpack.c.l.b16 %v3692
    %v3852 = vunpack.c.h.b16 %v3692
    %v3853 = vunpack.c.l.b16 %v3693
    %v3854 = vunpack.c.h.b16 %v3693
    %v3855 = vunpack.c.l.b16 %v3694
    %v3856 = vunpack.c.h.b16 %v3694
    %v3857 = vunpack.c.l.b16 %v3695
    %v3858 = vunpack.c.h.b16 %v3695
    %v3859 = vunpack.c.l.b16 %v3696
    %v3860 = vunpack.c.h.b16 %v3696
    %v3861 = vunpack.c.l.b16 %v3697
    %v3862 = vunpack.c.h.b16 %v3697
    %v3863 = vunpack.c.l.b16 %v3698
    %v3864 = vunpack.c.h.b16 %v3698
    %v3865 = vunpack.c.l.b16 %v3699
    %v3866 = vunpack.c.h.b16 %v3699
    %v3867 = vunpack.c.l.b16 %v3700
    %v3868 = vunpack.c.h.b16 %v3700
    %v3869 = vunpack.c.l.b16 %v3701
    %v3870 = vunpack.c.h.b16 %v3701
    %v3871 = vunpack.c.l.b16 %v3702
    %v3872 = vunpack.c.h.b16 %v3702
    %v3873 = vunpack.c.l.b16 %v3703
    %v3874 = vunpack.c.h.b16 %v3703
    %v3875 = vunpack.c.l.b16 %v3704
    %v3876 = vunpack.c.h.b16 %v3704
    %v3877 = vunpack.c.l.b16 %v3705
    %v3878 = vunpack.c.h.b16 %v3705
    %v3879 = vunpack.c.l.b16 %v3706
    %v3880 = vunpack.c.h.b16 %v3706
    %v3881 = vunpack.c.l.b16 %v3707
    %v3882 = vunpack.c.h.b16 %v3707
    %v3883 = vunpack.c.l.b16 %v3708
    %v3884 = vunpack.c.h.b16 %v3708
    %v3885 = vpack.c.b16 %v3795, %v3789
    %v3886 = vpack.c.b16 %v3796, %v3790
    %v3887 = vpack.c.b16 %v3797, %v3791
    %v3888 = vpack.c.b16 %v3798, %v3792
    %v3889 = vpack.c.b16 %v3799, %v3793
    %v3890 = vpack.c.b16 %v3800, %v3794
    %v3891 = vpack.c.b16 %v3807, %v3801
    %v3892 = vpack.c.b16 %v3808, %v3802
    %v3893 = vpack.c.b16 %v3809, %v3803
    %v3894 = vpack.c.b16 %v3810, %v3804
    %v3895 = vpack.c.b16 %v3811, %v3805
    %v3896 = vpack.c.b16 %v3812, %v3806
    %v3897 = vpack.c.b16 %v3819, %v3813
    %v3898 = vpack.c.b16 %v3820, %v3814
    %v3899 = vpack.c.b16 %v3821, %v3815
    %v3900 = vpack.c.b16 %v3822, %v3816
    %v3901 = vpack.c.b16 %v3823, %v3817
    %v3902 = vpack.c.b16 %v3824, %v3818
    %v3903 = vpack.c.b16 %v3831, %v3825
    %v3904 = vpack.c.b16 %v3832, %v3826
    %v3905 = vpack.c.b16 %v3833, %v3827
    %v3906 = vpack.c.b16 %v3834, %v3828
    %v3907 = vpack.c.b16 %v3835, %v3829
    %v3908 = vpack.c.b16 %v3836, %v3830
    %v3909 = vpack.c.b16 %v3843, %v3837
    %v3910 = vpack.c.b16 %v3844, %v3838
    %v3911 = vpack.c.b16 %v3845, %v3839
    %v3912 = vpack.c.b16 %v3846, %v3840
    %v3913 = vpack.c.b16 %v3847, %v3841
    %v3914 = vpack.c.b16 %v3848, %v3842
    %v3915 = vpack.c.b16 %v3855, %v3849
    %v3916 = vpack.c.b16 %v3856, %v3850
    %v3917 = vpack.c.b16 %v3857, %v3851
    %v3918 = vpack.c.b16 %v3858, %v3852
    %v3919 = vpack.c.b16 %v3859, %v3853
    %v3920 = vpack.c.b16 %v3860, %v3854
    %v3921 = vpack.c.b16 %v3867, %v3861
    %v3922 = vpack.c.b16 %v3868, %v3862
    %v3923 = vpack.c.b16 %v3869, %v3863
    %v3924 = vpack.c.b16 %v3870, %v3864
    %v3925 = vpack.c.b16 %v3871, %v3865
    %v3926 = vpack.c.b16 %v3872, %v3866
    %v3927 = vpack.c.b16 %v3879, %v3873
    %v3928 = vpack.c.b16 %v3880, %v3874
    %v3929 = vpack.c.b16 %v3881, %v3875
    %v3930 = vpack.c.b16 %v3882, %v3876
    %v3931 = vpack.c.b16 %v3883, %v3877
    %v3932 = vpack.c.b16 %v3884, %v3878
    %3981 = vmatprep.subr.bf16.mxu0 %v3928
    %3982 = vmatpush1.bf16.msra.mxu0 %v3927
    %3983 = vmatprep.subr.bf16.mxu0 %v3922
    %3984 = vmatpush1.bf16.msra.mxu0 %v3921
    %3985 = vmatprep.subr.bf16.mxu0 %v3916
    %3986 = vmatpush1.bf16.msra.mxu0 %v3915
    %3987 = vmatprep.subr.bf16.mxu0 %v3910
    %3988 = vmatpush1.bf16.msra.mxu0 %v3909
    %3989 = vmatprep.subr.bf16.mxu0 %v3904
    %3990 = vmatpush1.bf16.msra.mxu0 %v3903
    %3991 = vmatprep.subr.bf16.mxu0 %v3898
    %3992 = vmatpush1.bf16.msra.mxu0 %v3897
    %3993 = vmatprep.subr.bf16.mxu0 %v3892
    %3994 = vmatpush1.bf16.msra.mxu0 %v3891
    %3995 = vmatprep.subr.bf16.mxu0 %v3886
    %3996 = vmatpush1.bf16.msra.mxu0 %v3885
    %3997 = vmatprep.subr.bf16.mxu0 0
    %3998 = vmatpush2.bf16.msra.mxu0 0
    %3999 = vmatprep.subr.bf16.mxu0 0
    %4000 = vmatpush2.bf16.msra.mxu0 0
    %4001 = vmatprep.subr.bf16.mxu0 0
    %4002 = vmatpush2.bf16.msra.mxu0 0
    %4003 = vmatprep.subr.bf16.mxu0 0
    %4004 = vmatpush2.bf16.msra.mxu0 0
    %4005 = vmatprep.subr.bf16.mxu0 0
    %4006 = vmatpush2.bf16.msra.mxu0 0
    %4007 = vmatprep.subr.bf16.mxu0 0
    %4008 = vmatpush2.bf16.msra.mxu0 0
    %4009 = vmatprep.subr.bf16.mxu0 0
    %4010 = vmatpush2.bf16.msra.mxu0 0
    %4011 = vmatprep.subr.bf16.mxu0 0
    %4012 = vmatpush2.bf16.msra.mxu0 0
    %4013 = vmatprep.mubr.bf16.mxu0 0
    %4014 = vmatmul.mubr.bf16.gmra.mxu0 %v3660
    %v4015 = vpop.f32.mrf.mxu0
    %v4016 = vadd.f32 %v3714, %v4015
    %v4017 = vpop.f32.mrf.mxu0
    %v4018 = vadd.f32 %v3718, %v4017
    %v4019 = vpop.f32.mrf.mxu0
    %v4020 = vadd.f32 %v3714, %v4019
    %v4021 = vpop.f32.mrf.mxu0
    %v4022 = vadd.f32 %v3718, %v4021
    %4023 = vdwg.mxu0
    %4024 = vmatprep.subr.bf16.mxu0 %v3930
    %4025 = vmatpush1.bf16.msra.mxu0 %v3929
    %4026 = vmatprep.subr.bf16.mxu0 %v3924
    %4027 = vmatpush1.bf16.msra.mxu0 %v3923
    %4028 = vmatprep.subr.bf16.mxu0 %v3918
    %4029 = vmatpush1.bf16.msra.mxu0 %v3917
    %4030 = vmatprep.subr.bf16.mxu0 %v3912
    %4031 = vmatpush1.bf16.msra.mxu0 %v3911
    %4032 = vmatprep.subr.bf16.mxu0 %v3906
    %4033 = vmatpush1.bf16.msra.mxu0 %v3905
    %4034 = vmatprep.subr.bf16.mxu0 %v3900
    %4035 = vmatpush1.bf16.msra.mxu0 %v3899
    %4036 = vmatprep.subr.bf16.mxu0 %v3894
    %4037 = vmatpush1.bf16.msra.mxu0 %v3893
    %4038 = vmatprep.subr.bf16.mxu0 %v3888
    %4039 = vmatpush1.bf16.msra.mxu0 %v3887
    %4040 = vmatprep.subr.bf16.mxu0 0
    %4041 = vmatpush2.bf16.msra.mxu0 0
    %4042 = vmatprep.subr.bf16.mxu0 0
    %4043 = vmatpush2.bf16.msra.mxu0 0
    %4044 = vmatprep.subr.bf16.mxu0 0
    %4045 = vmatpush2.bf16.msra.mxu0 0
    %4046 = vmatprep.subr.bf16.mxu0 0
    %4047 = vmatpush2.bf16.msra.mxu0 0
    %4048 = vmatprep.subr.bf16.mxu0 0
    %4049 = vmatpush2.bf16.msra.mxu0 0
    %4050 = vmatprep.subr.bf16.mxu0 0
    %4051 = vmatpush2.bf16.msra.mxu0 0
    %4052 = vmatprep.subr.bf16.mxu0 0
    %4053 = vmatpush2.bf16.msra.mxu0 0
    %4054 = vmatprep.subr.bf16.mxu0 0
    %4055 = vmatpush2.bf16.msra.mxu0 0
    %4056 = vmatprep.mubr.bf16.mxu0 0
    %4057 = vmatmul.mubr.bf16.gmra.mxu0 %v3660
    %v4058 = vpop.f32.mrf.mxu0
    %v4059 = vadd.f32 %v3722, %v4058
    %v4060 = vpop.f32.mrf.mxu0
    %v4061 = vadd.f32 %v3726, %v4060
    %v4062 = vpop.f32.mrf.mxu0
    %v4063 = vadd.f32 %v3722, %v4062
    %v4064 = vpop.f32.mrf.mxu0
    %v4065 = vadd.f32 %v3726, %v4064
    %4066 = vdwg.mxu0
    %4067 = vmatprep.subr.bf16.mxu0 %v3932
    %4068 = vmatpush1.bf16.msra.mxu0 %v3931
    %4069 = vmatprep.subr.bf16.mxu0 %v3926
    %4070 = vmatpush1.bf16.msra.mxu0 %v3925
    %4071 = vmatprep.subr.bf16.mxu0 %v3920
    %4072 = vmatpush1.bf16.msra.mxu0 %v3919
    %4073 = vmatprep.subr.bf16.mxu0 %v3914
    %4074 = vmatpush1.bf16.msra.mxu0 %v3913
    %4075 = vmatprep.subr.bf16.mxu0 %v3908
    %4076 = vmatpush1.bf16.msra.mxu0 %v3907
    %4077 = vmatprep.subr.bf16.mxu0 %v3902
    %4078 = vmatpush1.bf16.msra.mxu0 %v3901
    %4079 = vmatprep.subr.bf16.mxu0 %v3896
    %4080 = vmatpush1.bf16.msra.mxu0 %v3895
    %4081 = vmatprep.subr.bf16.mxu0 %v3890
    %4082 = vmatpush1.bf16.msra.mxu0 %v3889
    %4083 = vmatprep.subr.bf16.mxu0 0
    %4084 = vmatpush2.bf16.msra.mxu0 0
    %4085 = vmatprep.subr.bf16.mxu0 0
    %4086 = vmatpush2.bf16.msra.mxu0 0
    %4087 = vmatprep.subr.bf16.mxu0 0
    %4088 = vmatpush2.bf16.msra.mxu0 0
    %4089 = vmatprep.subr.bf16.mxu0 0
    %4090 = vmatpush2.bf16.msra.mxu0 0
    %4091 = vmatprep.subr.bf16.mxu0 0
    %4092 = vmatpush2.bf16.msra.mxu0 0
    %4093 = vmatprep.subr.bf16.mxu0 0
    %4094 = vmatpush2.bf16.msra.mxu0 0
    %4095 = vmatprep.subr.bf16.mxu0 0
    %4096 = vmatpush2.bf16.msra.mxu0 0
    %4097 = vmatprep.subr.bf16.mxu0 0
    %4098 = vmatpush2.bf16.msra.mxu0 0
    %4099 = vmatprep.mubr.bf16.mxu0 0
    %4100 = vmatmul.mubr.bf16.gmra.mxu0 %v3660
    %v4101 = vpop.f32.mrf.mxu0
    %v4102 = vadd.f32 %v3730, %v4101
    %v4103 = vpop.f32.mrf.mxu0
    %v4104 = vadd.f32 %v3734, %v4103
    %v4105 = vpop.f32.mrf.mxu0
    %v4106 = vadd.f32 %v3730, %v4105
    %v4107 = vpop.f32.mrf.mxu0
    %v4108 = vadd.f32 %v3734, %v4107
    %4109 = vdwg.mxu0
    %v4110 = vpack.c.bf16 %v4020, %v4016
    %v4111 = vpack.c.bf16 %v4022, %v4018
    %v4112 = vpack.c.bf16 %v4063, %v4059
    %v4113 = vpack.c.bf16 %v4065, %v4061
    %v4114 = vpack.c.bf16 %v4106, %v4102
    %v4115 = vpack.c.bf16 %v4108, %v4104
    %v4122 = vunpack.c.l.b16 %v4110
    %v4123 = vunpack.c.l.b16 %v4111
    %v4124 = vunpack.c.l.b16 %v4112
    %v4125 = vunpack.c.l.b16 %v4113
    %v4126 = vunpack.c.l.b16 %v4114
    %v4127 = vunpack.c.l.b16 %v4115
    %v4128 = vunpack.c.h.b16 %v4110
    %v4129 = vunpack.c.h.b16 %v4111
    %v4130 = vunpack.c.h.b16 %v4112
    %v4131 = vunpack.c.h.b16 %v4113
    %v4132 = vunpack.c.h.b16 %v4114
    %v4133 = vunpack.c.h.b16 %v4115
    %v4134 = vpack.c.b16 %v4123, %v4122
    %v4135 = vpack.c.b16 %v4125, %v4124
    %v4136 = vpack.c.b16 %v4127, %v4126
    %v4137 = vpack.c.b16 %v4129, %v4128
    %v4138 = vpack.c.b16 %v4131, %v4130
    %v4139 = vpack.c.b16 %v4133, %v4132
    %4146 = vst [vmem:[#allocation17] sm:$0xff] %v4134
    %4147 = vst [vmem:[#allocation17 + $0x8] sm:$0xff] %v4135
    %4148 = vst [vmem:[#allocation17 + $0x10] sm:$0xff] %v4136
    %4149 = vst [vmem:[#allocation17 + $0x18] sm:$0xff] %v4137
    %4150 = vst [vmem:[#allocation17 + $0x20] sm:$0xff] %v4138
    %4151 = vst [vmem:[#allocation17 + $0x28] sm:$0xff] %v4139
    // Predicated region
    $region90: #{tpu_custom_call.1} parent=1 // pred_check
      _
    $region91: #{tpu_custom_call.1} parent=1 // pred_check_branch
      %4153 = sbr.rel (0) target = $region93
    $region92: #{tpu_custom_call.1} parent=1 // pred_region
      %s4155 = ssub.s32 768, 768
      %4156 = vsyncadd [#allocation4], %s4155
      %s4157 = sshll.u32 [#allocation17], 4
      %s4158 = int_to_ptr.vmem [resolvable:$true] %s4157
      %4163 = dma.vmem_to_hbm [thread:$0]  %s4158, 768, %s13, [#allocation4], 384, 384, 24
    $region93: #{tpu_custom_call.1} parent=1 // pred_fallthru
      _
    // Predicated region
    $region94: #{tpu_custom_call.1} parent=1 // pred_check
      _
    $region95: #{tpu_custom_call.1} parent=1 // pred_check_branch
      %4165 = sbr.rel (0) target = $region97
    $region96: #{tpu_custom_call.1} parent=1 // pred_region
      %4166 = dma.done [#allocation4], 768
    $region97: #{tpu_custom_call.1} parent=1 // pred_fallthru
      _
    %4167 = vsyncpa [#allocation3], 1
    %4168 = vsyncpa [#allocation6], 1
    %4169 = vsyncpa [#allocation9], 1
    %4170 = vsyncpa [#allocation12], 1
    %4171 = vsyncpa [#allocation15], 1
    %4172 = vsyncpa [#allocation4], 1

</llo_original>
